<compile_context>
chip_gen: v7x
topology: tpu7x:2x2x1
jax: 0.10.0
libtpu: 0.0.40
codegen_flags: <defaults>
</compile_context>

<pallas_src>
import functools

import jax
import jax.numpy as jnp
from jax.experimental import pallas as pl
from jax.experimental.pallas import tpu as pltpu


def _round_up(a, m):
    return ((a + m - 1) // m) * m


def _leaky(h):
    return jnp.where(h > 0, h, 0.1 * h)


def _auto_config(row_tile, rel_tile, vmem_limit_bytes):
    """Per-generation tile / VMEM defaults.

    v5e/v6e report 128 MiB VMEM -> larger tiles + higher scoped limit.
    v7x reports 64 MiB -> conservative tiles, leave Mosaic scratch headroom.
    Explicit arguments always win.
    """
    if row_tile is not None and rel_tile is not None and vmem_limit_bytes is not None:
        return row_tile, rel_tile, vmem_limit_bytes
    try:
        vmem_phys = int(pltpu.get_tpu_info().vmem_capacity_bytes)
    except Exception:  # query unavailable -> assume the smaller (v7x) budget
        vmem_phys = 64 * 1024 * 1024
    big = vmem_phys >= 96 * 1024 * 1024
    if row_tile is None:
        row_tile = 256 if big else 128
    if rel_tile is None:
        rel_tile = 16 if big else 8
    if vmem_limit_bytes is None:
        vmem_limit_bytes = min(96 * 2**20, max(40 * 2**20, int(0.68 * vmem_phys)))
    return row_tile, rel_tile, vmem_limit_bytes


def _biaffine_kernel(
    x_ref, mask_ref,
    w_ad_ref, b_ad_ref, w_rd_ref, b_rd_ref,
    arc_h_ref, rel_h_ref,
    w_arc_ref, w_rel_ref,
    s_arc_ref, s_rel_ref,
    rel_d_s,
    *, rt, dot_dtype,
):
    k = pl.program_id(2)           # rel chunk (innermost, "arbitrary")

    @pl.when(k == 0)
    def _():
        xr = x_ref[0]                                            # [TL, H] f32
        # d-side MLPs for this row tile only (f32 matmul + f32 leaky_relu; the
        # biaffine bias channel is a folded ones-column of the padded weights).
        rel_d = _leaky(jnp.dot(xr, w_rd_ref[...],
                               preferred_element_type=jnp.float32) + b_rd_ref[...])
        rel_d_s[...] = rel_d.astype(dot_dtype)    # persists across rel chunks

        arc_d = _leaky(jnp.dot(xr, w_ad_ref[...],
                               preferred_element_type=jnp.float32) + b_ad_ref[...])
        t_arc = jnp.dot(arc_d.astype(dot_dtype), w_arc_ref[...],
                        preferred_element_type=jnp.float32)      # [TL, Map]
        s_arc = jnp.dot(t_arc.astype(dot_dtype), arc_h_ref[0],
                        preferred_element_type=jnp.float32)      # [TL, Lp]
        # Robust column mask: where-select (no -inf arithmetic).
        s_arc = jnp.where(mask_ref[0] > 0.0, s_arc, -jnp.inf)
        s_arc_ref[0] = s_arc.astype(s_arc_ref.dtype)

    # ---- rel biaffine for this chunk of `rt` relations (per-o: small live values) ----
    rel_d = rel_d_s[...]                          # [TL, Mrp] dot_dtype
    rel_h_t = rel_h_ref[0]                        # [Mrp, Lp] dot_dtype (pre-transposed)
    for o in range(rt):                           # rt is small & static -> unrolled
        w_o = w_rel_ref[k * rt + o]               # [Mrp, Mrp], VMEM-resident weights
        t_o = jnp.dot(rel_d, w_o, preferred_element_type=jnp.float32)
        s_o = jnp.dot(t_o.astype(dot_dtype), rel_h_t,
                      preferred_element_type=jnp.float32)        # [TL, Lp]
        s_rel_ref[0, o] = s_o.astype(s_rel_ref.dtype)


def biaffine_decoder_forward(x, params, mask=None, *, rel_last=False,
                             use_bf16=True, out_dtype=None,
                             row_tile=None, rel_tile=None, vmem_limit_bytes=None,
                             mlp_pad=128):
    """x: [B, L, H].

    Returns (s_arc [B, L, L], s_rel).
    s_rel is [B, n_rels, L, L] by default (no standalone HBM transpose of the largest
    tensor); pass rel_last=True for the exact PyTorch [B, L, L, n_rels] layout.
    Defaults: bf16 MXU dots (f32 accumulation) and bf16 outputs; pass
    use_bf16=False / out_dtype=jnp.float32 for a bit-faithful f32 path.
    """
    f32 = jnp.float32
    dot_dtype = jnp.bfloat16 if use_bf16 else jnp.float32
    if out_dtype is None:
        out_dtype = jnp.bfloat16 if use_bf16 else jnp.float32

    B, L, H = x.shape
    Ma = params["w_arc_d"].shape[1]
    Mr = params["w_rel_d"].shape[1]
    n_rels = params["w_rel_attn"].shape[0]

    row_tile, rel_tile, vmem_limit_bytes = _auto_config(row_tile, rel_tile,
                                                        vmem_limit_bytes)

    # Padded sizes: lane-dense (128) score dims; mlp_pad-aligned MLP widths.
    Lp = _round_up(L, 128)
    TL = min(row_tile, Lp)
    if Lp % TL:
        TL = 128
    Map = _round_up(Ma + 1, mlp_pad)
    Mrp = _round_up(Mr + 1, mlp_pad)
    RT = max(1, min(rel_tile, n_rels))
    NRp = _round_up(n_rels, RT)
    n_chunks = NRp // RT
    n_row_tiles = Lp // TL

    # ---- d-side MLP weights (fused in-kernel), zero-padded; bias channel folded ----
    def pad_lin(w, b, m_pad, ones_col=None):
        m = w.shape[1]
        w_p = jnp.zeros((H, m_pad), f32).at[:, :m].set(w.astype(f32))
        b_p = jnp.zeros((1, m_pad), f32).at[:, :m].set(jnp.reshape(b, (1, m)).astype(f32))
        if ones_col is not None:
            b_p = b_p.at[:, ones_col].set(1.0)   # leaky_relu(1) == 1 -> biaffine "+1"
        return w_p, b_p

    w_ad, b_ad = pad_lin(params["w_arc_d"], params["b_arc_d"], Map, ones_col=Ma)
    w_rd, b_rd = pad_lin(params["w_rel_d"], params["b_rel_d"], Mrp, ones_col=Mr)

    x_p = x.astype(f32)
    if Lp != L:
        x_p = jnp.pad(x_p, ((0, 0), (0, Lp - L), (0, 0)))

    # ---- h-side MLPs hoisted out of the kernel (computed once per batch by XLA),
    #      pre-transposed to [B, M, Lp] (lane = Lp) and pre-cast to the dot dtype ----
    arc_h = _leaky(jnp.einsum("blh,hm->blm", x_p, params["w_arc_h"].astype(f32))
                   + jnp.reshape(params["b_arc_h"], (1, 1, Ma)).astype(f32))
    rel_h = _leaky(jnp.einsum("blh,hm->blm", x_p, params["w_rel_h"].astype(f32))
                   + jnp.reshape(params["b_rel_h"], (1, 1, Mr)).astype(f32))
    arc_h_t = jnp.zeros((B, Map, Lp), dot_dtype).at[:, :Ma, :].set(
        jnp.swapaxes(arc_h, 1, 2).astype(dot_dtype))
    rel_h_t = jnp.zeros((B, Mrp, Lp), dot_dtype).at[:, :Mr, :].set(
        jnp.swapaxes(rel_h, 1, 2).astype(dot_dtype))
    rel_h_t = rel_h_t.at[:, Mr, :].set(1.0)       # bias_y channel, set post-activation

    # ---- biaffine weights, zero-padded, pre-cast to the dot dtype ----
    w_arc = jnp.zeros((Map, Map), dot_dtype).at[:Ma + 1, :Ma].set(
        params["w_arc_attn"].astype(dot_dtype))
    w_rel = jnp.zeros((NRp, Mrp, Mrp), dot_dtype).at[:n_rels, :Mr + 1, :Mr + 1].set(
        params["w_rel_attn"].astype(dot_dtype))

    if mask is None:
        mask_f = jnp.ones((B, 1, Lp), f32)
    else:
        m = mask
        if Lp != L:
            m = jnp.pad(m, ((0, 0), (0, Lp - L)), constant_values=False)
        mask_f = m[:, None, :].astype(f32)

    kernel = functools.partial(_biaffine_kernel, rt=RT, dot_dtype=dot_dtype)

    def rep(*shape):
        # Grid-invariant operand: constant block index -> DMA'd only once.
        return pl.BlockSpec(shape, lambda b, i, k: (0,) * len(shape))

    s_arc_p, s_rel_p = pl.pallas_call(
        kernel,
        out_shape=(
            jax.ShapeDtypeStruct((B, Lp, Lp), out_dtype),
            jax.ShapeDtypeStruct((B, NRp, Lp, Lp), out_dtype),
        ),
        grid_spec=pltpu.PrefetchScalarGridSpec(
            num_scalar_prefetch=0,
            grid=(B, n_row_tiles, n_chunks),
            in_specs=[
                pl.BlockSpec((1, TL, H), lambda b, i, k: (b, i, 0)),    # x row tile
                pl.BlockSpec((1, 1, Lp), lambda b, i, k: (b, 0, 0)),    # mask (1/0)
                rep(H, Map), rep(1, Map),                               # arc_d MLP
                rep(H, Mrp), rep(1, Mrp),                               # rel_d MLP
                pl.BlockSpec((1, Map, Lp), lambda b, i, k: (b, 0, 0)),  # arc_h^T
                pl.BlockSpec((1, Mrp, Lp), lambda b, i, k: (b, 0, 0)),  # rel_h^T
                rep(Map, Map),                                          # W_arc
                rep(NRp, Mrp, Mrp),                                     # W_rel resident
            ],
            out_specs=[
                pl.BlockSpec((1, TL, Lp), lambda b, i, k: (b, i, 0)),
                pl.BlockSpec((1, RT, TL, Lp), lambda b, i, k: (b, k, i, 0)),
            ],
            scratch_shapes=[
                pltpu.VMEM((TL, Mrp), dot_dtype),   # rel_d (persists across rel chunks)
            ],
        ),
        compiler_params=pltpu.CompilerParams(
            dimension_semantics=("parallel", "parallel", "arbitrary"),
            vmem_limit_bytes=vmem_limit_bytes,
        ),
    )(x_p, mask_f, w_ad, b_ad, w_rd, b_rd, arc_h_t, rel_h_t, w_arc, w_rel)

    s_arc = s_arc_p[:, :L, :L] if Lp != L else s_arc_p
    if Lp != L or NRp != n_rels:
        s_rel = s_rel_p[:, :n_rels, :L, :L]
    else:
        s_rel = s_rel_p

    if rel_last:
        # Exact PyTorch layout; this is a standalone HBM transpose of the largest
        # tensor — prefer consuming [B, n_rels, L, L] directly (argmax over axis=1).
        s_rel = jnp.transpose(s_rel, (0, 2, 3, 1))
    return s_arc, s_rel


def make_params(key, hidden_size, n_mlp_arc, n_mlp_rel, n_rels):
    ks = jax.random.split(key, 10)
    scale = 0.1

    def lin(kw, kb, n_in, n_out):
        # nn.Linear(n_in, n_out): weight [n_out, n_in]; pre-transpose to [n_in, n_out]
        w = scale * jax.random.normal(kw, (n_out, n_in), jnp.float32)
        b = scale * jax.random.normal(kb, (n_out,), jnp.float32)
        return w.T, b.reshape(1, n_out)

    w_ad, b_ad = lin(ks[0], ks[1], hidden_size, n_mlp_arc)
    w_ah, b_ah = lin(ks[2], ks[3], hidden_size, n_mlp_arc)
    w_rd, b_rd = lin(ks[4], ks[5], hidden_size, n_mlp_rel)
    w_rh, b_rh = lin(ks[6], ks[7], hidden_size, n_mlp_rel)

    w_arc_attn = scale * jax.random.normal(ks[8], (n_mlp_arc + 1, n_mlp_arc), jnp.float32)
    w_rel_attn = scale * jax.random.normal(
        ks[9], (n_rels, n_mlp_rel + 1, n_mlp_rel + 1), jnp.float32)

    return dict(
        w_arc_d=w_ad, b_arc_d=b_ad, w_arc_h=w_ah, b_arc_h=b_ah,
        w_rel_d=w_rd, b_rel_d=b_rd, w_rel_h=w_rh, b_rel_h=b_rh,
        w_arc_attn=w_arc_attn, w_rel_attn=w_rel_attn,
    )


def _reference(x, params, mask=None):
    """Plain-JAX reference mirroring the PyTorch forward (PyTorch output layout)."""
    def mlp(w, b):
        h = x @ w + b
        return jnp.where(h > 0, h, 0.1 * h)

    arc_d = mlp(params["w_arc_d"], params["b_arc_d"])
    arc_h = mlp(params["w_arc_h"], params["b_arc_h"])
    rel_d = mlp(params["w_rel_d"], params["b_rel_d"])
    rel_h = mlp(params["w_rel_h"], params["b_rel_h"])

    ones = jnp.ones(arc_d.shape[:-1] + (1,), jnp.float32)
    arc_d_e = jnp.concatenate([arc_d, ones], -1)
    rel_d_e = jnp.concatenate([rel_d, ones], -1)
    rel_h_e = jnp.concatenate([rel_h, ones], -1)

    s_arc = jnp.einsum("bxi,ij,byj->bxy", arc_d_e, params["w_arc_attn"], arc_h)
    s_rel = jnp.einsum("bxi,oij,byj->boxy", rel_d_e, params["w_rel_attn"], rel_h_e)
    s_rel = jnp.transpose(s_rel, (0, 2, 3, 1))
    if mask is not None:
        s_arc = jnp.where(mask[:, None, :], s_arc, -jnp.inf)
    return s_arc, s_rel


if __name__ == "__main__":
    B, L = 2, 8
    hidden_size, n_mlp_arc, n_mlp_rel, n_rels = 32, 32, 16, 4

    key = jax.random.PRNGKey(0)
    kx, kp = jax.random.split(key, 2)
    x = jax.random.normal(kx, (B, L, hidden_size), jnp.float32)
    params = make_params(kp, hidden_size, n_mlp_arc, n_mlp_rel, n_rels)
    lengths = jnp.array([6, 8], jnp.int32)
    mask = jnp.arange(L)[None, :] < lengths[:, None]

    ref_arc, ref_rel = _reference(x, params, mask=mask)   # PyTorch layout [B,L,L,R]
    finite = jnp.isfinite(ref_arc)

    # 1) Default fast path: bf16 MXU dots + bf16 outputs, [B, n_rels, L, L] layout.
    s_arc_bf, s_rel_bf = biaffine_decoder_forward(x, params, mask=mask)
    jax.block_until_ready((s_arc_bf, s_rel_bf))
    assert s_arc_bf.shape == (B, L, L) and s_arc_bf.dtype == jnp.bfloat16
    assert s_rel_bf.shape == (B, n_rels, L, L) and s_rel_bf.dtype == jnp.bfloat16
    s_arc_bf32 = s_arc_bf.astype(jnp.float32)
    assert bool(jnp.all(jnp.isneginf(s_arc_bf32) == jnp.isneginf(ref_arc)))
    assert bool(jnp.allclose(jnp.where(finite, s_arc_bf32, 0.0),
                             jnp.where(finite, ref_arc, 0.0), atol=5e-2, rtol=5e-2))
    assert bool(jnp.allclose(
        jnp.transpose(s_rel_bf.astype(jnp.float32), (0, 2, 3, 1)), ref_rel,
        atol=5e-2, rtol=5e-2))

    # 2) Exact f32 path + exact PyTorch output layout.
    s_arc_f32, s_rel_pt = biaffine_decoder_forward(
        x, params, mask=mask, use_bf16=False, out_dtype=jnp.float32, rel_last=True)
    jax.block_until_ready((s_arc_f32, s_rel_pt))
    assert s_arc_f32.shape == (B, L, L) and s_rel_pt.shape == (B, L, L, n_rels)
    assert bool(jnp.all(jnp.isneginf(s_arc_f32) == jnp.isneginf(ref_arc)))
    assert bool(jnp.allclose(jnp.where(finite, s_arc_f32, 0.0),
                             jnp.where(finite, ref_arc, 0.0), atol=1e-4, rtol=1e-4))
    assert bool(jnp.allclose(s_rel_pt, ref_rel, atol=1e-4, rtol=1e-4))

    print("KERNEL_OK")
</pallas_src>

<mosaic_0001>
module attributes {stable_mosaic.version = 11 : i64} {
  func.func @_biaffine_kernel(%arg0: i32, %arg1: i32, %arg2: i32, %arg3: memref<1x128x32xf32, #tpu.memory_space<vmem>>, %arg4: memref<1x1x128xf32, #tpu.memory_space<vmem>>, %arg5: memref<32x128xf32, #tpu.memory_space<vmem>>, %arg6: memref<1x128xf32, #tpu.memory_space<vmem>>, %arg7: memref<32x128xf32, #tpu.memory_space<vmem>>, %arg8: memref<1x128xf32, #tpu.memory_space<vmem>>, %arg9: memref<1x128x128xbf16, #tpu.memory_space<vmem>>, %arg10: memref<1x128x128xbf16, #tpu.memory_space<vmem>>, %arg11: memref<128x128xbf16, #tpu.memory_space<vmem>>, %arg12: memref<4x128x128xbf16, #tpu.memory_space<vmem>>, %arg13: memref<1x128x128xbf16, #tpu.memory_space<vmem>>, %arg14: memref<1x4x128x128xbf16, #tpu.memory_space<vmem>>, %arg15: memref<128x128xbf16, #tpu.memory_space<vmem>>) attributes {dimension_semantics = [#tpu.dimension_semantics<parallel>, #tpu.dimension_semantics<parallel>, #tpu.dimension_semantics<arbitrary>], iteration_bounds = array<i64: 2, 1, 1>, scalar_prefetch = 0 : i64, scratch_operands = 1 : i64, tpu.core_type = #tpu.core_type<tc>, window_params = [{transform_indices = @transform_0, window_bounds = array<i64: 1, 128, 32>}, {transform_indices = @transform_1, window_bounds = array<i64: 1, 1, 128>}, {pipeline_mode = #tpu.pipeline_mode<synchronous>, transform_indices = @transform_2, window_bounds = array<i64: 32, 128>}, {pipeline_mode = #tpu.pipeline_mode<synchronous>, transform_indices = @transform_3, window_bounds = array<i64: 1, 128>}, {pipeline_mode = #tpu.pipeline_mode<synchronous>, transform_indices = @transform_4, window_bounds = array<i64: 32, 128>}, {pipeline_mode = #tpu.pipeline_mode<synchronous>, transform_indices = @transform_5, window_bounds = array<i64: 1, 128>}, {transform_indices = @transform_6, window_bounds = array<i64: 1, 128, 128>}, {transform_indices = @transform_7, window_bounds = array<i64: 1, 128, 128>}, {pipeline_mode = #tpu.pipeline_mode<synchronous>, transform_indices = @transform_8, window_bounds = array<i64: 128, 128>}, {pipeline_mode = #tpu.pipeline_mode<synchronous>, transform_indices = @transform_9, window_bounds = array<i64: 4, 128, 128>}, {transform_indices = @transform_10, window_bounds = array<i64: 1, 128, 128>}, {transform_indices = @transform_11, window_bounds = array<i64: 1, 4, 128, 128>}]} {
    %c0_i32 = arith.constant 0 : i32
    %0 = arith.cmpi eq, %arg2, %c0_i32 : i32
    %1 = arith.extui %0 : i1 to i32
    %c0_i32_0 = arith.constant 0 : i32
    %2 = arith.cmpi ne, %1, %c0_i32_0 : i32
    scf.if %2 {
      %c0_37 = arith.constant 0 : index
      %c0_38 = arith.constant 0 : index
      %c0_39 = arith.constant 0 : index
      %54 = vector.load %arg3[%c0_37, %c0_38, %c0_39] : memref<1x128x32xf32, #tpu.memory_space<vmem>>, vector<1x128x32xf32>
      %55 = vector.shape_cast %54 : vector<1x128x32xf32> to vector<128x32xf32>
      %c0_40 = arith.constant 0 : index
      %c0_41 = arith.constant 0 : index
      %56 = vector.load %arg7[%c0_40, %c0_41] : memref<32x128xf32, #tpu.memory_space<vmem>>, vector<32x128xf32>
      %cst_42 = arith.constant dense<0.000000e+00> : vector<128x128xf32>
      %57 = tpu.matmul %55, %56, %cst_42 {dimension_numbers = #tpu.dot_dimension_numbers<[1], [0], [0], [1], [0, 0, 1, 1], [], []>} : vector<128x32xf32>, vector<32x128xf32>, vector<128x128xf32> -> vector<128x128xf32>
      %c0_43 = arith.constant 0 : index
      %c0_44 = arith.constant 0 : index
      %58 = vector.load %arg8[%c0_43, %c0_44] : memref<1x128xf32, #tpu.memory_space<vmem>>, vector<1x128xf32>
      %59 = vector.broadcast %58 : vector<1x128xf32> to vector<128x128xf32>
      %60 = arith.addf %57, %59 : vector<128x128xf32>
      %cst_45 = arith.constant 0.000000e+00 : f32
      %61 = vector.broadcast %cst_45 : f32 to vector<128x128xf32>
      %62 = arith.cmpf ogt, %60, %61 : vector<128x128xf32>
      %cst_46 = arith.constant 1.000000e-01 : f32
      %63 = vector.broadcast %cst_46 : f32 to vector<128x128xf32>
      %64 = arith.mulf %63, %60 : vector<128x128xf32>
      %65 = arith.select %62, %60, %64 : vector<128x128xi1>, vector<128x128xf32>
      %66 = arith.truncf %65 : vector<128x128xf32> to vector<128x128xbf16>
      %c0_47 = arith.constant 0 : index
      %c0_48 = arith.constant 0 : index
      %67 = vector.load %arg15[%c0_47, %c0_48] : memref<128x128xbf16, #tpu.memory_space<vmem>>, vector<128x128xbf16>
      tpu.vector_store %arg15[%c0_47, %c0_48], %66 {strides = array<i32>} : memref<128x128xbf16, #tpu.memory_space<vmem>>, vector<128x128xbf16>,
      %c0_49 = arith.constant 0 : index
      %c0_50 = arith.constant 0 : index
      %68 = vector.load %arg5[%c0_49, %c0_50] : memref<32x128xf32, #tpu.memory_space<vmem>>, vector<32x128xf32>
      %cst_51 = arith.constant dense<0.000000e+00> : vector<128x128xf32>
      %69 = tpu.matmul %55, %68, %cst_51 {dimension_numbers = #tpu.dot_dimension_numbers<[1], [0], [0], [1], [0, 0, 1, 1], [], []>} : vector<128x32xf32>, vector<32x128xf32>, vector<128x128xf32> -> vector<128x128xf32>
      %c0_52 = arith.constant 0 : index
      %c0_53 = arith.constant 0 : index
      %70 = vector.load %arg6[%c0_52, %c0_53] : memref<1x128xf32, #tpu.memory_space<vmem>>, vector<1x128xf32>
      %71 = vector.broadcast %70 : vector<1x128xf32> to vector<128x128xf32>
      %72 = arith.addf %69, %71 : vector<128x128xf32>
      %cst_54 = arith.constant 0.000000e+00 : f32
      %73 = vector.broadcast %cst_54 : f32 to vector<128x128xf32>
      %74 = arith.cmpf ogt, %72, %73 : vector<128x128xf32>
      %cst_55 = arith.constant 1.000000e-01 : f32
      %75 = vector.broadcast %cst_55 : f32 to vector<128x128xf32>
      %76 = arith.mulf %75, %72 : vector<128x128xf32>
      %77 = arith.select %74, %72, %76 : vector<128x128xi1>, vector<128x128xf32>
      %78 = arith.truncf %77 : vector<128x128xf32> to vector<128x128xbf16>
      %c0_56 = arith.constant 0 : index
      %c0_57 = arith.constant 0 : index
      %79 = vector.load %arg11[%c0_56, %c0_57] : memref<128x128xbf16, #tpu.memory_space<vmem>>, vector<128x128xbf16>
      %cst_58 = arith.constant dense<0.000000e+00> : vector<128x128xf32>
      %80 = tpu.matmul %78, %79, %cst_58 {dimension_numbers = #tpu.dot_dimension_numbers<[1], [0], [0], [1], [0, 0, 1, 1], [], []>} : vector<128x128xbf16>, vector<128x128xbf16>, vector<128x128xf32> -> vector<128x128xf32>
      %81 = arith.truncf %80 : vector<128x128xf32> to vector<128x128xbf16>
      %c0_59 = arith.constant 0 : index
      %c0_60 = arith.constant 0 : index
      %c0_61 = arith.constant 0 : index
      %82 = vector.load %arg9[%c0_59, %c0_60, %c0_61] : memref<1x128x128xbf16, #tpu.memory_space<vmem>>, vector<1x128x128xbf16>
      %83 = vector.shape_cast %82 : vector<1x128x128xbf16> to vector<128x128xbf16>
      %cst_62 = arith.constant dense<0.000000e+00> : vector<128x128xf32>
      %84 = tpu.matmul %81, %83, %cst_62 {dimension_numbers = #tpu.dot_dimension_numbers<[1], [0], [0], [1], [0, 0, 1, 1], [], []>} : vector<128x128xbf16>, vector<128x128xbf16>, vector<128x128xf32> -> vector<128x128xf32>
      %c0_63 = arith.constant 0 : index
      %c0_64 = arith.constant 0 : index
      %c0_65 = arith.constant 0 : index
      %85 = vector.load %arg4[%c0_63, %c0_64, %c0_65] : memref<1x1x128xf32, #tpu.memory_space<vmem>>, vector<1x1x128xf32>
      %86 = vector.shape_cast %85 : vector<1x1x128xf32> to vector<1x128xf32>
      %cst_66 = arith.constant 0.000000e+00 : f32
      %87 = vector.broadcast %cst_66 : f32 to vector<1x128xf32>
      %88 = arith.cmpf ogt, %86, %87 : vector<1x128xf32>
      %cst_67 = arith.constant 0xFF800000 : f32
      %89 = vector.shape_cast %88 : vector<1x128xi1> to vector<1x128xi1>
      %90 = vector.broadcast %89 : vector<1x128xi1> to vector<128x128xi1>
      %91 = vector.broadcast %cst_67 : f32 to vector<128x128xf32>
      %92 = arith.select %90, %84, %91 : vector<128x128xi1>, vector<128x128xf32>
      %93 = arith.truncf %92 : vector<128x128xf32> to vector<128x128xbf16>
      %c0_68 = arith.constant 0 : index
      %c0_69 = arith.constant 0 : index
      %c0_70 = arith.constant 0 : index
      %94 = vector.load %arg13[%c0_68, %c0_69, %c0_70] : memref<1x128x128xbf16, #tpu.memory_space<vmem>>, vector<1x128x128xbf16>
      %95 = vector.shape_cast %94 : vector<1x128x128xbf16> to vector<128x128xbf16>
      %96 = vector.shape_cast %93 : vector<128x128xbf16> to vector<1x128x128xbf16>
      tpu.vector_store %arg13[%c0_68, %c0_69, %c0_70], %96 {strides = array<i32>} : memref<1x128x128xbf16, #tpu.memory_space<vmem>>, vector<1x128x128xbf16>,
    } else {
    }
    %c0 = arith.constant 0 : index
    %c0_1 = arith.constant 0 : index
    %3 = vector.load %arg15[%c0, %c0_1] : memref<128x128xbf16, #tpu.memory_space<vmem>>, vector<128x128xbf16>
    %c0_2 = arith.constant 0 : index
    %c0_3 = arith.constant 0 : index
    %c0_4 = arith.constant 0 : index
    %4 = vector.load %arg10[%c0_2, %c0_3, %c0_4] : memref<1x128x128xbf16, #tpu.memory_space<vmem>>, vector<1x128x128xbf16>
    %5 = vector.shape_cast %4 : vector<1x128x128xbf16> to vector<128x128xbf16>
    %c4_i32 = arith.constant 4 : i32
    %6 = arith.muli %arg2, %c4_i32 : i32
    %c0_i32_5 = arith.constant 0 : i32
    %7 = arith.addi %6, %c0_i32_5 : i32
    %8 = arith.index_cast %7 : i32 to index
    %c0_6 = arith.constant 0 : index
    %c0_7 = arith.constant 0 : index
    %9 = vector.load %arg12[%8, %c0_6, %c0_7] : memref<4x128x128xbf16, #tpu.memory_space<vmem>>, vector<1x128x128xbf16>
    %10 = vector.shape_cast %9 : vector<1x128x128xbf16> to vector<128x128xbf16>
    %cst = arith.constant dense<0.000000e+00> : vector<128x128xf32>
    %11 = tpu.matmul %3, %10, %cst {dimension_numbers = #tpu.dot_dimension_numbers<[1], [0], [0], [1], [0, 0, 1, 1], [], []>} : vector<128x128xbf16>, vector<128x128xbf16>, vector<128x128xf32> -> vector<128x128xf32>
    %12 = arith.truncf %11 : vector<128x128xf32> to vector<128x128xbf16>
    %cst_8 = arith.constant dense<0.000000e+00> : vector<128x128xf32>
    %13 = tpu.matmul %12, %5, %cst_8 {dimension_numbers = #tpu.dot_dimension_numbers<[1], [0], [0], [1], [0, 0, 1, 1], [], []>} : vector<128x128xbf16>, vector<128x128xbf16>, vector<128x128xf32> -> vector<128x128xf32>
    %14 = arith.truncf %13 : vector<128x128xf32> to vector<128x128xbf16>
    %c0_9 = arith.constant 0 : index
    %c0_10 = arith.constant 0 : index
    %c0_11 = arith.constant 0 : index
    %c0_12 = arith.constant 0 : index
    %15 = vector.load %arg14[%c0_9, %c0_10, %c0_11, %c0_12] : memref<1x4x128x128xbf16, #tpu.memory_space<vmem>>, vector<1x1x128x128xbf16>
    %16 = vector.shape_cast %15 : vector<1x1x128x128xbf16> to vector<128x128xbf16>
    %17 = vector.shape_cast %14 : vector<128x128xbf16> to vector<1x1x128x128xbf16>
    tpu.vector_store %arg14[%c0_9, %c0_10, %c0_11, %c0_12], %17 {strides = array<i32>} : memref<1x4x128x128xbf16, #tpu.memory_space<vmem>>, vector<1x1x128x128xbf16>,
    %c4_i32_13 = arith.constant 4 : i32
    %18 = arith.muli %arg2, %c4_i32_13 : i32
    %c1_i32 = arith.constant 1 : i32
    %19 = arith.addi %18, %c1_i32 : i32
    %20 = arith.index_cast %19 : i32 to index
    %c0_14 = arith.constant 0 : index
    %c0_15 = arith.constant 0 : index
    %21 = vector.load %arg12[%20, %c0_14, %c0_15] : memref<4x128x128xbf16, #tpu.memory_space<vmem>>, vector<1x128x128xbf16>
    %22 = vector.shape_cast %21 : vector<1x128x128xbf16> to vector<128x128xbf16>
    %cst_16 = arith.constant dense<0.000000e+00> : vector<128x128xf32>
    %23 = tpu.matmul %3, %22, %cst_16 {dimension_numbers = #tpu.dot_dimension_numbers<[1], [0], [0], [1], [0, 0, 1, 1], [], []>} : vector<128x128xbf16>, vector<128x128xbf16>, vector<128x128xf32> -> vector<128x128xf32>
    %24 = arith.truncf %23 : vector<128x128xf32> to vector<128x128xbf16>
    %cst_17 = arith.constant dense<0.000000e+00> : vector<128x128xf32>
    %25 = tpu.matmul %24, %5, %cst_17 {dimension_numbers = #tpu.dot_dimension_numbers<[1], [0], [0], [1], [0, 0, 1, 1], [], []>} : vector<128x128xbf16>, vector<128x128xbf16>, vector<128x128xf32> -> vector<128x128xf32>
    %26 = arith.truncf %25 : vector<128x128xf32> to vector<128x128xbf16>
    %c0_18 = arith.constant 0 : index
    %c1 = arith.constant 1 : index
    %c0_19 = arith.constant 0 : index
    %c0_20 = arith.constant 0 : index
    %27 = vector.load %arg14[%c0_18, %c1, %c0_19, %c0_20] : memref<1x4x128x128xbf16, #tpu.memory_space<vmem>>, vector<1x1x128x128xbf16>
    %28 = vector.shape_cast %27 : vector<1x1x128x128xbf16> to vector<128x128xbf16>
    %29 = vector.shape_cast %26 : vector<128x128xbf16> to vector<1x1x128x128xbf16>
    tpu.vector_store %arg14[%c0_18, %c1, %c0_19, %c0_20], %29 {strides = array<i32>} : memref<1x4x128x128xbf16, #tpu.memory_space<vmem>>, vector<1x1x128x128xbf16>,
    %c4_i32_21 = arith.constant 4 : i32
    %30 = arith.muli %arg2, %c4_i32_21 : i32
    %c2_i32 = arith.constant 2 : i32
    %31 = arith.addi %30, %c2_i32 : i32
    %32 = arith.index_cast %31 : i32 to index
    %c0_22 = arith.constant 0 : index
    %c0_23 = arith.constant 0 : index
    %33 = vector.load %arg12[%32, %c0_22, %c0_23] : memref<4x128x128xbf16, #tpu.memory_space<vmem>>, vector<1x128x128xbf16>
    %34 = vector.shape_cast %33 : vector<1x128x128xbf16> to vector<128x128xbf16>
    %cst_24 = arith.constant dense<0.000000e+00> : vector<128x128xf32>
    %35 = tpu.matmul %3, %34, %cst_24 {dimension_numbers = #tpu.dot_dimension_numbers<[1], [0], [0], [1], [0, 0, 1, 1], [], []>} : vector<128x128xbf16>, vector<128x128xbf16>, vector<128x128xf32> -> vector<128x128xf32>
    %36 = arith.truncf %35 : vector<128x128xf32> to vector<128x128xbf16>
    %cst_25 = arith.constant dense<0.000000e+00> : vector<128x128xf32>
    %37 = tpu.matmul %36, %5, %cst_25 {dimension_numbers = #tpu.dot_dimension_numbers<[1], [0], [0], [1], [0, 0, 1, 1], [], []>} : vector<128x128xbf16>, vector<128x128xbf16>, vector<128x128xf32> -> vector<128x128xf32>
    %38 = arith.truncf %37 : vector<128x128xf32> to vector<128x128xbf16>
    %c0_26 = arith.constant 0 : index
    %c2 = arith.constant 2 : index
    %c0_27 = arith.constant 0 : index
    %c0_28 = arith.constant 0 : index
    %39 = vector.load %arg14[%c0_26, %c2, %c0_27, %c0_28] : memref<1x4x128x128xbf16, #tpu.memory_space<vmem>>, vector<1x1x128x128xbf16>
    %40 = vector.shape_cast %39 : vector<1x1x128x128xbf16> to vector<128x128xbf16>
    %41 = vector.shape_cast %38 : vector<128x128xbf16> to vector<1x1x128x128xbf16>
    tpu.vector_store %arg14[%c0_26, %c2, %c0_27, %c0_28], %41 {strides = array<i32>} : memref<1x4x128x128xbf16, #tpu.memory_space<vmem>>, vector<1x1x128x128xbf16>,
    %c4_i32_29 = arith.constant 4 : i32
    %42 = arith.muli %arg2, %c4_i32_29 : i32
    %c3_i32 = arith.constant 3 : i32
    %43 = arith.addi %42, %c3_i32 : i32
    %44 = arith.index_cast %43 : i32 to index
    %c0_30 = arith.constant 0 : index
    %c0_31 = arith.constant 0 : index
    %45 = vector.load %arg12[%44, %c0_30, %c0_31] : memref<4x128x128xbf16, #tpu.memory_space<vmem>>, vector<1x128x128xbf16>
    %46 = vector.shape_cast %45 : vector<1x128x128xbf16> to vector<128x128xbf16>
    %cst_32 = arith.constant dense<0.000000e+00> : vector<128x128xf32>
    %47 = tpu.matmul %3, %46, %cst_32 {dimension_numbers = #tpu.dot_dimension_numbers<[1], [0], [0], [1], [0, 0, 1, 1], [], []>} : vector<128x128xbf16>, vector<128x128xbf16>, vector<128x128xf32> -> vector<128x128xf32>
    %48 = arith.truncf %47 : vector<128x128xf32> to vector<128x128xbf16>
    %cst_33 = arith.constant dense<0.000000e+00> : vector<128x128xf32>
    %49 = tpu.matmul %48, %5, %cst_33 {dimension_numbers = #tpu.dot_dimension_numbers<[1], [0], [0], [1], [0, 0, 1, 1], [], []>} : vector<128x128xbf16>, vector<128x128xbf16>, vector<128x128xf32> -> vector<128x128xf32>
    %50 = arith.truncf %49 : vector<128x128xf32> to vector<128x128xbf16>
    %c0_34 = arith.constant 0 : index
    %c3 = arith.constant 3 : index
    %c0_35 = arith.constant 0 : index
    %c0_36 = arith.constant 0 : index
    %51 = vector.load %arg14[%c0_34, %c3, %c0_35, %c0_36] : memref<1x4x128x128xbf16, #tpu.memory_space<vmem>>, vector<1x1x128x128xbf16>
    %52 = vector.shape_cast %51 : vector<1x1x128x128xbf16> to vector<128x128xbf16>
    %53 = vector.shape_cast %50 : vector<128x128xbf16> to vector<1x1x128x128xbf16>
    tpu.vector_store %arg14[%c0_34, %c3, %c0_35, %c0_36], %53 {strides = array<i32>} : memref<1x4x128x128xbf16, #tpu.memory_space<vmem>>, vector<1x1x128x128xbf16>,
    return
  }
  func.func @transform_0(%arg0: i32, %arg1: i32, %arg2: i32) -> (i32, i32, i32) {
    %c0_i32 = arith.constant 0 : i32
    %c0_i32_0 = arith.constant 0 : i32
    return %arg0, %arg1, %c0_i32 : i32, i32, i32
  }
  func.func @transform_1(%arg0: i32, %arg1: i32, %arg2: i32) -> (i32, i32, i32) {
    %c0_i32 = arith.constant 0 : i32
    %c0_i32_0 = arith.constant 0 : i32
    %c0_i32_1 = arith.constant 0 : i32
    return %arg0, %c0_i32, %c0_i32_0 : i32, i32, i32
  }
  func.func @transform_2(%arg0: i32, %arg1: i32, %arg2: i32) -> (i32, i32) {
    %c0_i32 = arith.constant 0 : i32
    %c0_i32_0 = arith.constant 0 : i32
    %c0_i32_1 = arith.constant 0 : i32
    return %c0_i32, %c0_i32_0 : i32, i32
  }
  func.func @transform_3(%arg0: i32, %arg1: i32, %arg2: i32) -> (i32, i32) {
    %c0_i32 = arith.constant 0 : i32
    %c0_i32_0 = arith.constant 0 : i32
    %c0_i32_1 = arith.constant 0 : i32
    return %c0_i32, %c0_i32_0 : i32, i32
  }
  func.func @transform_4(%arg0: i32, %arg1: i32, %arg2: i32) -> (i32, i32) {
    %c0_i32 = arith.constant 0 : i32
    %c0_i32_0 = arith.constant 0 : i32
    %c0_i32_1 = arith.constant 0 : i32
    return %c0_i32, %c0_i32_0 : i32, i32
  }
  func.func @transform_5(%arg0: i32, %arg1: i32, %arg2: i32) -> (i32, i32) {
    %c0_i32 = arith.constant 0 : i32
    %c0_i32_0 = arith.constant 0 : i32
    %c0_i32_1 = arith.constant 0 : i32
    return %c0_i32, %c0_i32_0 : i32, i32
  }
  func.func @transform_6(%arg0: i32, %arg1: i32, %arg2: i32) -> (i32, i32, i32) {
    %c0_i32 = arith.constant 0 : i32
    %c0_i32_0 = arith.constant 0 : i32
    %c0_i32_1 = arith.constant 0 : i32
    return %arg0, %c0_i32, %c0_i32_0 : i32, i32, i32
  }
  func.func @transform_7(%arg0: i32, %arg1: i32, %arg2: i32) -> (i32, i32, i32) {
    %c0_i32 = arith.constant 0 : i32
    %c0_i32_0 = arith.constant 0 : i32
    %c0_i32_1 = arith.constant 0 : i32
    return %arg0, %c0_i32, %c0_i32_0 : i32, i32, i32
  }
  func.func @transform_8(%arg0: i32, %arg1: i32, %arg2: i32) -> (i32, i32) {
    %c0_i32 = arith.constant 0 : i32
    %c0_i32_0 = arith.constant 0 : i32
    %c0_i32_1 = arith.constant 0 : i32
    return %c0_i32, %c0_i32_0 : i32, i32
  }
  func.func @transform_9(%arg0: i32, %arg1: i32, %arg2: i32) -> (i32, i32, i32) {
    %c0_i32 = arith.constant 0 : i32
    %c0_i32_0 = arith.constant 0 : i32
    %c0_i32_1 = arith.constant 0 : i32
    %c0_i32_2 = arith.constant 0 : i32
    return %c0_i32, %c0_i32_0, %c0_i32_1 : i32, i32, i32
  }
  func.func @transform_10(%arg0: i32, %arg1: i32, %arg2: i32) -> (i32, i32, i32) {
    %c0_i32 = arith.constant 0 : i32
    %c0_i32_0 = arith.constant 0 : i32
    return %arg0, %arg1, %c0_i32 : i32, i32, i32
  }
  func.func @transform_11(%arg0: i32, %arg1: i32, %arg2: i32) -> (i32, i32, i32, i32) {
    %c0_i32 = arith.constant 0 : i32
    %c0_i32_0 = arith.constant 0 : i32
    return %arg0, %arg2, %arg1, %c0_i32 : i32, i32, i32, i32
  }
}

</mosaic_0001>

<llo_original>
// kernel: tpu_custom_call.1
$region0: #{tpu_custom_call.1}
  #allocation0 [shape = 'u32[]', space=smem, size = 0x4, offset = 0x4, fixed_abs, tag = 'smem constant byte address 0x4 - core index']
  #allocation1 [shape = 'u32[144,128]{1,0:T(1,128)}', space=vmem, size = 0x12000, scoped, tag = 'internal scratch']
  #allocation2 [shape = 'bf16[128,128]{1,0:T(16,128)(2,1)}', space=vmem, size = 0x8000, scoped, tag = 'scratch operand']
  %s0 = inlined_call_operand.vmem [shape: f32[2,128,32], index: 0, kind: input, shape index: {}]
  %s1 = inlined_call_operand.vmem [shape: f32[2,1,128], index: 1, kind: input, shape index: {}]
  %s2 = inlined_call_operand.vmem [shape: f32[32,128], index: 2, kind: input, shape index: {}]
  %s3 = inlined_call_operand.hbm [shape: f32[1,128], index: 3, kind: input, shape index: {}]
  %s4 = inlined_call_operand.hbm [shape: f32[32,128], index: 4, kind: input, shape index: {}]
  %s5 = inlined_call_operand.hbm [shape: f32[1,128], index: 5, kind: input, shape index: {}]
  %s6 = inlined_call_operand.hbm [shape: bf16[2,128,128], index: 6, kind: input, shape index: {}]
  %s7 = inlined_call_operand.hbm [shape: bf16[2,128,128], index: 7, kind: input, shape index: {}]
  %s8 = inlined_call_operand.vmem [shape: bf16[128,128], index: 8, kind: input, shape index: {}]
  %s9 = inlined_call_operand.vmem [shape: bf16[4,128,128], index: 9, kind: input, shape index: {}]
  %s10 = inlined_call_operand.hbm [shape: bf16[2,128,128], index: 10, kind: output, shape index: {0}]
  %s11 = inlined_call_operand.hbm [shape: bf16[2,4,128,128], index: 11, kind: output, shape index: {1}]
  %12 = xla_tuple %s10, %s11
  %s13 = sld [smem:[#allocation0]]
  $region105: #{tpu_custom_call.1} parent=0
    _
  %s15 = ssub.s32 1, %s13
  %s16 = scalar_select 0, %s15, %s13
  $region1: #{tpu_custom_call.1} parent=0
    #allocation3 [shape = 'u8[512]{0}', space=vmem, size = 0x400, scoped, tag = 'input window, operand 3, single buffered']
    #allocation4 [shape = 's32[2]{0}', space=sflag, size = 0x8, scoped, tag = 'scoped memory for tpu_custom_call.1']
    #allocation5 [shape = 's32[2]{0}', space=sflag, size = 0x8, scoped, tag = 'scoped memory for tpu_custom_call.1']
    #allocation6 [shape = 'u8[16384]{0}', space=vmem, size = 0x4000, scoped, tag = 'input window, operand 4, single buffered']
    #allocation7 [shape = 's32[1]{0}', space=sflag, size = 0x4, scoped, tag = 'scoped memory for tpu_custom_call.1']
    #allocation8 [shape = 'u8[512]{0}', space=vmem, size = 0x400, scoped, tag = 'input window, operand 5, single buffered']
    #allocation9 [shape = 'u8[65536]{0}', space=vmem, size = 0x10000, scoped, tag = 'input window, operand 6']
    #allocation10 [shape = 's32[2]{0}', space=sflag, size = 0x8, scoped, tag = 'scoped memory for tpu_custom_call.1']
    #allocation11 [shape = 'u8[65536]{0}', space=vmem, size = 0x10000, scoped, tag = 'input window, operand 7']
    #allocation12 [shape = 'u8[65536]{0}', space=vmem, size = 0x10000, scoped, tag = 'output window, operand 0']
    #allocation13 [shape = 'u8[262144]{0}', space=vmem, size = 0x40000, scoped, tag = 'output window, operand 1']
    #allocation14 [shape = 's32[2]{0}', space=sflag, size = 0x8, scoped, tag = 'scoped memory for tpu_custom_call.1']
    %17 = vsyncpa [#allocation4], 0
    %18 = vsyncpa [#allocation7], 0
    %19 = vsyncpa [#allocation10], 0
    %s20 = scalar_lea.sflag [#allocation10], 1
    %21 = vsyncpa %s20, 0
    %22 = vsyncpa [#allocation5], 0
    %s23 = scalar_lea.sflag [#allocation5], 1
    %24 = vsyncpa %s23, 0
    %25 = vsyncpa [#allocation14], 0
    %s26 = scalar_lea.sflag [#allocation14], 1
    %27 = vsyncpa %s26, 0
    loop: start=0, step=1, limit=4
    $region2: #{tpu_custom_call.1} parent=1 // loop_pre_header
      _
    $region3: #{tpu_custom_call.1} parent=1 // loop_header
      %s29 = sphi 0, %s33
      %p30 = scmp.ge.s32.totalorder %s29, 4
      %s36 = sphi 0, %s55
      %s37 = sphi 0, %s51
      %s38 = sphi 0, %s47
      %s39 = sphi 0, %s36
      %s40 = sphi 0, %s37
      %s41 = sphi 0, %s38
      %s42 = sphi 0, %s39
      %s43 = sphi 0, %s40
      %s44 = sphi 0, %s41
      %s60 = sphi 0, %s62
      %s63 = sphi 0, %s60
      %s64 = sphi 0, %s63
      %s80 = sphi 0, %s64
      %s86 = sphi 0, %s88
      %s89 = sphi 0, %s86
      %s90 = sphi 0, %s89
      %s106 = sphi 0, %s90
      %s110 = sphi 0, %s110
      %s112 = sphi 0, %s110
      %s113 = sphi 0, %s112
      %s127 = sphi 0, %s113
      %s131 = sphi 0, %s131
      %s133 = sphi 0, %s131
      %s134 = sphi 0, %s133
      %s148 = sphi 0, %s134
      %s152 = sphi 0, %s152
      %s154 = sphi 0, %s152
      %s155 = sphi 0, %s154
      %s169 = sphi 0, %s155
      %s173 = sphi 0, %s173
      %s175 = sphi 0, %s173
      %s176 = sphi 0, %s175
      %s190 = sphi 0, %s176
      %s196 = sphi 0, %s198
      %s199 = sphi 0, %s196
      %s200 = sphi 0, %s199
      %s216 = sphi 0, %s200
      %s222 = sphi 0, %s224
      %s225 = sphi 0, %s222
      %s226 = sphi 0, %s225
      %s242 = sphi 0, %s226
      %s246 = sphi 0, %s246
      %s248 = sphi 0, %s246
      %s249 = sphi 0, %s248
      %s263 = sphi 0, %s249
      %s267 = sphi 0, %s267
      %s269 = sphi 0, %s267
      %s270 = sphi 0, %s269
      %s284 = sphi 0, %s270
      %s292 = sphi 0, %s294
      %s295 = sphi 0, %s292
      %s296 = sphi 0, %s295
      %s312 = sphi 0, %s296
      %s322 = sphi 0, %s324
      %s325 = sphi 0, %s322
      %s326 = sphi 0, %s325
      %s342 = sphi 0, %s326
    $region4: #{tpu_custom_call.1} parent=1 // loop_header_branch
      %32 = sbr.rel (%p30) target = $region8
    $region5: #{tpu_custom_call.1} parent=1 // loop_body
      %s34 = ssub.s32 %s29, 1
      %s35 = ssub.s32 %s29, 2
      %s45 = sadd.s32 1, %s38
      %p46 = scmp.ge.s32.totalorder %s45, 1
      %s47 = scalar_select %p46, 0, %s45
      %s48 = sadd.s32 1, %s37
      %s49 = scalar_select %p46, %s48, %s37
      %p50 = scmp.ge.s32.totalorder %s49, 1
      %s51 = scalar_select %p50, 0, %s49
      %s52 = sadd.s32 1, %s36
      %s53 = scalar_select %p50, %s52, %s36
      %p54 = scmp.ge.s32.totalorder %s53, 2
      %s55 = scalar_select %p54, 0, %s53
      %s56 = ssub.s32 %s36, %s55
      %s57 = ssub.s32 %s37, %s51
      %s58 = sor.u32 %s56, %s57
      %p59 = scmp.eq.s32.totalorder %s58, 0
      %s61 = sadd.s32 %s60, 1
      %s62 = scalar_select %p59, %s60, %s61
      %p65 = pneg %p59
      %p66 = scmp.eq.s32.totalorder %s29, 1
      %p67 = por %p65, %p66
      %p68 = scmp.ne.s32.totalorder %s60, %s63
      %p69 = scmp.eq.s32.totalorder %s29, 0
      %p70 = por %p68, %p69
      %p71 = scmp.ne.s32.totalorder %s60, %s63
      %p72 = scmp.eq.s32.totalorder %s34, 1
      %p73 = por %p71, %p72
      %p74 = scmp.ne.s32.totalorder %s63, %s64
      %p75 = scmp.eq.s32.totalorder %s34, 0
      %p76 = por %p74, %p75
      %p77 = scmp.ne.s32.totalorder %s63, %s64
      %p78 = scmp.eq.s32.totalorder %s35, 1
      %p79 = por %p77, %p78
      %p81 = scmp.ne.s32.totalorder %s64, %s80
      %p82 = scmp.eq.s32.totalorder %s35, 0
      %p83 = por %p81, %p82
      %s84 = ssub.s32 %s36, %s55
      %p85 = scmp.eq.s32.totalorder %s84, 0
      %s87 = sadd.s32 %s86, 1
      %s88 = scalar_select %p85, %s86, %s87
      %p91 = pneg %p85
      %p92 = scmp.eq.s32.totalorder %s29, 1
      %p93 = por %p91, %p92
      %p94 = scmp.ne.s32.totalorder %s86, %s89
      %p95 = scmp.eq.s32.totalorder %s29, 0
      %p96 = por %p94, %p95
      %p97 = scmp.ne.s32.totalorder %s86, %s89
      %p98 = scmp.eq.s32.totalorder %s34, 1
      %p99 = por %p97, %p98
      %p100 = scmp.ne.s32.totalorder %s89, %s90
      %p101 = scmp.eq.s32.totalorder %s34, 0
      %p102 = por %p100, %p101
      %p103 = scmp.ne.s32.totalorder %s89, %s90
      %p104 = scmp.eq.s32.totalorder %s35, 1
      %p105 = por %p103, %p104
      %p107 = scmp.ne.s32.totalorder %s90, %s106
      %p108 = scmp.eq.s32.totalorder %s35, 0
      %p109 = por %p107, %p108
      %s111 = sadd.s32 %s110, 1
      %p114 = scmp.eq.s32.totalorder %s29, 1
      %p115 = scmp.ne.s32.totalorder %s110, %s112
      %p116 = scmp.eq.s32.totalorder %s29, 0
      %p117 = por %p115, %p116
      %p118 = scmp.ne.s32.totalorder %s110, %s112
      %p119 = scmp.eq.s32.totalorder %s34, 1
      %p120 = por %p118, %p119
      %p121 = scmp.ne.s32.totalorder %s112, %s113
      %p122 = scmp.eq.s32.totalorder %s34, 0
      %p123 = por %p121, %p122
      %p124 = scmp.ne.s32.totalorder %s112, %s113
      %p125 = scmp.eq.s32.totalorder %s35, 1
      %p126 = por %p124, %p125
      %p128 = scmp.ne.s32.totalorder %s113, %s127
      %p129 = scmp.eq.s32.totalorder %s35, 0
      %p130 = por %p128, %p129
      %s132 = sadd.s32 %s131, 1
      %p135 = scmp.eq.s32.totalorder %s29, 1
      %p136 = scmp.ne.s32.totalorder %s131, %s133
      %p137 = scmp.eq.s32.totalorder %s29, 0
      %p138 = por %p136, %p137
      %p139 = scmp.ne.s32.totalorder %s131, %s133
      %p140 = scmp.eq.s32.totalorder %s34, 1
      %p141 = por %p139, %p140
      %p142 = scmp.ne.s32.totalorder %s133, %s134
      %p143 = scmp.eq.s32.totalorder %s34, 0
      %p144 = por %p142, %p143
      %p145 = scmp.ne.s32.totalorder %s133, %s134
      %p146 = scmp.eq.s32.totalorder %s35, 1
      %p147 = por %p145, %p146
      %p149 = scmp.ne.s32.totalorder %s134, %s148
      %p150 = scmp.eq.s32.totalorder %s35, 0
      %p151 = por %p149, %p150
      %s153 = sadd.s32 %s152, 1
      %p156 = scmp.eq.s32.totalorder %s29, 1
      %p157 = scmp.ne.s32.totalorder %s152, %s154
      %p158 = scmp.eq.s32.totalorder %s29, 0
      %p159 = por %p157, %p158
      %p160 = scmp.ne.s32.totalorder %s152, %s154
      %p161 = scmp.eq.s32.totalorder %s34, 1
      %p162 = por %p160, %p161
      %p163 = scmp.ne.s32.totalorder %s154, %s155
      %p164 = scmp.eq.s32.totalorder %s34, 0
      %p165 = por %p163, %p164
      %p166 = scmp.ne.s32.totalorder %s154, %s155
      %p167 = scmp.eq.s32.totalorder %s35, 1
      %p168 = por %p166, %p167
      %p170 = scmp.ne.s32.totalorder %s155, %s169
      %p171 = scmp.eq.s32.totalorder %s35, 0
      %p172 = por %p170, %p171
      %s174 = sadd.s32 %s173, 1
      %p177 = scmp.eq.s32.totalorder %s29, 1
      %p178 = scmp.ne.s32.totalorder %s173, %s175
      %p179 = scmp.eq.s32.totalorder %s29, 0
      %p180 = por %p178, %p179
      %p181 = scmp.ne.s32.totalorder %s173, %s175
      %p182 = scmp.eq.s32.totalorder %s34, 1
      %p183 = por %p181, %p182
      %p184 = scmp.ne.s32.totalorder %s175, %s176
      %p185 = scmp.eq.s32.totalorder %s34, 0
      %p186 = por %p184, %p185
      %p187 = scmp.ne.s32.totalorder %s175, %s176
      %p188 = scmp.eq.s32.totalorder %s35, 1
      %p189 = por %p187, %p188
      %p191 = scmp.ne.s32.totalorder %s176, %s190
      %p192 = scmp.eq.s32.totalorder %s35, 0
      %p193 = por %p191, %p192
      %s194 = ssub.s32 %s36, %s55
      %p195 = scmp.eq.s32.totalorder %s194, 0
      %s197 = sadd.s32 %s196, 1
      %s198 = scalar_select %p195, %s196, %s197
      %p201 = pneg %p195
      %p202 = scmp.eq.s32.totalorder %s29, 1
      %p203 = por %p201, %p202
      %p204 = scmp.ne.s32.totalorder %s196, %s199
      %p205 = scmp.eq.s32.totalorder %s29, 0
      %p206 = por %p204, %p205
      %p207 = scmp.ne.s32.totalorder %s196, %s199
      %p208 = scmp.eq.s32.totalorder %s34, 1
      %p209 = por %p207, %p208
      %p210 = scmp.ne.s32.totalorder %s199, %s200
      %p211 = scmp.eq.s32.totalorder %s34, 0
      %p212 = por %p210, %p211
      %p213 = scmp.ne.s32.totalorder %s199, %s200
      %p214 = scmp.eq.s32.totalorder %s35, 1
      %p215 = por %p213, %p214
      %p217 = scmp.ne.s32.totalorder %s200, %s216
      %p218 = scmp.eq.s32.totalorder %s35, 0
      %p219 = por %p217, %p218
      %s220 = ssub.s32 %s36, %s55
      %p221 = scmp.eq.s32.totalorder %s220, 0
      %s223 = sadd.s32 %s222, 1
      %s224 = scalar_select %p221, %s222, %s223
      %p227 = pneg %p221
      %p228 = scmp.eq.s32.totalorder %s29, 1
      %p229 = por %p227, %p228
      %p230 = scmp.ne.s32.totalorder %s222, %s225
      %p231 = scmp.eq.s32.totalorder %s29, 0
      %p232 = por %p230, %p231
      %p233 = scmp.ne.s32.totalorder %s222, %s225
      %p234 = scmp.eq.s32.totalorder %s34, 1
      %p235 = por %p233, %p234
      %p236 = scmp.ne.s32.totalorder %s225, %s226
      %p237 = scmp.eq.s32.totalorder %s34, 0
      %p238 = por %p236, %p237
      %p239 = scmp.ne.s32.totalorder %s225, %s226
      %p240 = scmp.eq.s32.totalorder %s35, 1
      %p241 = por %p239, %p240
      %p243 = scmp.ne.s32.totalorder %s226, %s242
      %p244 = scmp.eq.s32.totalorder %s35, 0
      %p245 = por %p243, %p244
      %s247 = sadd.s32 %s246, 1
      %p250 = scmp.eq.s32.totalorder %s29, 1
      %p251 = scmp.ne.s32.totalorder %s246, %s248
      %p252 = scmp.eq.s32.totalorder %s29, 0
      %p253 = por %p251, %p252
      %p254 = scmp.ne.s32.totalorder %s246, %s248
      %p255 = scmp.eq.s32.totalorder %s34, 1
      %p256 = por %p254, %p255
      %p257 = scmp.ne.s32.totalorder %s248, %s249
      %p258 = scmp.eq.s32.totalorder %s34, 0
      %p259 = por %p257, %p258
      %p260 = scmp.ne.s32.totalorder %s248, %s249
      %p261 = scmp.eq.s32.totalorder %s35, 1
      %p262 = por %p260, %p261
      %p264 = scmp.ne.s32.totalorder %s249, %s263
      %p265 = scmp.eq.s32.totalorder %s35, 0
      %p266 = por %p264, %p265
      %s268 = sadd.s32 %s267, 1
      %p271 = scmp.eq.s32.totalorder %s29, 1
      %p272 = scmp.ne.s32.totalorder %s267, %s269
      %p273 = scmp.eq.s32.totalorder %s29, 0
      %p274 = por %p272, %p273
      %p275 = scmp.ne.s32.totalorder %s267, %s269
      %p276 = scmp.eq.s32.totalorder %s34, 1
      %p277 = por %p275, %p276
      %p278 = scmp.ne.s32.totalorder %s269, %s270
      %p279 = scmp.eq.s32.totalorder %s34, 0
      %p280 = por %p278, %p279
      %p281 = scmp.ne.s32.totalorder %s269, %s270
      %p282 = scmp.eq.s32.totalorder %s35, 1
      %p283 = por %p281, %p282
      %p285 = scmp.ne.s32.totalorder %s270, %s284
      %p286 = scmp.eq.s32.totalorder %s35, 0
      %p287 = por %p285, %p286
      %s288 = ssub.s32 %s36, %s55
      %s289 = ssub.s32 %s37, %s51
      %s290 = sor.u32 %s288, %s289
      %p291 = scmp.eq.s32.totalorder %s290, 0
      %s293 = sadd.s32 %s292, 1
      %s294 = scalar_select %p291, %s292, %s293
      %p297 = pneg %p291
      %p298 = scmp.eq.s32.totalorder %s29, 1
      %p299 = por %p297, %p298
      %p300 = scmp.ne.s32.totalorder %s292, %s295
      %p301 = scmp.eq.s32.totalorder %s29, 0
      %p302 = por %p300, %p301
      %p303 = scmp.ne.s32.totalorder %s292, %s295
      %p304 = scmp.eq.s32.totalorder %s34, 1
      %p305 = por %p303, %p304
      %p306 = scmp.ne.s32.totalorder %s295, %s296
      %p307 = scmp.eq.s32.totalorder %s34, 0
      %p308 = por %p306, %p307
      %p309 = scmp.ne.s32.totalorder %s295, %s296
      %p310 = scmp.eq.s32.totalorder %s35, 1
      %p311 = por %p309, %p310
      %p313 = scmp.ne.s32.totalorder %s296, %s312
      %p314 = scmp.eq.s32.totalorder %s35, 0
      %p315 = por %p313, %p314
      %s316 = ssub.s32 %s36, %s55
      %s317 = ssub.s32 %s38, %s47
      %s318 = sor.u32 %s316, %s317
      %s319 = ssub.s32 %s37, %s51
      %s320 = sor.u32 %s318, %s319
      %p321 = scmp.eq.s32.totalorder %s320, 0
      %s323 = sadd.s32 %s322, 1
      %s324 = scalar_select %p321, %s322, %s323
      %p327 = pneg %p321
      %p328 = scmp.eq.s32.totalorder %s29, 1
      %p329 = por %p327, %p328
      %p330 = scmp.ne.s32.totalorder %s322, %s325
      %p331 = scmp.eq.s32.totalorder %s29, 0
      %p332 = por %p330, %p331
      %p333 = scmp.ne.s32.totalorder %s322, %s325
      %p334 = scmp.eq.s32.totalorder %s34, 1
      %p335 = por %p333, %p334
      %p336 = scmp.ne.s32.totalorder %s325, %s326
      %p337 = scmp.eq.s32.totalorder %s34, 0
      %p338 = por %p336, %p337
      %p339 = scmp.ne.s32.totalorder %s325, %s326
      %p340 = scmp.eq.s32.totalorder %s35, 1
      %p341 = por %p339, %p340
      %p343 = scmp.ne.s32.totalorder %s326, %s342
      %p344 = scmp.eq.s32.totalorder %s35, 0
      %p345 = por %p343, %p344
      %p346 = scmp.le.s32.totalorder 1, %s29
      %p347 = scmp.lt.s32.totalorder %s29, 3
      %p348 = pnand %p346, %p347
      %p349 = pneg %p348
      // Predicated region
      $region9: #{tpu_custom_call.1} parent=5 // pred_check
        _
      $region10: #{tpu_custom_call.1} parent=5 // pred_check_branch
        %351 = sbr.rel (%p348) target = $region12
      $region11: #{tpu_custom_call.1} parent=5 // pred_region
        %s352 = ssub.s32 %s29, 1
        // Predicated region
        $region13: #{tpu_custom_call.1} parent=11 // pred_check
          %p353 = pneg %p123
        $region14: #{tpu_custom_call.1} parent=11 // pred_check_branch
          %355 = sbr.rel (%p353) target = $region16
        $region15: #{tpu_custom_call.1} parent=11 // pred_region
          _
        $region16: #{tpu_custom_call.1} parent=11 // pred_fallthru
          _
        // Predicated region
        $region17: #{tpu_custom_call.1} parent=11 // pred_check
          %p356 = pneg %p144
        $region18: #{tpu_custom_call.1} parent=11 // pred_check_branch
          %358 = sbr.rel (%p356) target = $region20
        $region19: #{tpu_custom_call.1} parent=11 // pred_region
          %s360 = ssub.s32 16, 16
          %361 = vsyncadd [#allocation4], %s360
          %s363 = sshll.u32 [#allocation3], 4
          %s364 = int_to_ptr.vmem [resolvable:$true] %s363
          %366 = dma.hbm_to_vmem [thread:$0]  %s3, 16, %s364, [#allocation4]
        $region20: #{tpu_custom_call.1} parent=11 // pred_fallthru
          _
        // Predicated region
        $region21: #{tpu_custom_call.1} parent=11 // pred_check
          %p367 = pneg %p165
        $region22: #{tpu_custom_call.1} parent=11 // pred_check_branch
          %369 = sbr.rel (%p367) target = $region24
        $region23: #{tpu_custom_call.1} parent=11 // pred_region
          %s371 = ssub.s32 512, 512
          %372 = vsyncadd [#allocation7], %s371
          %s373 = sshll.u32 [#allocation6], 4
          %s374 = int_to_ptr.vmem [resolvable:$true] %s373
          %379 = dma.hbm_to_vmem [thread:$0]  %s4, 512, %s374, [#allocation7], 128, 128, 8
        $region24: #{tpu_custom_call.1} parent=11 // pred_fallthru
          _
        // Predicated region
        $region25: #{tpu_custom_call.1} parent=11 // pred_check
          %p380 = pneg %p186
        $region26: #{tpu_custom_call.1} parent=11 // pred_check_branch
          %382 = sbr.rel (%p380) target = $region28
        $region27: #{tpu_custom_call.1} parent=11 // pred_region
          %s384 = ssub.s32 16, 16
          %385 = vsyncadd [#allocation7], %s384
          %s387 = sshll.u32 [#allocation8], 4
          %s388 = int_to_ptr.vmem [resolvable:$true] %s387
          %390 = dma.hbm_to_vmem [thread:$0]  %s5, 16, %s388, [#allocation7]
        $region28: #{tpu_custom_call.1} parent=11 // pred_fallthru
          _
        // Predicated region
        $region29: #{tpu_custom_call.1} parent=11 // pred_check
          %p391 = pneg %p259
        $region30: #{tpu_custom_call.1} parent=11 // pred_check_branch
          %393 = sbr.rel (%p391) target = $region32
        $region31: #{tpu_custom_call.1} parent=11 // pred_region
          _
        $region32: #{tpu_custom_call.1} parent=11 // pred_fallthru
          _
        // Predicated region
        $region33: #{tpu_custom_call.1} parent=11 // pred_check
          %p394 = pneg %p280
        $region34: #{tpu_custom_call.1} parent=11 // pred_check_branch
          %396 = sbr.rel (%p394) target = $region36
        $region35: #{tpu_custom_call.1} parent=11 // pred_region
          _
        $region36: #{tpu_custom_call.1} parent=11 // pred_fallthru
          _
      $region12: #{tpu_custom_call.1} parent=5 // pred_fallthru
        _
      %p397 = scmp.lt.s32.totalorder %s29, 2
      // Predicated region
      $region37: #{tpu_custom_call.1} parent=5 // pred_check
        %p398 = pneg %p397
      $region38: #{tpu_custom_call.1} parent=5 // pred_check_branch
        %400 = sbr.rel (%p398) target = $region40
      $region39: #{tpu_custom_call.1} parent=5 // pred_region
        // Predicated region
        $region41: #{tpu_custom_call.1} parent=39 // pred_check
          %p401 = pneg %p70
        $region42: #{tpu_custom_call.1} parent=39 // pred_check_branch
          %403 = sbr.rel (%p401) target = $region44
        $region43: #{tpu_custom_call.1} parent=39 // pred_region
          %s404 = smul.u32 16, %s37
          %p405 = scmp.lt.s32.totalorder %s36, 1
          %s406 = scalar_select %p405, %s36, 1
          %p407 = scmp.lt.s32.totalorder %s404, 15
          %s408 = scalar_select %p407, %s404, 15
          %s409 = smul.addr %s406, 16
          %s410 = sadd.s32 %s408, %s409
          %s411 = smul.addr %s410, 8
          %s412 = scalar_lea.vmem %s0, %s411
          %s413 = smul.u32 16, %s37
        $region44: #{tpu_custom_call.1} parent=39 // pred_fallthru
          _
        // Predicated region
        $region45: #{tpu_custom_call.1} parent=39 // pred_check
          %p414 = pneg %p96
        $region46: #{tpu_custom_call.1} parent=39 // pred_check_branch
          %416 = sbr.rel (%p414) target = $region48
        $region47: #{tpu_custom_call.1} parent=39 // pred_region
          %p417 = scmp.lt.s32.totalorder %s36, 1
          %s418 = scalar_select %p417, %s36, 1
          %s419 = scalar_lea.vmem %s1, %s418
        $region48: #{tpu_custom_call.1} parent=39 // pred_fallthru
          _
        // Predicated region
        $region49: #{tpu_custom_call.1} parent=39 // pred_check
          %p420 = pneg %p206
        $region50: #{tpu_custom_call.1} parent=39 // pred_check_branch
          %422 = sbr.rel (%p420) target = $region52
        $region51: #{tpu_custom_call.1} parent=39 // pred_region
          %s423 = sand.u32 %s29, 1
          %s424 = scalar_lea.sflag [#allocation10], %s423
          %s425 = sand.u32 %s196, 1
          %s426 = smul.addr %s425, 64
          %s427 = scalar_lea.vmem [#allocation9], %s426
          %s429 = ssub.s32 1024, 1024
          %430 = vsyncadd %s424, %s429
          %s431 = smul.addr %s36, 16
          %s432 = smul.addr %s431, 64
          %s433 = scalar_lea.hbm %s6, %s432
          %s434 = sshll.u32 %s427, 4
          %s435 = int_to_ptr.vmem [resolvable:$true] %s434
          %440 = dma.hbm_to_vmem [thread:$0]  %s433, 1024, %s435, %s424, 64, 64, 4
        $region52: #{tpu_custom_call.1} parent=39 // pred_fallthru
          _
        // Predicated region
        $region53: #{tpu_custom_call.1} parent=39 // pred_check
          %p441 = pneg %p232
        $region54: #{tpu_custom_call.1} parent=39 // pred_check_branch
          %443 = sbr.rel (%p441) target = $region56
        $region55: #{tpu_custom_call.1} parent=39 // pred_region
          %s444 = sand.u32 %s29, 1
          %s445 = scalar_lea.sflag [#allocation10], %s444
          %s446 = sand.u32 %s222, 1
          %s447 = smul.addr %s446, 64
          %s448 = scalar_lea.vmem [#allocation11], %s447
          %s450 = ssub.s32 1024, 1024
          %451 = vsyncadd %s445, %s450
          %s452 = smul.addr %s36, 16
          %s453 = smul.addr %s452, 64
          %s454 = scalar_lea.hbm %s7, %s453
          %s455 = sshll.u32 %s448, 4
          %s456 = int_to_ptr.vmem [resolvable:$true] %s455
          %461 = dma.hbm_to_vmem [thread:$0]  %s454, 1024, %s456, %s445, 64, 64, 4
        $region56: #{tpu_custom_call.1} parent=39 // pred_fallthru
          _
      $region40: #{tpu_custom_call.1} parent=5 // pred_fallthru
        _
      %p462 = scmp.le.s32.totalorder 1, %s29
      %p463 = scmp.lt.s32.totalorder %s29, 3
      %p464 = pnand %p462, %p463
      %p465 = pneg %p464
      // Predicated region
      $region57: #{tpu_custom_call.1} parent=5 // pred_check
        _
      $region58: #{tpu_custom_call.1} parent=5 // pred_check_branch
        %467 = sbr.rel (%p464) target = $region60
      $region59: #{tpu_custom_call.1} parent=5 // pred_region
        %s468 = ssub.s32 %s29, 1
        // Predicated region
        $region61: #{tpu_custom_call.1} parent=59 // pred_check
          %p469 = pneg %p144
        $region62: #{tpu_custom_call.1} parent=59 // pred_check_branch
          %471 = sbr.rel (%p469) target = $region64
        $region63: #{tpu_custom_call.1} parent=59 // pred_region
          %472 = dma.done [#allocation4], 16
        $region64: #{tpu_custom_call.1} parent=59 // pred_fallthru
          _
        // Predicated region
        $region65: #{tpu_custom_call.1} parent=59 // pred_check
          %p473 = pneg %p165
        $region66: #{tpu_custom_call.1} parent=59 // pred_check_branch
          %475 = sbr.rel (%p473) target = $region68
        $region67: #{tpu_custom_call.1} parent=59 // pred_region
          %476 = dma.done [#allocation7], 512
        $region68: #{tpu_custom_call.1} parent=59 // pred_fallthru
          _
        // Predicated region
        $region69: #{tpu_custom_call.1} parent=59 // pred_check
          %p477 = pneg %p186
        $region70: #{tpu_custom_call.1} parent=59 // pred_check_branch
          %479 = sbr.rel (%p477) target = $region72
        $region71: #{tpu_custom_call.1} parent=59 // pred_region
          %480 = dma.done [#allocation7], 16
        $region72: #{tpu_custom_call.1} parent=59 // pred_fallthru
          _
        %s481 = sand.u32 %s34, 1
        %s482 = scalar_lea.sflag [#allocation10], %s481
        %s483 = sand.u32 %s199, 1
        %s484 = smul.addr %s483, 64
        %s485 = scalar_lea.vmem [#allocation9], %s484
        // Predicated region
        $region73: #{tpu_custom_call.1} parent=59 // pred_check
          %p486 = pneg %p212
        $region74: #{tpu_custom_call.1} parent=59 // pred_check_branch
          %488 = sbr.rel (%p486) target = $region76
        $region75: #{tpu_custom_call.1} parent=59 // pred_region
          %489 = dma.done %s482, 1024
        $region76: #{tpu_custom_call.1} parent=59 // pred_fallthru
          _
        %s490 = sand.u32 %s34, 1
        %s491 = scalar_lea.sflag [#allocation10], %s490
        %s492 = sand.u32 %s225, 1
        %s493 = smul.addr %s492, 64
        %s494 = scalar_lea.vmem [#allocation11], %s493
        // Predicated region
        $region77: #{tpu_custom_call.1} parent=59 // pred_check
          %p495 = pneg %p238
        $region78: #{tpu_custom_call.1} parent=59 // pred_check_branch
          %497 = sbr.rel (%p495) target = $region80
        $region79: #{tpu_custom_call.1} parent=59 // pred_region
          %498 = dma.done %s491, 1024
        $region80: #{tpu_custom_call.1} parent=59 // pred_fallthru
          _
        %s499 = smul.u32 16, %s40
        %p500 = scmp.lt.s32.totalorder %s39, 1
        %s501 = scalar_select %p500, %s39, 1
        %p502 = scmp.lt.s32.totalorder %s499, 15
        %s503 = scalar_select %p502, %s499, 15
        %s504 = smul.addr %s501, 16
        %s505 = sadd.s32 %s503, %s504
        %s506 = smul.addr %s505, 8
        %s507 = scalar_lea.vmem %s0, %s506
        %p508 = pneg %p76
        %p509 = pneg %p73
        %p510 = scmp.lt.s32.totalorder %s39, 1
        %s511 = scalar_select %p510, %s39, 1
        %s512 = scalar_lea.vmem %s1, %s511
        %p513 = pneg %p102
        %p514 = pneg %p99
        %p515 = pneg %p123
        %p516 = pneg %p120
        %p517 = pneg %p144
        %p518 = pneg %p141
        %p519 = pneg %p165
        %p520 = pneg %p162
        %p521 = pneg %p186
        %p522 = pneg %p183
        %s523 = sand.u32 %s34, 1
        %s524 = scalar_lea.sflag [#allocation10], %s523
        %s525 = sand.u32 %s199, 1
        %s526 = smul.addr %s525, 64
        %s527 = scalar_lea.vmem [#allocation9], %s526
        %p528 = pneg %p212
        %p529 = pneg %p209
        %s530 = sand.u32 %s34, 1
        %s531 = scalar_lea.sflag [#allocation10], %s530
        %s532 = sand.u32 %s225, 1
        %s533 = smul.addr %s532, 64
        %s534 = scalar_lea.vmem [#allocation11], %s533
        %p535 = pneg %p238
        %p536 = pneg %p235
        %p537 = pneg %p259
        %p538 = pneg %p256
        %p539 = pneg %p280
        %p540 = pneg %p277
        %p541 = pneg %p308
        %p542 = pneg %p305
        %s543 = sand.u32 %s295, 1
        %s544 = scalar_lea.sflag [#allocation5], %s543
        %s545 = sand.u32 %s295, 1
        %s546 = smul.addr %s545, 64
        %s547 = scalar_lea.vmem [#allocation12], %s546
        %p548 = pneg %p338
        %p549 = pneg %p335
        %s550 = sand.u32 %s325, 1
        %s551 = scalar_lea.sflag [#allocation14], %s550
        %s552 = sand.u32 %s325, 1
        %s553 = smul.addr %s552, 256
        %s554 = scalar_lea.vmem [#allocation13], %s553
        %s555 = smul.u32 16, %s40
        %p556 = scmp.lt.s32.totalorder %s39, 1
        %s557 = scalar_select %p556, %s39, 1
        %p558 = scmp.lt.s32.totalorder %s555, 15
        %s559 = scalar_select %p558, %s555, 15
        %s560 = smul.addr %s557, 16
        %s561 = sadd.s32 %s559, %s560
        %s562 = smul.addr %s561, 8
        %s563 = scalar_lea.vmem %s0, %s562
        %s564 = smul.u32 16, %s40
        %p565 = scmp.lt.s32.totalorder %s39, 1
        %s566 = scalar_select %p565, %s39, 1
        %s567 = scalar_lea.vmem %s1, %s566
        %s568 = smul.u32 16, %s40
        %s569 = smul.u32 4, %s41
        %s570 = smul.u32 16, %s40
        %p572 = scmp.eq.s32.totalorder %s41, 0
        // Predicated region
        $region81: #{tpu_custom_call.1} parent=59 // pred_check
          %p573 = pneg %p572
        $region82: #{tpu_custom_call.1} parent=59 // pred_check_branch
          %575 = sbr.rel (%p573) target = $region84
        $region83: #{tpu_custom_call.1} parent=59 // pred_region
          %v576 = vld [vmem:[%s563] sm:$0xff]
          %v577 = vld [vmem:[%s563 + $0x8] sm:$0xff]
          %v578 = vld [vmem:[%s563 + $0x10] sm:$0xff]
          %v579 = vld [vmem:[%s563 + $0x18] sm:$0xff]
          %v580 = vld [vmem:[%s563 + $0x20] sm:$0xff]
          %v581 = vld [vmem:[%s563 + $0x28] sm:$0xff]
          %v582 = vld [vmem:[%s563 + $0x30] sm:$0xff]
          %v583 = vld [vmem:[%s563 + $0x38] sm:$0xff]
          %v584 = vld [vmem:[%s563 + $0x40] sm:$0xff]
          %v585 = vld [vmem:[%s563 + $0x48] sm:$0xff]
          %v586 = vld [vmem:[%s563 + $0x50] sm:$0xff]
          %v587 = vld [vmem:[%s563 + $0x58] sm:$0xff]
          %v588 = vld [vmem:[%s563 + $0x60] sm:$0xff]
          %v589 = vld [vmem:[%s563 + $0x68] sm:$0xff]
          %v590 = vld [vmem:[%s563 + $0x70] sm:$0xff]
          %v591 = vld [vmem:[%s563 + $0x78] sm:$0xff]
          %v592 = vld [vmem:[#allocation6] sm:$0xff]
          %v593 = vld [vmem:[#allocation6 + $0x8] sm:$0xff]
          %v594 = vld [vmem:[#allocation6 + $0x10] sm:$0xff]
          %v595 = vld [vmem:[#allocation6 + $0x18] sm:$0xff]
          %v596 = vld [vmem:[#allocation8] sm:$0x1]
          %v598 = vlaneseq
          %v599 = vshrl.u32 %v598, 7
          %v600 = vsub.s32 0, %v599
          %v601 = vrot.slane %v596, %v600
          %vm603 = vcmask 261120
          %v605 = vsel %vm603, %v576, 0
          %v608 = vsel %vm603, %v577, 0
          %v611 = vsel %vm603, %v578, 0
          %v614 = vsel %vm603, %v579, 0
          %v617 = vsel %vm603, %v580, 0
          %v620 = vsel %vm603, %v581, 0
          %v623 = vsel %vm603, %v582, 0
          %v626 = vsel %vm603, %v583, 0
          %v629 = vsel %vm603, %v584, 0
          %v632 = vsel %vm603, %v585, 0
          %v635 = vsel %vm603, %v586, 0
          %v638 = vsel %vm603, %v587, 0
          %v641 = vsel %vm603, %v588, 0
          %v644 = vsel %vm603, %v589, 0
          %v647 = vsel %vm603, %v590, 0
          %v650 = vsel %vm603, %v591, 0
          %652 = vmatprep.subr.mxu0 0.0
          %653 = vmatpush1.msra.mxu0 %v592
          %654 = vmatprep.subr.mxu0 0.0
          %655 = vmatpush1.msra.mxu0 %v593
          %656 = vmatprep.subr.mxu0 0.0
          %657 = vmatpush1.msra.mxu0 %v594
          %658 = vmatprep.subr.mxu0 0.0
          %659 = vmatpush1.msra.mxu0 %v595
          %660 = vmatprep.subr.mxu0 0.0
          %661 = vmatpush1.msra.mxu0 0.0
          %662 = vmatprep.subr.mxu0 0.0
          %663 = vmatpush1.msra.mxu0 0.0
          %664 = vmatprep.subr.mxu0 0.0
          %665 = vmatpush1.msra.mxu0 0.0
          %666 = vmatprep.subr.mxu0 0.0
          %667 = vmatpush1.msra.mxu0 0.0
          %668 = vmatprep.subr.mxu0 0.0
          %669 = vmatpush1.msra.mxu0 0.0
          %670 = vmatprep.subr.mxu0 0.0
          %671 = vmatpush1.msra.mxu0 0.0
          %672 = vmatprep.subr.mxu0 0.0
          %673 = vmatpush1.msra.mxu0 0.0
          %674 = vmatprep.subr.mxu0 0.0
          %675 = vmatpush1.msra.mxu0 0.0
          %676 = vmatprep.subr.mxu0 0.0
          %677 = vmatpush1.msra.mxu0 0.0
          %678 = vmatprep.subr.mxu0 0.0
          %679 = vmatpush1.msra.mxu0 0.0
          %680 = vmatprep.subr.mxu0 0.0
          %681 = vmatpush1.msra.mxu0 0.0
          %682 = vmatprep.subr.mxu0 0.0
          %683 = vmatpush1.msra.mxu0 0.0
          %684 = vmatprep.subr.mxu0 0.0
          %685 = vmatpush1.msra.mxu0 0.0
          %686 = vmatprep.subr.mxu0 0.0
          %687 = vmatpush1.msra.mxu0 0.0
          %688 = vmatprep.subr.mxu0 0.0
          %689 = vmatpush1.msra.mxu0 0.0
          %690 = vmatprep.subr.mxu0 0.0
          %691 = vmatpush1.msra.mxu0 0.0
          %692 = vmatprep.subr.mxu0 0.0
          %693 = vmatpush1.msra.mxu0 0.0
          %694 = vmatprep.subr.mxu0 0.0
          %695 = vmatpush1.msra.mxu0 0.0
          %696 = vmatprep.subr.mxu0 0.0
          %697 = vmatpush1.msra.mxu0 0.0
          %698 = vmatprep.subr.mxu0 0.0
          %699 = vmatpush1.msra.mxu0 0.0
          %700 = vmatprep.subr.mxu0 0.0
          %701 = vmatpush1.msra.mxu0 0.0
          %702 = vmatprep.subr.mxu0 0.0
          %703 = vmatpush1.msra.mxu0 0.0
          %704 = vmatprep.subr.mxu0 0.0
          %705 = vmatpush1.msra.mxu0 0.0
          %706 = vmatprep.subr.mxu0 0.0
          %707 = vmatpush1.msra.mxu0 0.0
          %708 = vmatprep.subr.mxu0 0.0
          %709 = vmatpush1.msra.mxu0 0.0
          %710 = vmatprep.subr.mxu0 0.0
          %711 = vmatpush1.msra.mxu0 0.0
          %712 = vmatprep.subr.mxu0 0.0
          %713 = vmatpush1.msra.mxu0 0.0
          %714 = vmatprep.subr.mxu0 0.0
          %715 = vmatpush1.msra.mxu0 0.0
          %716 = vmatprep.mubr.f32.mxu0 0.0
          %717 = vmatmul.mubr.f32.gmra.mrb[0].mxu0 %v605
          %v718 = vpop.f32.mrb[0].mxu0
          %v719 = vadd.f32 %v601, %v718
          %v720 = vpop.f32.mrb[0].mxu0
          %721 = vmatprep.mubr.f32.mxu0 0.0
          %722 = vmatmul.mubr.f32.gmra.mrb[0].mxu0 %v608
          %v723 = vpop.f32.mrb[0].mxu0
          %v724 = vadd.f32 %v601, %v723
          %v725 = vpop.f32.mrb[0].mxu0
          %726 = vmatprep.mubr.f32.mxu0 0.0
          %727 = vmatmul.mubr.f32.gmra.mrb[0].mxu0 %v611
          %v728 = vpop.f32.mrb[0].mxu0
          %v729 = vadd.f32 %v601, %v728
          %v730 = vpop.f32.mrb[0].mxu0
          %731 = vmatprep.mubr.f32.mxu0 0.0
          %732 = vmatmul.mubr.f32.gmra.mrb[0].mxu0 %v614
          %v733 = vpop.f32.mrb[0].mxu0
          %v734 = vadd.f32 %v601, %v733
          %v735 = vpop.f32.mrb[0].mxu0
          %736 = vmatprep.mubr.f32.mxu0 0.0
          %737 = vmatmul.mubr.f32.gmra.mrb[0].mxu0 %v617
          %v738 = vpop.f32.mrb[0].mxu0
          %v739 = vadd.f32 %v601, %v738
          %v740 = vpop.f32.mrb[0].mxu0
          %741 = vmatprep.mubr.f32.mxu0 0.0
          %742 = vmatmul.mubr.f32.gmra.mrb[0].mxu0 %v620
          %v743 = vpop.f32.mrb[0].mxu0
          %v744 = vadd.f32 %v601, %v743
          %v745 = vpop.f32.mrb[0].mxu0
          %746 = vmatprep.mubr.f32.mxu0 0.0
          %747 = vmatmul.mubr.f32.gmra.mrb[0].mxu0 %v623
          %v748 = vpop.f32.mrb[0].mxu0
          %v749 = vadd.f32 %v601, %v748
          %v750 = vpop.f32.mrb[0].mxu0
          %751 = vmatprep.mubr.f32.mxu0 0.0
          %752 = vmatmul.mubr.f32.gmra.mrb[0].mxu0 %v626
          %v753 = vpop.f32.mrb[0].mxu0
          %v754 = vadd.f32 %v601, %v753
          %v755 = vpop.f32.mrb[0].mxu0
          %756 = vmatprep.mubr.f32.mxu0 0.0
          %757 = vmatmul.mubr.f32.gmra.mrb[0].mxu0 %v629
          %v758 = vpop.f32.mrb[0].mxu0
          %v759 = vadd.f32 %v601, %v758
          %v760 = vpop.f32.mrb[0].mxu0
          %761 = vmatprep.mubr.f32.mxu0 0.0
          %762 = vmatmul.mubr.f32.gmra.mrb[0].mxu0 %v632
          %v763 = vpop.f32.mrb[0].mxu0
          %v764 = vadd.f32 %v601, %v763
          %v765 = vpop.f32.mrb[0].mxu0
          %766 = vmatprep.mubr.f32.mxu0 0.0
          %767 = vmatmul.mubr.f32.gmra.mrb[0].mxu0 %v635
          %v768 = vpop.f32.mrb[0].mxu0
          %v769 = vadd.f32 %v601, %v768
          %v770 = vpop.f32.mrb[0].mxu0
          %771 = vmatprep.mubr.f32.mxu0 0.0
          %772 = vmatmul.mubr.f32.gmra.mrb[0].mxu0 %v638
          %v773 = vpop.f32.mrb[0].mxu0
          %v774 = vadd.f32 %v601, %v773
          %v775 = vpop.f32.mrb[0].mxu0
          %776 = vmatprep.mubr.f32.mxu0 0.0
          %777 = vmatmul.mubr.f32.gmra.mrb[0].mxu0 %v641
          %v778 = vpop.f32.mrb[0].mxu0
          %v779 = vadd.f32 %v601, %v778
          %v780 = vpop.f32.mrb[0].mxu0
          %781 = vmatprep.mubr.f32.mxu0 0.0
          %782 = vmatmul.mubr.f32.gmra.mrb[0].mxu0 %v644
          %v783 = vpop.f32.mrb[0].mxu0
          %v784 = vadd.f32 %v601, %v783
          %v785 = vpop.f32.mrb[0].mxu0
          %786 = vmatprep.mubr.f32.mxu0 0.0
          %787 = vmatmul.mubr.f32.gmra.mrb[0].mxu0 %v647
          %v788 = vpop.f32.mrb[0].mxu0
          %v789 = vadd.f32 %v601, %v788
          %v790 = vpop.f32.mrb[0].mxu0
          %791 = vmatprep.mubr.f32.mxu0 0.0
          %792 = vmatmul.mubr.f32.gmra.mrb[0].mxu0 %v650
          %v793 = vpop.f32.mrb[0].mxu0
          %v794 = vadd.f32 %v601, %v793
          %v795 = vpop.f32.mrb[0].mxu0
          %796 = vdwg.mxu0
          %vm797 = vcmp.gt.f32.partialorder %v719, 0.0
          %vm798 = vcmp.gt.f32.partialorder %v724, 0.0
          %vm799 = vcmp.gt.f32.partialorder %v729, 0.0
          %vm800 = vcmp.gt.f32.partialorder %v734, 0.0
          %vm801 = vcmp.gt.f32.partialorder %v739, 0.0
          %vm802 = vcmp.gt.f32.partialorder %v744, 0.0
          %vm803 = vcmp.gt.f32.partialorder %v749, 0.0
          %vm804 = vcmp.gt.f32.partialorder %v754, 0.0
          %vm805 = vcmp.gt.f32.partialorder %v759, 0.0
          %vm806 = vcmp.gt.f32.partialorder %v764, 0.0
          %vm807 = vcmp.gt.f32.partialorder %v769, 0.0
          %vm808 = vcmp.gt.f32.partialorder %v774, 0.0
          %vm809 = vcmp.gt.f32.partialorder %v779, 0.0
          %vm810 = vcmp.gt.f32.partialorder %v784, 0.0
          %vm811 = vcmp.gt.f32.partialorder %v789, 0.0
          %vm812 = vcmp.gt.f32.partialorder %v794, 0.0
          %v813 = vmul.f32 %v719, 0.1
          %v814 = vmul.f32 %v724, 0.1
          %v815 = vmul.f32 %v729, 0.1
          %v816 = vmul.f32 %v734, 0.1
          %v817 = vmul.f32 %v739, 0.1
          %v818 = vmul.f32 %v744, 0.1
          %v819 = vmul.f32 %v749, 0.1
          %v820 = vmul.f32 %v754, 0.1
          %v821 = vmul.f32 %v759, 0.1
          %v822 = vmul.f32 %v764, 0.1
          %v823 = vmul.f32 %v769, 0.1
          %v824 = vmul.f32 %v774, 0.1
          %v825 = vmul.f32 %v779, 0.1
          %v826 = vmul.f32 %v784, 0.1
          %v827 = vmul.f32 %v789, 0.1
          %v828 = vmul.f32 %v794, 0.1
          %v829 = vsel %vm797, %v719, %v813
          %v830 = vsel %vm798, %v724, %v814
          %v831 = vsel %vm799, %v729, %v815
          %v832 = vsel %vm800, %v734, %v816
          %v833 = vsel %vm801, %v739, %v817
          %v834 = vsel %vm802, %v744, %v818
          %v835 = vsel %vm803, %v749, %v819
          %v836 = vsel %vm804, %v754, %v820
          %v837 = vsel %vm805, %v759, %v821
          %v838 = vsel %vm806, %v764, %v822
          %v839 = vsel %vm807, %v769, %v823
          %v840 = vsel %vm808, %v774, %v824
          %v841 = vsel %vm809, %v779, %v825
          %v842 = vsel %vm810, %v784, %v826
          %v843 = vsel %vm811, %v789, %v827
          %v844 = vsel %vm812, %v794, %v828
          %v845 = vpack.c.bf16 %v830, %v829
          %v846 = vpack.c.bf16 %v832, %v831
          %v847 = vpack.c.bf16 %v834, %v833
          %v848 = vpack.c.bf16 %v836, %v835
          %v849 = vpack.c.bf16 %v838, %v837
          %v850 = vpack.c.bf16 %v840, %v839
          %v851 = vpack.c.bf16 %v842, %v841
          %v852 = vpack.c.bf16 %v844, %v843
          %853 = vst [vmem:[#allocation2] sm:$0xff] %v845
          %854 = vst [vmem:[#allocation2 + $0x8] sm:$0xff] %v846
          %855 = vst [vmem:[#allocation2 + $0x10] sm:$0xff] %v847
          %856 = vst [vmem:[#allocation2 + $0x18] sm:$0xff] %v848
          %857 = vst [vmem:[#allocation2 + $0x20] sm:$0xff] %v849
          %858 = vst [vmem:[#allocation2 + $0x28] sm:$0xff] %v850
          %859 = vst [vmem:[#allocation2 + $0x30] sm:$0xff] %v851
          %860 = vst [vmem:[#allocation2 + $0x38] sm:$0xff] %v852
          %v861 = vld [vmem:[%s2] sm:$0xff]
          %v862 = vld [vmem:[%s2 + $0x8] sm:$0xff]
          %v863 = vld [vmem:[%s2 + $0x10] sm:$0xff]
          %v864 = vld [vmem:[%s2 + $0x18] sm:$0xff]
          %v865 = vld [vmem:[#allocation3] sm:$0x1]
          %v867 = vlaneseq
          %v868 = vshrl.u32 %v867, 7
          %v869 = vsub.s32 0, %v868
          %v870 = vrot.slane %v865, %v869
          %872 = vmatprep.subr.mxu0 0.0
          %873 = vmatpush1.msra.mxu0 %v861
          %874 = vmatprep.subr.mxu0 0.0
          %875 = vmatpush1.msra.mxu0 %v862
          %876 = vmatprep.subr.mxu0 0.0
          %877 = vmatpush1.msra.mxu0 %v863
          %878 = vmatprep.subr.mxu0 0.0
          %879 = vmatpush1.msra.mxu0 %v864
          %880 = vmatprep.subr.mxu0 0.0
          %881 = vmatpush1.msra.mxu0 0.0
          %882 = vmatprep.subr.mxu0 0.0
          %883 = vmatpush1.msra.mxu0 0.0
          %884 = vmatprep.subr.mxu0 0.0
          %885 = vmatpush1.msra.mxu0 0.0
          %886 = vmatprep.subr.mxu0 0.0
          %887 = vmatpush1.msra.mxu0 0.0
          %888 = vmatprep.subr.mxu0 0.0
          %889 = vmatpush1.msra.mxu0 0.0
          %890 = vmatprep.subr.mxu0 0.0
          %891 = vmatpush1.msra.mxu0 0.0
          %892 = vmatprep.subr.mxu0 0.0
          %893 = vmatpush1.msra.mxu0 0.0
          %894 = vmatprep.subr.mxu0 0.0
          %895 = vmatpush1.msra.mxu0 0.0
          %896 = vmatprep.subr.mxu0 0.0
          %897 = vmatpush1.msra.mxu0 0.0
          %898 = vmatprep.subr.mxu0 0.0
          %899 = vmatpush1.msra.mxu0 0.0
          %900 = vmatprep.subr.mxu0 0.0
          %901 = vmatpush1.msra.mxu0 0.0
          %902 = vmatprep.subr.mxu0 0.0
          %903 = vmatpush1.msra.mxu0 0.0
          %904 = vmatprep.subr.mxu0 0.0
          %905 = vmatpush1.msra.mxu0 0.0
          %906 = vmatprep.subr.mxu0 0.0
          %907 = vmatpush1.msra.mxu0 0.0
          %908 = vmatprep.subr.mxu0 0.0
          %909 = vmatpush1.msra.mxu0 0.0
          %910 = vmatprep.subr.mxu0 0.0
          %911 = vmatpush1.msra.mxu0 0.0
          %912 = vmatprep.subr.mxu0 0.0
          %913 = vmatpush1.msra.mxu0 0.0
          %914 = vmatprep.subr.mxu0 0.0
          %915 = vmatpush1.msra.mxu0 0.0
          %916 = vmatprep.subr.mxu0 0.0
          %917 = vmatpush1.msra.mxu0 0.0
          %918 = vmatprep.subr.mxu0 0.0
          %919 = vmatpush1.msra.mxu0 0.0
          %920 = vmatprep.subr.mxu0 0.0
          %921 = vmatpush1.msra.mxu0 0.0
          %922 = vmatprep.subr.mxu0 0.0
          %923 = vmatpush1.msra.mxu0 0.0
          %924 = vmatprep.subr.mxu0 0.0
          %925 = vmatpush1.msra.mxu0 0.0
          %926 = vmatprep.subr.mxu0 0.0
          %927 = vmatpush1.msra.mxu0 0.0
          %928 = vmatprep.subr.mxu0 0.0
          %929 = vmatpush1.msra.mxu0 0.0
          %930 = vmatprep.subr.mxu0 0.0
          %931 = vmatpush1.msra.mxu0 0.0
          %932 = vmatprep.subr.mxu0 0.0
          %933 = vmatpush1.msra.mxu0 0.0
          %934 = vmatprep.subr.mxu0 0.0
          %935 = vmatpush1.msra.mxu0 0.0
          %936 = vmatprep.mubr.f32.mxu0 0.0
          %937 = vmatmul.mubr.f32.gmra.mrb[0].mxu0 %v605
          %v938 = vpop.f32.mrb[0].mxu0
          %v939 = vadd.f32 %v870, %v938
          %v940 = vpop.f32.mrb[0].mxu0
          %941 = vmatprep.mubr.f32.mxu0 0.0
          %942 = vmatmul.mubr.f32.gmra.mrb[0].mxu0 %v608
          %v943 = vpop.f32.mrb[0].mxu0
          %v944 = vadd.f32 %v870, %v943
          %v945 = vpop.f32.mrb[0].mxu0
          %946 = vmatprep.mubr.f32.mxu0 0.0
          %947 = vmatmul.mubr.f32.gmra.mrb[0].mxu0 %v611
          %v948 = vpop.f32.mrb[0].mxu0
          %v949 = vadd.f32 %v870, %v948
          %v950 = vpop.f32.mrb[0].mxu0
          %951 = vmatprep.mubr.f32.mxu0 0.0
          %952 = vmatmul.mubr.f32.gmra.mrb[0].mxu0 %v614
          %v953 = vpop.f32.mrb[0].mxu0
          %v954 = vadd.f32 %v870, %v953
          %v955 = vpop.f32.mrb[0].mxu0
          %956 = vmatprep.mubr.f32.mxu0 0.0
          %957 = vmatmul.mubr.f32.gmra.mrb[0].mxu0 %v617
          %v958 = vpop.f32.mrb[0].mxu0
          %v959 = vadd.f32 %v870, %v958
          %v960 = vpop.f32.mrb[0].mxu0
          %961 = vmatprep.mubr.f32.mxu0 0.0
          %962 = vmatmul.mubr.f32.gmra.mrb[0].mxu0 %v620
          %v963 = vpop.f32.mrb[0].mxu0
          %v964 = vadd.f32 %v870, %v963
          %v965 = vpop.f32.mrb[0].mxu0
          %966 = vmatprep.mubr.f32.mxu0 0.0
          %967 = vmatmul.mubr.f32.gmra.mrb[0].mxu0 %v623
          %v968 = vpop.f32.mrb[0].mxu0
          %v969 = vadd.f32 %v870, %v968
          %v970 = vpop.f32.mrb[0].mxu0
          %971 = vmatprep.mubr.f32.mxu0 0.0
          %972 = vmatmul.mubr.f32.gmra.mrb[0].mxu0 %v626
          %v973 = vpop.f32.mrb[0].mxu0
          %v974 = vadd.f32 %v870, %v973
          %v975 = vpop.f32.mrb[0].mxu0
          %976 = vmatprep.mubr.f32.mxu0 0.0
          %977 = vmatmul.mubr.f32.gmra.mrb[0].mxu0 %v629
          %v978 = vpop.f32.mrb[0].mxu0
          %v979 = vadd.f32 %v870, %v978
          %v980 = vpop.f32.mrb[0].mxu0
          %981 = vmatprep.mubr.f32.mxu0 0.0
          %982 = vmatmul.mubr.f32.gmra.mrb[0].mxu0 %v632
          %v983 = vpop.f32.mrb[0].mxu0
          %v984 = vadd.f32 %v870, %v983
          %v985 = vpop.f32.mrb[0].mxu0
          %986 = vmatprep.mubr.f32.mxu0 0.0
          %987 = vmatmul.mubr.f32.gmra.mrb[0].mxu0 %v635
          %v988 = vpop.f32.mrb[0].mxu0
          %v989 = vadd.f32 %v870, %v988
          %v990 = vpop.f32.mrb[0].mxu0
          %991 = vmatprep.mubr.f32.mxu0 0.0
          %992 = vmatmul.mubr.f32.gmra.mrb[0].mxu0 %v638
          %v993 = vpop.f32.mrb[0].mxu0
          %v994 = vadd.f32 %v870, %v993
          %v995 = vpop.f32.mrb[0].mxu0
          %996 = vmatprep.mubr.f32.mxu0 0.0
          %997 = vmatmul.mubr.f32.gmra.mrb[0].mxu0 %v641
          %v998 = vpop.f32.mrb[0].mxu0
          %v999 = vadd.f32 %v870, %v998
          %v1000 = vpop.f32.mrb[0].mxu0
          %1001 = vmatprep.mubr.f32.mxu0 0.0
          %1002 = vmatmul.mubr.f32.gmra.mrb[0].mxu0 %v644
          %v1003 = vpop.f32.mrb[0].mxu0
          %v1004 = vadd.f32 %v870, %v1003
          %v1005 = vpop.f32.mrb[0].mxu0
          %1006 = vmatprep.mubr.f32.mxu0 0.0
          %1007 = vmatmul.mubr.f32.gmra.mrb[0].mxu0 %v647
          %v1008 = vpop.f32.mrb[0].mxu0
          %v1009 = vadd.f32 %v870, %v1008
          %v1010 = vpop.f32.mrb[0].mxu0
          %1011 = vmatprep.mubr.f32.mxu0 0.0
          %1012 = vmatmul.mubr.f32.gmra.mrb[0].mxu0 %v650
          %v1013 = vpop.f32.mrb[0].mxu0
          %v1014 = vadd.f32 %v870, %v1013
          %v1015 = vpop.f32.mrb[0].mxu0
          %1016 = vdwg.mxu0
          %vm1017 = vcmp.gt.f32.partialorder %v939, 0.0
          %vm1018 = vcmp.gt.f32.partialorder %v944, 0.0
          %vm1019 = vcmp.gt.f32.partialorder %v949, 0.0
          %vm1020 = vcmp.gt.f32.partialorder %v954, 0.0
          %vm1021 = vcmp.gt.f32.partialorder %v959, 0.0
          %vm1022 = vcmp.gt.f32.partialorder %v964, 0.0
          %vm1023 = vcmp.gt.f32.partialorder %v969, 0.0
          %vm1024 = vcmp.gt.f32.partialorder %v974, 0.0
          %vm1025 = vcmp.gt.f32.partialorder %v979, 0.0
          %vm1026 = vcmp.gt.f32.partialorder %v984, 0.0
          %vm1027 = vcmp.gt.f32.partialorder %v989, 0.0
          %vm1028 = vcmp.gt.f32.partialorder %v994, 0.0
          %vm1029 = vcmp.gt.f32.partialorder %v999, 0.0
          %vm1030 = vcmp.gt.f32.partialorder %v1004, 0.0
          %vm1031 = vcmp.gt.f32.partialorder %v1009, 0.0
          %vm1032 = vcmp.gt.f32.partialorder %v1014, 0.0
          %v1033 = vmul.f32 %v939, 0.1
          %v1034 = vmul.f32 %v944, 0.1
          %v1035 = vmul.f32 %v949, 0.1
          %v1036 = vmul.f32 %v954, 0.1
          %v1037 = vmul.f32 %v959, 0.1
          %v1038 = vmul.f32 %v964, 0.1
          %v1039 = vmul.f32 %v969, 0.1
          %v1040 = vmul.f32 %v974, 0.1
          %v1041 = vmul.f32 %v979, 0.1
          %v1042 = vmul.f32 %v984, 0.1
          %v1043 = vmul.f32 %v989, 0.1
          %v1044 = vmul.f32 %v994, 0.1
          %v1045 = vmul.f32 %v999, 0.1
          %v1046 = vmul.f32 %v1004, 0.1
          %v1047 = vmul.f32 %v1009, 0.1
          %v1048 = vmul.f32 %v1014, 0.1
          %v1049 = vsel %vm1017, %v939, %v1033
          %v1050 = vsel %vm1018, %v944, %v1034
          %v1051 = vsel %vm1019, %v949, %v1035
          %v1052 = vsel %vm1020, %v954, %v1036
          %v1053 = vsel %vm1021, %v959, %v1037
          %v1054 = vsel %vm1022, %v964, %v1038
          %v1055 = vsel %vm1023, %v969, %v1039
          %v1056 = vsel %vm1024, %v974, %v1040
          %v1057 = vsel %vm1025, %v979, %v1041
          %v1058 = vsel %vm1026, %v984, %v1042
          %v1059 = vsel %vm1027, %v989, %v1043
          %v1060 = vsel %vm1028, %v994, %v1044
          %v1061 = vsel %vm1029, %v999, %v1045
          %v1062 = vsel %vm1030, %v1004, %v1046
          %v1063 = vsel %vm1031, %v1009, %v1047
          %v1064 = vsel %vm1032, %v1014, %v1048
          %v1065 = vpack.c.bf16 %v1050, %v1049
          %v1066 = vpack.c.bf16 %v1052, %v1051
          %v1067 = vpack.c.bf16 %v1054, %v1053
          %v1068 = vpack.c.bf16 %v1056, %v1055
          %v1069 = vpack.c.bf16 %v1058, %v1057
          %v1070 = vpack.c.bf16 %v1060, %v1059
          %v1071 = vpack.c.bf16 %v1062, %v1061
          %v1072 = vpack.c.bf16 %v1064, %v1063
          %v1073 = vld [vmem:[%s8] sm:$0xf]
          %v1074 = vld [vmem:[%s8 + $0x4] sm:$0xf]
          %v1075 = vld [vmem:[%s8 + $0x8] sm:$0xf]
          %v1076 = vld [vmem:[%s8 + $0xc] sm:$0xf]
          %v1077 = vld [vmem:[%s8 + $0x10] sm:$0xf]
          %v1078 = vld [vmem:[%s8 + $0x14] sm:$0xf]
          %v1079 = vld [vmem:[%s8 + $0x18] sm:$0xf]
          %v1080 = vld [vmem:[%s8 + $0x1c] sm:$0xf]
          %v1081 = vld [vmem:[%s8 + $0x20] sm:$0xf]
          %v1082 = vld [vmem:[%s8 + $0x24] sm:$0xf]
          %v1083 = vld [vmem:[%s8 + $0x28] sm:$0xf]
          %v1084 = vld [vmem:[%s8 + $0x2c] sm:$0xf]
          %v1085 = vld [vmem:[%s8 + $0x30] sm:$0xf]
          %v1086 = vld [vmem:[%s8 + $0x34] sm:$0xf]
          %v1087 = vld [vmem:[%s8 + $0x38] sm:$0xf]
          %v1088 = vld [vmem:[%s8 + $0x3c] sm:$0xf]
          %v1105 = vunpack.c.l.b16 %v1073
          %v1106 = vunpack.c.l.b16 %v1074
          %v1107 = vunpack.c.l.b16 %v1075
          %v1108 = vunpack.c.l.b16 %v1076
          %v1109 = vunpack.c.l.b16 %v1077
          %v1110 = vunpack.c.l.b16 %v1078
          %v1111 = vunpack.c.l.b16 %v1079
          %v1112 = vunpack.c.l.b16 %v1080
          %v1113 = vunpack.c.l.b16 %v1081
          %v1114 = vunpack.c.l.b16 %v1082
          %v1115 = vunpack.c.l.b16 %v1083
          %v1116 = vunpack.c.l.b16 %v1084
          %v1117 = vunpack.c.l.b16 %v1085
          %v1118 = vunpack.c.l.b16 %v1086
          %v1119 = vunpack.c.l.b16 %v1087
          %v1120 = vunpack.c.l.b16 %v1088
          %v1121 = vpack.c.b16 %v1106, %v1105
          %v1122 = vpack.c.b16 %v1108, %v1107
          %v1123 = vpack.c.b16 %v1110, %v1109
          %v1124 = vpack.c.b16 %v1112, %v1111
          %v1125 = vpack.c.b16 %v1114, %v1113
          %v1126 = vpack.c.b16 %v1116, %v1115
          %v1127 = vpack.c.b16 %v1118, %v1117
          %v1128 = vpack.c.b16 %v1120, %v1119
          %1137 = vmatprep.subr.bf16.mxu0 0
          %1138 = vmatpush1.bf16.msra.mxu0 %v1121
          %1139 = vmatprep.subr.bf16.mxu0 0
          %1140 = vmatpush1.bf16.msra.mxu0 %v1122
          %1141 = vmatprep.subr.bf16.mxu0 0
          %1142 = vmatpush1.bf16.msra.mxu0 %v1123
          %1143 = vmatprep.subr.bf16.mxu0 0
          %1144 = vmatpush1.bf16.msra.mxu0 %v1124
          %1145 = vmatprep.subr.bf16.mxu0 0
          %1146 = vmatpush1.bf16.msra.mxu0 %v1125
          %1147 = vmatprep.subr.bf16.mxu0 0
          %1148 = vmatpush1.bf16.msra.mxu0 %v1126
          %1149 = vmatprep.subr.bf16.mxu0 0
          %1150 = vmatpush1.bf16.msra.mxu0 %v1127
          %1151 = vmatprep.subr.bf16.mxu0 0
          %1152 = vmatpush1.bf16.msra.mxu0 %v1128
          %1153 = vmatprep.subr.bf16.mxu0 0
          %1154 = vmatpush1.bf16.msra.mxu0 0
          %1155 = vmatprep.subr.bf16.mxu0 0
          %1156 = vmatpush1.bf16.msra.mxu0 0
          %1157 = vmatprep.subr.bf16.mxu0 0
          %1158 = vmatpush1.bf16.msra.mxu0 0
          %1159 = vmatprep.subr.bf16.mxu0 0
          %1160 = vmatpush1.bf16.msra.mxu0 0
          %1161 = vmatprep.subr.bf16.mxu0 0
          %1162 = vmatpush1.bf16.msra.mxu0 0
          %1163 = vmatprep.subr.bf16.mxu0 0
          %1164 = vmatpush1.bf16.msra.mxu0 0
          %1165 = vmatprep.subr.bf16.mxu0 0
          %1166 = vmatpush1.bf16.msra.mxu0 0
          %1167 = vmatprep.subr.bf16.mxu0 0
          %1168 = vmatpush1.bf16.msra.mxu0 0
          %1169 = vmatprep.mubr.bf16.mxu0 0
          %1170 = vmatmul.mubr.bf16.gmra.mrb[0].mxu0 %v1065
          %v1171 = vpop.f32.mrb[0].mxu0
          %v1172 = vadd.f32 0.0, %v1171
          %v1173 = vpop.f32.mrb[0].mxu0
          %v1174 = vpop.f32.mrb[0].mxu0
          %v1175 = vadd.f32 0.0, %v1174
          %v1176 = vpop.f32.mrb[0].mxu0
          %1177 = vmatprep.mubr.bf16.mxu0 0
          %1178 = vmatmul.mubr.bf16.gmra.mrb[0].mxu0 %v1066
          %v1179 = vpop.f32.mrb[0].mxu0
          %v1180 = vadd.f32 0.0, %v1179
          %v1181 = vpop.f32.mrb[0].mxu0
          %v1182 = vpop.f32.mrb[0].mxu0
          %v1183 = vadd.f32 0.0, %v1182
          %v1184 = vpop.f32.mrb[0].mxu0
          %1185 = vmatprep.mubr.bf16.mxu0 0
          %1186 = vmatmul.mubr.bf16.gmra.mrb[0].mxu0 %v1067
          %v1187 = vpop.f32.mrb[0].mxu0
          %v1188 = vadd.f32 0.0, %v1187
          %v1189 = vpop.f32.mrb[0].mxu0
          %v1190 = vpop.f32.mrb[0].mxu0
          %v1191 = vadd.f32 0.0, %v1190
          %v1192 = vpop.f32.mrb[0].mxu0
          %1193 = vmatprep.mubr.bf16.mxu0 0
          %1194 = vmatmul.mubr.bf16.gmra.mrb[0].mxu0 %v1068
          %v1195 = vpop.f32.mrb[0].mxu0
          %v1196 = vadd.f32 0.0, %v1195
          %v1197 = vpop.f32.mrb[0].mxu0
          %v1198 = vpop.f32.mrb[0].mxu0
          %v1199 = vadd.f32 0.0, %v1198
          %v1200 = vpop.f32.mrb[0].mxu0
          %1201 = vmatprep.mubr.bf16.mxu0 0
          %1202 = vmatmul.mubr.bf16.gmra.mrb[0].mxu0 %v1069
          %v1203 = vpop.f32.mrb[0].mxu0
          %v1204 = vadd.f32 0.0, %v1203
          %v1205 = vpop.f32.mrb[0].mxu0
          %v1206 = vpop.f32.mrb[0].mxu0
          %v1207 = vadd.f32 0.0, %v1206
          %v1208 = vpop.f32.mrb[0].mxu0
          %1209 = vmatprep.mubr.bf16.mxu0 0
          %1210 = vmatmul.mubr.bf16.gmra.mrb[0].mxu0 %v1070
          %v1211 = vpop.f32.mrb[0].mxu0
          %v1212 = vadd.f32 0.0, %v1211
          %v1213 = vpop.f32.mrb[0].mxu0
          %v1214 = vpop.f32.mrb[0].mxu0
          %v1215 = vadd.f32 0.0, %v1214
          %v1216 = vpop.f32.mrb[0].mxu0
          %1217 = vmatprep.mubr.bf16.mxu0 0
          %1218 = vmatmul.mubr.bf16.gmra.mrb[0].mxu0 %v1071
          %v1219 = vpop.f32.mrb[0].mxu0
          %v1220 = vadd.f32 0.0, %v1219
          %v1221 = vpop.f32.mrb[0].mxu0
          %v1222 = vpop.f32.mrb[0].mxu0
          %v1223 = vadd.f32 0.0, %v1222
          %v1224 = vpop.f32.mrb[0].mxu0
          %1225 = vmatprep.mubr.bf16.mxu0 0
          %1226 = vmatmul.mubr.bf16.gmra.mrb[0].mxu0 %v1072
          %v1227 = vpop.f32.mrb[0].mxu0
          %v1228 = vadd.f32 0.0, %v1227
          %v1229 = vpop.f32.mrb[0].mxu0
          %v1230 = vpop.f32.mrb[0].mxu0
          %v1231 = vadd.f32 0.0, %v1230
          %v1232 = vpop.f32.mrb[0].mxu0
          %1233 = vdwg.mxu0
          %v1234 = vpack.c.bf16 %v1175, %v1172
          %v1235 = vpack.c.bf16 %v1183, %v1180
          %v1236 = vpack.c.bf16 %v1191, %v1188
          %v1237 = vpack.c.bf16 %v1199, %v1196
          %v1238 = vpack.c.bf16 %v1207, %v1204
          %v1239 = vpack.c.bf16 %v1215, %v1212
          %v1240 = vpack.c.bf16 %v1223, %v1220
          %v1241 = vpack.c.bf16 %v1231, %v1228
          %v1242 = vld [vmem:[%s485] sm:$0xf]
          %v1243 = vld [vmem:[%s485 + $0x4] sm:$0xf]
          %v1244 = vld [vmem:[%s485 + $0x8] sm:$0xf]
          %v1245 = vld [vmem:[%s485 + $0xc] sm:$0xf]
          %v1246 = vld [vmem:[%s485 + $0x10] sm:$0xf]
          %v1247 = vld [vmem:[%s485 + $0x14] sm:$0xf]
          %v1248 = vld [vmem:[%s485 + $0x18] sm:$0xf]
          %v1249 = vld [vmem:[%s485 + $0x1c] sm:$0xf]
          %v1250 = vld [vmem:[%s485 + $0x20] sm:$0xf]
          %v1251 = vld [vmem:[%s485 + $0x24] sm:$0xf]
          %v1252 = vld [vmem:[%s485 + $0x28] sm:$0xf]
          %v1253 = vld [vmem:[%s485 + $0x2c] sm:$0xf]
          %v1254 = vld [vmem:[%s485 + $0x30] sm:$0xf]
          %v1255 = vld [vmem:[%s485 + $0x34] sm:$0xf]
          %v1256 = vld [vmem:[%s485 + $0x38] sm:$0xf]
          %v1257 = vld [vmem:[%s485 + $0x3c] sm:$0xf]
          %v1274 = vunpack.c.l.b16 %v1242
          %v1275 = vunpack.c.l.b16 %v1243
          %v1276 = vunpack.c.l.b16 %v1244
          %v1277 = vunpack.c.l.b16 %v1245
          %v1278 = vunpack.c.l.b16 %v1246
          %v1279 = vunpack.c.l.b16 %v1247
          %v1280 = vunpack.c.l.b16 %v1248
          %v1281 = vunpack.c.l.b16 %v1249
          %v1282 = vunpack.c.l.b16 %v1250
          %v1283 = vunpack.c.l.b16 %v1251
          %v1284 = vunpack.c.l.b16 %v1252
          %v1285 = vunpack.c.l.b16 %v1253
          %v1286 = vunpack.c.l.b16 %v1254
          %v1287 = vunpack.c.l.b16 %v1255
          %v1288 = vunpack.c.l.b16 %v1256
          %v1289 = vunpack.c.l.b16 %v1257
          %v1290 = vpack.c.b16 %v1275, %v1274
          %v1291 = vpack.c.b16 %v1277, %v1276
          %v1292 = vpack.c.b16 %v1279, %v1278
          %v1293 = vpack.c.b16 %v1281, %v1280
          %v1294 = vpack.c.b16 %v1283, %v1282
          %v1295 = vpack.c.b16 %v1285, %v1284
          %v1296 = vpack.c.b16 %v1287, %v1286
          %v1297 = vpack.c.b16 %v1289, %v1288
          %1306 = vmatprep.subr.bf16.mxu0 0
          %1307 = vmatpush1.bf16.msra.mxu0 %v1290
          %1308 = vmatprep.subr.bf16.mxu0 0
          %1309 = vmatpush1.bf16.msra.mxu0 %v1291
          %1310 = vmatprep.subr.bf16.mxu0 0
          %1311 = vmatpush1.bf16.msra.mxu0 %v1292
          %1312 = vmatprep.subr.bf16.mxu0 0
          %1313 = vmatpush1.bf16.msra.mxu0 %v1293
          %1314 = vmatprep.subr.bf16.mxu0 0
          %1315 = vmatpush1.bf16.msra.mxu0 %v1294
          %1316 = vmatprep.subr.bf16.mxu0 0
          %1317 = vmatpush1.bf16.msra.mxu0 %v1295
          %1318 = vmatprep.subr.bf16.mxu0 0
          %1319 = vmatpush1.bf16.msra.mxu0 %v1296
          %1320 = vmatprep.subr.bf16.mxu0 0
          %1321 = vmatpush1.bf16.msra.mxu0 %v1297
          %1322 = vmatprep.subr.bf16.mxu0 0
          %1323 = vmatpush1.bf16.msra.mxu0 0
          %1324 = vmatprep.subr.bf16.mxu0 0
          %1325 = vmatpush1.bf16.msra.mxu0 0
          %1326 = vmatprep.subr.bf16.mxu0 0
          %1327 = vmatpush1.bf16.msra.mxu0 0
          %1328 = vmatprep.subr.bf16.mxu0 0
          %1329 = vmatpush1.bf16.msra.mxu0 0
          %1330 = vmatprep.subr.bf16.mxu0 0
          %1331 = vmatpush1.bf16.msra.mxu0 0
          %1332 = vmatprep.subr.bf16.mxu0 0
          %1333 = vmatpush1.bf16.msra.mxu0 0
          %1334 = vmatprep.subr.bf16.mxu0 0
          %1335 = vmatpush1.bf16.msra.mxu0 0
          %1336 = vmatprep.subr.bf16.mxu0 0
          %1337 = vmatpush1.bf16.msra.mxu0 0
          %1338 = vmatprep.mubr.bf16.mxu0 0
          %1339 = vmatmul.mubr.bf16.gmra.mrb[0].mxu0 %v1234
          %v1340 = vpop.f32.mrb[0].mxu0
          %v1341 = vadd.f32 0.0, %v1340
          %v1342 = vpop.f32.mrb[0].mxu0
          %v1343 = vpop.f32.mrb[0].mxu0
          %v1344 = vadd.f32 0.0, %v1343
          %v1345 = vpop.f32.mrb[0].mxu0
          %1346 = vmatprep.mubr.bf16.mxu0 0
          %1347 = vmatmul.mubr.bf16.gmra.mrb[0].mxu0 %v1235
          %v1348 = vpop.f32.mrb[0].mxu0
          %v1349 = vadd.f32 0.0, %v1348
          %v1350 = vpop.f32.mrb[0].mxu0
          %v1351 = vpop.f32.mrb[0].mxu0
          %v1352 = vadd.f32 0.0, %v1351
          %v1353 = vpop.f32.mrb[0].mxu0
          %1354 = vmatprep.mubr.bf16.mxu0 0
          %1355 = vmatmul.mubr.bf16.gmra.mrb[0].mxu0 %v1236
          %v1356 = vpop.f32.mrb[0].mxu0
          %v1357 = vadd.f32 0.0, %v1356
          %v1358 = vpop.f32.mrb[0].mxu0
          %v1359 = vpop.f32.mrb[0].mxu0
          %v1360 = vadd.f32 0.0, %v1359
          %v1361 = vpop.f32.mrb[0].mxu0
          %1362 = vmatprep.mubr.bf16.mxu0 0
          %1363 = vmatmul.mubr.bf16.gmra.mrb[0].mxu0 %v1237
          %v1364 = vpop.f32.mrb[0].mxu0
          %v1365 = vadd.f32 0.0, %v1364
          %v1366 = vpop.f32.mrb[0].mxu0
          %v1367 = vpop.f32.mrb[0].mxu0
          %v1368 = vadd.f32 0.0, %v1367
          %v1369 = vpop.f32.mrb[0].mxu0
          %1370 = vmatprep.mubr.bf16.mxu0 0
          %1371 = vmatmul.mubr.bf16.gmra.mrb[0].mxu0 %v1238
          %v1372 = vpop.f32.mrb[0].mxu0
          %v1373 = vadd.f32 0.0, %v1372
          %v1374 = vpop.f32.mrb[0].mxu0
          %v1375 = vpop.f32.mrb[0].mxu0
          %v1376 = vadd.f32 0.0, %v1375
          %v1377 = vpop.f32.mrb[0].mxu0
          %1378 = vmatprep.mubr.bf16.mxu0 0
          %1379 = vmatmul.mubr.bf16.gmra.mrb[0].mxu0 %v1239
          %v1380 = vpop.f32.mrb[0].mxu0
          %v1381 = vadd.f32 0.0, %v1380
          %v1382 = vpop.f32.mrb[0].mxu0
          %v1383 = vpop.f32.mrb[0].mxu0
          %v1384 = vadd.f32 0.0, %v1383
          %v1385 = vpop.f32.mrb[0].mxu0
          %1386 = vmatprep.mubr.bf16.mxu0 0
          %1387 = vmatmul.mubr.bf16.gmra.mrb[0].mxu0 %v1240
          %v1388 = vpop.f32.mrb[0].mxu0
          %v1389 = vadd.f32 0.0, %v1388
          %v1390 = vpop.f32.mrb[0].mxu0
          %v1391 = vpop.f32.mrb[0].mxu0
          %v1392 = vadd.f32 0.0, %v1391
          %v1393 = vpop.f32.mrb[0].mxu0
          %1394 = vmatprep.mubr.bf16.mxu0 0
          %1395 = vmatmul.mubr.bf16.gmra.mrb[0].mxu0 %v1241
          %v1396 = vpop.f32.mrb[0].mxu0
          %v1397 = vadd.f32 0.0, %v1396
          %v1398 = vpop.f32.mrb[0].mxu0
          %v1399 = vpop.f32.mrb[0].mxu0
          %v1400 = vadd.f32 0.0, %v1399
          %v1401 = vpop.f32.mrb[0].mxu0
          %1402 = vdwg.mxu0
          %v1403 = vld [vmem:[%s567] sm:$0x1]
          %vm1404 = vcmp.gt.f32.partialorder %v1403, 0.0
          %v1405 = vsel %vm1404, 1, 0
          %v1406 = vlaneseq
          %v1407 = vshrl.u32 %v1406, 7
          %v1408 = vsub.s32 0, %v1407
          %v1409 = vrot.slane %v1405, %v1408
          %vm1410 = vcmp.eq.s32.totalorder %v1409, 1
          %v1411 = vsel %vm1410, %v1341, -inf
          %v1412 = vsel %vm1410, %v1344, -inf
          %v1413 = vsel %vm1410, %v1349, -inf
          %v1414 = vsel %vm1410, %v1352, -inf
          %v1415 = vsel %vm1410, %v1357, -inf
          %v1416 = vsel %vm1410, %v1360, -inf
          %v1417 = vsel %vm1410, %v1365, -inf
          %v1418 = vsel %vm1410, %v1368, -inf
          %v1419 = vsel %vm1410, %v1373, -inf
          %v1420 = vsel %vm1410, %v1376, -inf
          %v1421 = vsel %vm1410, %v1381, -inf
          %v1422 = vsel %vm1410, %v1384, -inf
          %v1423 = vsel %vm1410, %v1389, -inf
          %v1424 = vsel %vm1410, %v1392, -inf
          %v1425 = vsel %vm1410, %v1397, -inf
          %v1426 = vsel %vm1410, %v1400, -inf
          %v1427 = vpack.c.bf16 %v1412, %v1411
          %v1428 = vpack.c.bf16 %v1414, %v1413
          %v1429 = vpack.c.bf16 %v1416, %v1415
          %v1430 = vpack.c.bf16 %v1418, %v1417
          %v1431 = vpack.c.bf16 %v1420, %v1419
          %v1432 = vpack.c.bf16 %v1422, %v1421
          %v1433 = vpack.c.bf16 %v1424, %v1423
          %v1434 = vpack.c.bf16 %v1426, %v1425
          %v1443 = vunpack.c.l.b16 %v1427
          %v1444 = vunpack.c.h.b16 %v1427
          %v1445 = vunpack.c.l.b16 %v1428
          %v1446 = vunpack.c.h.b16 %v1428
          %v1447 = vunpack.c.l.b16 %v1429
          %v1448 = vunpack.c.h.b16 %v1429
          %v1449 = vunpack.c.l.b16 %v1430
          %v1450 = vunpack.c.h.b16 %v1430
          %v1451 = vunpack.c.l.b16 %v1431
          %v1452 = vunpack.c.h.b16 %v1431
          %v1453 = vunpack.c.l.b16 %v1432
          %v1454 = vunpack.c.h.b16 %v1432
          %v1455 = vunpack.c.l.b16 %v1433
          %v1456 = vunpack.c.h.b16 %v1433
          %v1457 = vunpack.c.l.b16 %v1434
          %v1458 = vunpack.c.h.b16 %v1434
          %v1459 = vpack.c.b16 %v1443, %v1443
          %v1460 = vpack.c.b16 %v1444, %v1444
          %v1461 = vpack.c.b16 %v1445, %v1445
          %v1462 = vpack.c.b16 %v1446, %v1446
          %v1463 = vpack.c.b16 %v1447, %v1447
          %v1464 = vpack.c.b16 %v1448, %v1448
          %v1465 = vpack.c.b16 %v1449, %v1449
          %v1466 = vpack.c.b16 %v1450, %v1450
          %v1467 = vpack.c.b16 %v1451, %v1451
          %v1468 = vpack.c.b16 %v1452, %v1452
          %v1469 = vpack.c.b16 %v1453, %v1453
          %v1470 = vpack.c.b16 %v1454, %v1454
          %v1471 = vpack.c.b16 %v1455, %v1455
          %v1472 = vpack.c.b16 %v1456, %v1456
          %v1473 = vpack.c.b16 %v1457, %v1457
          %v1474 = vpack.c.b16 %v1458, %v1458
          %1491 = vst [vmem:[%s547] sm:$0xf] %v1459
          %1492 = vst [vmem:[%s547 + $0x4] sm:$0xf] %v1460
          %1493 = vst [vmem:[%s547 + $0x8] sm:$0xf] %v1461
          %1494 = vst [vmem:[%s547 + $0xc] sm:$0xf] %v1462
          %1495 = vst [vmem:[%s547 + $0x10] sm:$0xf] %v1463
          %1496 = vst [vmem:[%s547 + $0x14] sm:$0xf] %v1464
          %1497 = vst [vmem:[%s547 + $0x18] sm:$0xf] %v1465
          %1498 = vst [vmem:[%s547 + $0x1c] sm:$0xf] %v1466
          %1499 = vst [vmem:[%s547 + $0x20] sm:$0xf] %v1467
          %1500 = vst [vmem:[%s547 + $0x24] sm:$0xf] %v1468
          %1501 = vst [vmem:[%s547 + $0x28] sm:$0xf] %v1469
          %1502 = vst [vmem:[%s547 + $0x2c] sm:$0xf] %v1470
          %1503 = vst [vmem:[%s547 + $0x30] sm:$0xf] %v1471
          %1504 = vst [vmem:[%s547 + $0x34] sm:$0xf] %v1472
          %1505 = vst [vmem:[%s547 + $0x38] sm:$0xf] %v1473
          %1506 = vst [vmem:[%s547 + $0x3c] sm:$0xf] %v1474
        $region84: #{tpu_custom_call.1} parent=59 // pred_fallthru
          _
        %v1507 = vld [vmem:[#allocation2] sm:$0xff]
        %v1508 = vld [vmem:[#allocation2 + $0x8] sm:$0xff]
        %v1509 = vld [vmem:[#allocation2 + $0x10] sm:$0xff]
        %v1510 = vld [vmem:[#allocation2 + $0x18] sm:$0xff]
        %v1511 = vld [vmem:[#allocation2 + $0x20] sm:$0xff]
        %v1512 = vld [vmem:[#allocation2 + $0x28] sm:$0xff]
        %v1513 = vld [vmem:[#allocation2 + $0x30] sm:$0xff]
        %v1514 = vld [vmem:[#allocation2 + $0x38] sm:$0xff]
        %v1515 = vld [vmem:[%s494] sm:$0xf]
        %v1516 = vld [vmem:[%s494 + $0x4] sm:$0xf]
        %v1517 = vld [vmem:[%s494 + $0x8] sm:$0xf]
        %v1518 = vld [vmem:[%s494 + $0xc] sm:$0xf]
        %v1519 = vld [vmem:[%s494 + $0x10] sm:$0xf]
        %v1520 = vld [vmem:[%s494 + $0x14] sm:$0xf]
        %v1521 = vld [vmem:[%s494 + $0x18] sm:$0xf]
        %v1522 = vld [vmem:[%s494 + $0x1c] sm:$0xf]
        %v1523 = vld [vmem:[%s494 + $0x20] sm:$0xf]
        %v1524 = vld [vmem:[%s494 + $0x24] sm:$0xf]
        %v1525 = vld [vmem:[%s494 + $0x28] sm:$0xf]
        %v1526 = vld [vmem:[%s494 + $0x2c] sm:$0xf]
        %v1527 = vld [vmem:[%s494 + $0x30] sm:$0xf]
        %v1528 = vld [vmem:[%s494 + $0x34] sm:$0xf]
        %v1529 = vld [vmem:[%s494 + $0x38] sm:$0xf]
        %v1530 = vld [vmem:[%s494 + $0x3c] sm:$0xf]
        %s1531 = smul.u32 %s41, 4
        %s1532 = smul.u32 %s1531, 16
        %s1533 = smul.addr %s1532, 4
        %s1534 = scalar_lea.vmem %s9, %s1533
        %v1535 = vld [vmem:[%s1534] sm:$0xf]
        %v1536 = vld [vmem:[%s1534 + $0x4] sm:$0xf]
        %v1537 = vld [vmem:[%s1534 + $0x8] sm:$0xf]
        %v1538 = vld [vmem:[%s1534 + $0xc] sm:$0xf]
        %v1539 = vld [vmem:[%s1534 + $0x10] sm:$0xf]
        %v1540 = vld [vmem:[%s1534 + $0x14] sm:$0xf]
        %v1541 = vld [vmem:[%s1534 + $0x18] sm:$0xf]
        %v1542 = vld [vmem:[%s1534 + $0x1c] sm:$0xf]
        %v1543 = vld [vmem:[%s1534 + $0x20] sm:$0xf]
        %v1544 = vld [vmem:[%s1534 + $0x24] sm:$0xf]
        %v1545 = vld [vmem:[%s1534 + $0x28] sm:$0xf]
        %v1546 = vld [vmem:[%s1534 + $0x2c] sm:$0xf]
        %v1547 = vld [vmem:[%s1534 + $0x30] sm:$0xf]
        %v1548 = vld [vmem:[%s1534 + $0x34] sm:$0xf]
        %v1549 = vld [vmem:[%s1534 + $0x38] sm:$0xf]
        %v1550 = vld [vmem:[%s1534 + $0x3c] sm:$0xf]
        %v1567 = vunpack.c.l.b16 %v1535
        %v1568 = vunpack.c.l.b16 %v1536
        %v1569 = vunpack.c.l.b16 %v1537
        %v1570 = vunpack.c.l.b16 %v1538
        %v1571 = vunpack.c.l.b16 %v1539
        %v1572 = vunpack.c.l.b16 %v1540
        %v1573 = vunpack.c.l.b16 %v1541
        %v1574 = vunpack.c.l.b16 %v1542
        %v1575 = vunpack.c.l.b16 %v1543
        %v1576 = vunpack.c.l.b16 %v1544
        %v1577 = vunpack.c.l.b16 %v1545
        %v1578 = vunpack.c.l.b16 %v1546
        %v1579 = vunpack.c.l.b16 %v1547
        %v1580 = vunpack.c.l.b16 %v1548
        %v1581 = vunpack.c.l.b16 %v1549
        %v1582 = vunpack.c.l.b16 %v1550
        %v1583 = vpack.c.b16 %v1568, %v1567
        %v1584 = vpack.c.b16 %v1570, %v1569
        %v1585 = vpack.c.b16 %v1572, %v1571
        %v1586 = vpack.c.b16 %v1574, %v1573
        %v1587 = vpack.c.b16 %v1576, %v1575
        %v1588 = vpack.c.b16 %v1578, %v1577
        %v1589 = vpack.c.b16 %v1580, %v1579
        %v1590 = vpack.c.b16 %v1582, %v1581
        %1599 = vmatprep.subr.bf16.mxu0 0
        %1600 = vmatpush1.bf16.msra.mxu0 %v1583
        %1601 = vmatprep.subr.bf16.mxu0 0
        %1602 = vmatpush1.bf16.msra.mxu0 %v1584
        %1603 = vmatprep.subr.bf16.mxu0 0
        %1604 = vmatpush1.bf16.msra.mxu0 %v1585
        %1605 = vmatprep.subr.bf16.mxu0 0
        %1606 = vmatpush1.bf16.msra.mxu0 %v1586
        %1607 = vmatprep.subr.bf16.mxu0 0
        %1608 = vmatpush1.bf16.msra.mxu0 %v1587
        %1609 = vmatprep.subr.bf16.mxu0 0
        %1610 = vmatpush1.bf16.msra.mxu0 %v1588
        %1611 = vmatprep.subr.bf16.mxu0 0
        %1612 = vmatpush1.bf16.msra.mxu0 %v1589
        %1613 = vmatprep.subr.bf16.mxu0 0
        %1614 = vmatpush1.bf16.msra.mxu0 %v1590
        %1615 = vmatprep.subr.bf16.mxu0 0
        %1616 = vmatpush1.bf16.msra.mxu0 0
        %1617 = vmatprep.subr.bf16.mxu0 0
        %1618 = vmatpush1.bf16.msra.mxu0 0
        %1619 = vmatprep.subr.bf16.mxu0 0
        %1620 = vmatpush1.bf16.msra.mxu0 0
        %1621 = vmatprep.subr.bf16.mxu0 0
        %1622 = vmatpush1.bf16.msra.mxu0 0
        %1623 = vmatprep.subr.bf16.mxu0 0
        %1624 = vmatpush1.bf16.msra.mxu0 0
        %1625 = vmatprep.subr.bf16.mxu0 0
        %1626 = vmatpush1.bf16.msra.mxu0 0
        %1627 = vmatprep.subr.bf16.mxu0 0
        %1628 = vmatpush1.bf16.msra.mxu0 0
        %1629 = vmatprep.subr.bf16.mxu0 0
        %1630 = vmatpush1.bf16.msra.mxu0 0
        %1631 = vmatprep.mubr.bf16.mxu0 0
        %1632 = vmatmul.mubr.bf16.gmra.mrb[0].mxu0 %v1507
        %v1633 = vpop.f32.mrb[0].mxu0
        %v1634 = vadd.f32 0.0, %v1633
        %v1635 = vpop.f32.mrb[0].mxu0
        %v1636 = vpop.f32.mrb[0].mxu0
        %v1637 = vadd.f32 0.0, %v1636
        %v1638 = vpop.f32.mrb[0].mxu0
        %1639 = vmatprep.mubr.bf16.mxu0 0
        %1640 = vmatmul.mubr.bf16.gmra.mrb[0].mxu0 %v1508
        %v1641 = vpop.f32.mrb[0].mxu0
        %v1642 = vadd.f32 0.0, %v1641
        %v1643 = vpop.f32.mrb[0].mxu0
        %v1644 = vpop.f32.mrb[0].mxu0
        %v1645 = vadd.f32 0.0, %v1644
        %v1646 = vpop.f32.mrb[0].mxu0
        %1647 = vmatprep.mubr.bf16.mxu0 0
        %1648 = vmatmul.mubr.bf16.gmra.mrb[0].mxu0 %v1509
        %v1649 = vpop.f32.mrb[0].mxu0
        %v1650 = vadd.f32 0.0, %v1649
        %v1651 = vpop.f32.mrb[0].mxu0
        %v1652 = vpop.f32.mrb[0].mxu0
        %v1653 = vadd.f32 0.0, %v1652
        %v1654 = vpop.f32.mrb[0].mxu0
        %1655 = vmatprep.mubr.bf16.mxu0 0
        %1656 = vmatmul.mubr.bf16.gmra.mrb[0].mxu0 %v1510
        %v1657 = vpop.f32.mrb[0].mxu0
        %v1658 = vadd.f32 0.0, %v1657
        %v1659 = vpop.f32.mrb[0].mxu0
        %v1660 = vpop.f32.mrb[0].mxu0
        %v1661 = vadd.f32 0.0, %v1660
        %v1662 = vpop.f32.mrb[0].mxu0
        %1663 = vmatprep.mubr.bf16.mxu0 0
        %1664 = vmatmul.mubr.bf16.gmra.mrb[0].mxu0 %v1511
        %v1665 = vpop.f32.mrb[0].mxu0
        %v1666 = vadd.f32 0.0, %v1665
        %v1667 = vpop.f32.mrb[0].mxu0
        %v1668 = vpop.f32.mrb[0].mxu0
        %v1669 = vadd.f32 0.0, %v1668
        %v1670 = vpop.f32.mrb[0].mxu0
        %1671 = vmatprep.mubr.bf16.mxu0 0
        %1672 = vmatmul.mubr.bf16.gmra.mrb[0].mxu0 %v1512
        %v1673 = vpop.f32.mrb[0].mxu0
        %v1674 = vadd.f32 0.0, %v1673
        %v1675 = vpop.f32.mrb[0].mxu0
        %v1676 = vpop.f32.mrb[0].mxu0
        %v1677 = vadd.f32 0.0, %v1676
        %v1678 = vpop.f32.mrb[0].mxu0
        %1679 = vmatprep.mubr.bf16.mxu0 0
        %1680 = vmatmul.mubr.bf16.gmra.mrb[0].mxu0 %v1513
        %v1681 = vpop.f32.mrb[0].mxu0
        %v1682 = vadd.f32 0.0, %v1681
        %v1683 = vpop.f32.mrb[0].mxu0
        %v1684 = vpop.f32.mrb[0].mxu0
        %v1685 = vadd.f32 0.0, %v1684
        %v1686 = vpop.f32.mrb[0].mxu0
        %1687 = vmatprep.mubr.bf16.mxu0 0
        %1688 = vmatmul.mubr.bf16.gmra.mrb[0].mxu0 %v1514
        %v1689 = vpop.f32.mrb[0].mxu0
        %v1690 = vadd.f32 0.0, %v1689
        %v1691 = vpop.f32.mrb[0].mxu0
        %v1692 = vpop.f32.mrb[0].mxu0
        %v1693 = vadd.f32 0.0, %v1692
        %v1694 = vpop.f32.mrb[0].mxu0
        %1695 = vdwg.mxu0
        %v1696 = vpack.c.bf16 %v1637, %v1634
        %v1697 = vpack.c.bf16 %v1645, %v1642
        %v1698 = vpack.c.bf16 %v1653, %v1650
        %v1699 = vpack.c.bf16 %v1661, %v1658
        %v1700 = vpack.c.bf16 %v1669, %v1666
        %v1701 = vpack.c.bf16 %v1677, %v1674
        %v1702 = vpack.c.bf16 %v1685, %v1682
        %v1703 = vpack.c.bf16 %v1693, %v1690
        %v1720 = vunpack.c.l.b16 %v1515
        %v1721 = vunpack.c.l.b16 %v1516
        %v1722 = vunpack.c.l.b16 %v1517
        %v1723 = vunpack.c.l.b16 %v1518
        %v1724 = vunpack.c.l.b16 %v1519
        %v1725 = vunpack.c.l.b16 %v1520
        %v1726 = vunpack.c.l.b16 %v1521
        %v1727 = vunpack.c.l.b16 %v1522
        %v1728 = vunpack.c.l.b16 %v1523
        %v1729 = vunpack.c.l.b16 %v1524
        %v1730 = vunpack.c.l.b16 %v1525
        %v1731 = vunpack.c.l.b16 %v1526
        %v1732 = vunpack.c.l.b16 %v1527
        %v1733 = vunpack.c.l.b16 %v1528
        %v1734 = vunpack.c.l.b16 %v1529
        %v1735 = vunpack.c.l.b16 %v1530
        %v1736 = vpack.c.b16 %v1721, %v1720
        %v1737 = vpack.c.b16 %v1723, %v1722
        %v1738 = vpack.c.b16 %v1725, %v1724
        %v1739 = vpack.c.b16 %v1727, %v1726
        %v1740 = vpack.c.b16 %v1729, %v1728
        %v1741 = vpack.c.b16 %v1731, %v1730
        %v1742 = vpack.c.b16 %v1733, %v1732
        %v1743 = vpack.c.b16 %v1735, %v1734
        %1752 = vmatprep.subr.bf16.mxu0 0
        %1753 = vmatpush1.bf16.msra.mxu0 %v1736
        %1754 = vmatprep.subr.bf16.mxu0 0
        %1755 = vmatpush1.bf16.msra.mxu0 %v1737
        %1756 = vmatprep.subr.bf16.mxu0 0
        %1757 = vmatpush1.bf16.msra.mxu0 %v1738
        %1758 = vmatprep.subr.bf16.mxu0 0
        %1759 = vmatpush1.bf16.msra.mxu0 %v1739
        %1760 = vmatprep.subr.bf16.mxu0 0
        %1761 = vmatpush1.bf16.msra.mxu0 %v1740
        %1762 = vmatprep.subr.bf16.mxu0 0
        %1763 = vmatpush1.bf16.msra.mxu0 %v1741
        %1764 = vmatprep.subr.bf16.mxu0 0
        %1765 = vmatpush1.bf16.msra.mxu0 %v1742
        %1766 = vmatprep.subr.bf16.mxu0 0
        %1767 = vmatpush1.bf16.msra.mxu0 %v1743
        %1768 = vmatprep.subr.bf16.mxu0 0
        %1769 = vmatpush1.bf16.msra.mxu0 0
        %1770 = vmatprep.subr.bf16.mxu0 0
        %1771 = vmatpush1.bf16.msra.mxu0 0
        %1772 = vmatprep.subr.bf16.mxu0 0
        %1773 = vmatpush1.bf16.msra.mxu0 0
        %1774 = vmatprep.subr.bf16.mxu0 0
        %1775 = vmatpush1.bf16.msra.mxu0 0
        %1776 = vmatprep.subr.bf16.mxu0 0
        %1777 = vmatpush1.bf16.msra.mxu0 0
        %1778 = vmatprep.subr.bf16.mxu0 0
        %1779 = vmatpush1.bf16.msra.mxu0 0
        %1780 = vmatprep.subr.bf16.mxu0 0
        %1781 = vmatpush1.bf16.msra.mxu0 0
        %1782 = vmatprep.subr.bf16.mxu0 0
        %1783 = vmatpush1.bf16.msra.mxu0 0
        %1784 = vmatprep.mubr.bf16.mxu0 0
        %1785 = vmatmul.mubr.bf16.gmra.mrb[0].mxu0 %v1696
        %v1786 = vpop.f32.mrb[0].mxu0
        %v1787 = vadd.f32 0.0, %v1786
        %v1788 = vpop.f32.mrb[0].mxu0
        %v1789 = vpop.f32.mrb[0].mxu0
        %v1790 = vadd.f32 0.0, %v1789
        %v1791 = vpop.f32.mrb[0].mxu0
        %1792 = vmatprep.mubr.bf16.mxu0 0
        %1793 = vmatmul.mubr.bf16.gmra.mrb[0].mxu0 %v1697
        %v1794 = vpop.f32.mrb[0].mxu0
        %v1795 = vadd.f32 0.0, %v1794
        %v1796 = vpop.f32.mrb[0].mxu0
        %v1797 = vpop.f32.mrb[0].mxu0
        %v1798 = vadd.f32 0.0, %v1797
        %v1799 = vpop.f32.mrb[0].mxu0
        %1800 = vmatprep.mubr.bf16.mxu0 0
        %1801 = vmatmul.mubr.bf16.gmra.mrb[0].mxu0 %v1698
        %v1802 = vpop.f32.mrb[0].mxu0
        %v1803 = vadd.f32 0.0, %v1802
        %v1804 = vpop.f32.mrb[0].mxu0
        %v1805 = vpop.f32.mrb[0].mxu0
        %v1806 = vadd.f32 0.0, %v1805
        %v1807 = vpop.f32.mrb[0].mxu0
        %1808 = vmatprep.mubr.bf16.mxu0 0
        %1809 = vmatmul.mubr.bf16.gmra.mrb[0].mxu0 %v1699
        %v1810 = vpop.f32.mrb[0].mxu0
        %v1811 = vadd.f32 0.0, %v1810
        %v1812 = vpop.f32.mrb[0].mxu0
        %v1813 = vpop.f32.mrb[0].mxu0
        %v1814 = vadd.f32 0.0, %v1813
        %v1815 = vpop.f32.mrb[0].mxu0
        %1816 = vmatprep.mubr.bf16.mxu0 0
        %1817 = vmatmul.mubr.bf16.gmra.mrb[0].mxu0 %v1700
        %v1818 = vpop.f32.mrb[0].mxu0
        %v1819 = vadd.f32 0.0, %v1818
        %v1820 = vpop.f32.mrb[0].mxu0
        %v1821 = vpop.f32.mrb[0].mxu0
        %v1822 = vadd.f32 0.0, %v1821
        %v1823 = vpop.f32.mrb[0].mxu0
        %1824 = vmatprep.mubr.bf16.mxu0 0
        %1825 = vmatmul.mubr.bf16.gmra.mrb[0].mxu0 %v1701
        %v1826 = vpop.f32.mrb[0].mxu0
        %v1827 = vadd.f32 0.0, %v1826
        %v1828 = vpop.f32.mrb[0].mxu0
        %v1829 = vpop.f32.mrb[0].mxu0
        %v1830 = vadd.f32 0.0, %v1829
        %v1831 = vpop.f32.mrb[0].mxu0
        %1832 = vmatprep.mubr.bf16.mxu0 0
        %1833 = vmatmul.mubr.bf16.gmra.mrb[0].mxu0 %v1702
        %v1834 = vpop.f32.mrb[0].mxu0
        %v1835 = vadd.f32 0.0, %v1834
        %v1836 = vpop.f32.mrb[0].mxu0
        %v1837 = vpop.f32.mrb[0].mxu0
        %v1838 = vadd.f32 0.0, %v1837
        %v1839 = vpop.f32.mrb[0].mxu0
        %1840 = vmatprep.mubr.bf16.mxu0 0
        %1841 = vmatmul.mubr.bf16.gmra.mrb[0].mxu0 %v1703
        %v1842 = vpop.f32.mrb[0].mxu0
        %v1843 = vadd.f32 0.0, %v1842
        %v1844 = vpop.f32.mrb[0].mxu0
        %v1845 = vpop.f32.mrb[0].mxu0
        %v1846 = vadd.f32 0.0, %v1845
        %v1847 = vpop.f32.mrb[0].mxu0
        %1848 = vdwg.mxu0
        %v1849 = vpack.c.bf16 %v1790, %v1787
        %v1850 = vpack.c.bf16 %v1798, %v1795
        %v1851 = vpack.c.bf16 %v1806, %v1803
        %v1852 = vpack.c.bf16 %v1814, %v1811
        %v1853 = vpack.c.bf16 %v1822, %v1819
        %v1854 = vpack.c.bf16 %v1830, %v1827
        %v1855 = vpack.c.bf16 %v1838, %v1835
        %v1856 = vpack.c.bf16 %v1846, %v1843
        %v1865 = vunpack.c.l.b16 %v1849
        %v1866 = vunpack.c.h.b16 %v1849
        %v1867 = vunpack.c.l.b16 %v1850
        %v1868 = vunpack.c.h.b16 %v1850
        %v1869 = vunpack.c.l.b16 %v1851
        %v1870 = vunpack.c.h.b16 %v1851
        %v1871 = vunpack.c.l.b16 %v1852
        %v1872 = vunpack.c.h.b16 %v1852
        %v1873 = vunpack.c.l.b16 %v1853
        %v1874 = vunpack.c.h.b16 %v1853
        %v1875 = vunpack.c.l.b16 %v1854
        %v1876 = vunpack.c.h.b16 %v1854
        %v1877 = vunpack.c.l.b16 %v1855
        %v1878 = vunpack.c.h.b16 %v1855
        %v1879 = vunpack.c.l.b16 %v1856
        %v1880 = vunpack.c.h.b16 %v1856
        %v1881 = vpack.c.b16 %v1865, %v1865
        %v1882 = vpack.c.b16 %v1866, %v1866
        %v1883 = vpack.c.b16 %v1867, %v1867
        %v1884 = vpack.c.b16 %v1868, %v1868
        %v1885 = vpack.c.b16 %v1869, %v1869
        %v1886 = vpack.c.b16 %v1870, %v1870
        %v1887 = vpack.c.b16 %v1871, %v1871
        %v1888 = vpack.c.b16 %v1872, %v1872
        %v1889 = vpack.c.b16 %v1873, %v1873
        %v1890 = vpack.c.b16 %v1874, %v1874
        %v1891 = vpack.c.b16 %v1875, %v1875
        %v1892 = vpack.c.b16 %v1876, %v1876
        %v1893 = vpack.c.b16 %v1877, %v1877
        %v1894 = vpack.c.b16 %v1878, %v1878
        %v1895 = vpack.c.b16 %v1879, %v1879
        %v1896 = vpack.c.b16 %v1880, %v1880
        %1913 = vst [vmem:[%s554] sm:$0xf] %v1881
        %1914 = vst [vmem:[%s554 + $0x4] sm:$0xf] %v1882
        %1915 = vst [vmem:[%s554 + $0x8] sm:$0xf] %v1883
        %1916 = vst [vmem:[%s554 + $0xc] sm:$0xf] %v1884
        %1917 = vst [vmem:[%s554 + $0x10] sm:$0xf] %v1885
        %1918 = vst [vmem:[%s554 + $0x14] sm:$0xf] %v1886
        %1919 = vst [vmem:[%s554 + $0x18] sm:$0xf] %v1887
        %1920 = vst [vmem:[%s554 + $0x1c] sm:$0xf] %v1888
        %1921 = vst [vmem:[%s554 + $0x20] sm:$0xf] %v1889
        %1922 = vst [vmem:[%s554 + $0x24] sm:$0xf] %v1890
        %1923 = vst [vmem:[%s554 + $0x28] sm:$0xf] %v1891
        %1924 = vst [vmem:[%s554 + $0x2c] sm:$0xf] %v1892
        %1925 = vst [vmem:[%s554 + $0x30] sm:$0xf] %v1893
        %1926 = vst [vmem:[%s554 + $0x34] sm:$0xf] %v1894
        %1927 = vst [vmem:[%s554 + $0x38] sm:$0xf] %v1895
        %1928 = vst [vmem:[%s554 + $0x3c] sm:$0xf] %v1896
        %s1929 = sadd.s32 %s1531, 1
        %s1930 = smul.u32 %s1929, 16
        %s1931 = smul.addr %s1930, 4
        %s1932 = scalar_lea.vmem %s9, %s1931
        %v1933 = vld [vmem:[%s1932] sm:$0xf]
        %v1934 = vld [vmem:[%s1932 + $0x4] sm:$0xf]
        %v1935 = vld [vmem:[%s1932 + $0x8] sm:$0xf]
        %v1936 = vld [vmem:[%s1932 + $0xc] sm:$0xf]
        %v1937 = vld [vmem:[%s1932 + $0x10] sm:$0xf]
        %v1938 = vld [vmem:[%s1932 + $0x14] sm:$0xf]
        %v1939 = vld [vmem:[%s1932 + $0x18] sm:$0xf]
        %v1940 = vld [vmem:[%s1932 + $0x1c] sm:$0xf]
        %v1941 = vld [vmem:[%s1932 + $0x20] sm:$0xf]
        %v1942 = vld [vmem:[%s1932 + $0x24] sm:$0xf]
        %v1943 = vld [vmem:[%s1932 + $0x28] sm:$0xf]
        %v1944 = vld [vmem:[%s1932 + $0x2c] sm:$0xf]
        %v1945 = vld [vmem:[%s1932 + $0x30] sm:$0xf]
        %v1946 = vld [vmem:[%s1932 + $0x34] sm:$0xf]
        %v1947 = vld [vmem:[%s1932 + $0x38] sm:$0xf]
        %v1948 = vld [vmem:[%s1932 + $0x3c] sm:$0xf]
        %v1965 = vunpack.c.l.b16 %v1933
        %v1966 = vunpack.c.l.b16 %v1934
        %v1967 = vunpack.c.l.b16 %v1935
        %v1968 = vunpack.c.l.b16 %v1936
        %v1969 = vunpack.c.l.b16 %v1937
        %v1970 = vunpack.c.l.b16 %v1938
        %v1971 = vunpack.c.l.b16 %v1939
        %v1972 = vunpack.c.l.b16 %v1940
        %v1973 = vunpack.c.l.b16 %v1941
        %v1974 = vunpack.c.l.b16 %v1942
        %v1975 = vunpack.c.l.b16 %v1943
        %v1976 = vunpack.c.l.b16 %v1944
        %v1977 = vunpack.c.l.b16 %v1945
        %v1978 = vunpack.c.l.b16 %v1946
        %v1979 = vunpack.c.l.b16 %v1947
        %v1980 = vunpack.c.l.b16 %v1948
        %v1981 = vpack.c.b16 %v1966, %v1965
        %v1982 = vpack.c.b16 %v1968, %v1967
        %v1983 = vpack.c.b16 %v1970, %v1969
        %v1984 = vpack.c.b16 %v1972, %v1971
        %v1985 = vpack.c.b16 %v1974, %v1973
        %v1986 = vpack.c.b16 %v1976, %v1975
        %v1987 = vpack.c.b16 %v1978, %v1977
        %v1988 = vpack.c.b16 %v1980, %v1979
        %1997 = vmatprep.subr.bf16.mxu0 0
        %1998 = vmatpush1.bf16.msra.mxu0 %v1981
        %1999 = vmatprep.subr.bf16.mxu0 0
        %2000 = vmatpush1.bf16.msra.mxu0 %v1982
        %2001 = vmatprep.subr.bf16.mxu0 0
        %2002 = vmatpush1.bf16.msra.mxu0 %v1983
        %2003 = vmatprep.subr.bf16.mxu0 0
        %2004 = vmatpush1.bf16.msra.mxu0 %v1984
        %2005 = vmatprep.subr.bf16.mxu0 0
        %2006 = vmatpush1.bf16.msra.mxu0 %v1985
        %2007 = vmatprep.subr.bf16.mxu0 0
        %2008 = vmatpush1.bf16.msra.mxu0 %v1986
        %2009 = vmatprep.subr.bf16.mxu0 0
        %2010 = vmatpush1.bf16.msra.mxu0 %v1987
        %2011 = vmatprep.subr.bf16.mxu0 0
        %2012 = vmatpush1.bf16.msra.mxu0 %v1988
        %2013 = vmatprep.subr.bf16.mxu0 0
        %2014 = vmatpush1.bf16.msra.mxu0 0
        %2015 = vmatprep.subr.bf16.mxu0 0
        %2016 = vmatpush1.bf16.msra.mxu0 0
        %2017 = vmatprep.subr.bf16.mxu0 0
        %2018 = vmatpush1.bf16.msra.mxu0 0
        %2019 = vmatprep.subr.bf16.mxu0 0
        %2020 = vmatpush1.bf16.msra.mxu0 0
        %2021 = vmatprep.subr.bf16.mxu0 0
        %2022 = vmatpush1.bf16.msra.mxu0 0
        %2023 = vmatprep.subr.bf16.mxu0 0
        %2024 = vmatpush1.bf16.msra.mxu0 0
        %2025 = vmatprep.subr.bf16.mxu0 0
        %2026 = vmatpush1.bf16.msra.mxu0 0
        %2027 = vmatprep.subr.bf16.mxu0 0
        %2028 = vmatpush1.bf16.msra.mxu0 0
        %2029 = vmatprep.mubr.bf16.mxu0 0
        %2030 = vmatmul.mubr.bf16.gmra.mrb[0].mxu0 %v1507
        %v2031 = vpop.f32.mrb[0].mxu0
        %v2032 = vadd.f32 0.0, %v2031
        %v2033 = vpop.f32.mrb[0].mxu0
        %v2034 = vpop.f32.mrb[0].mxu0
        %v2035 = vadd.f32 0.0, %v2034
        %v2036 = vpop.f32.mrb[0].mxu0
        %2037 = vmatprep.mubr.bf16.mxu0 0
        %2038 = vmatmul.mubr.bf16.gmra.mrb[0].mxu0 %v1508
        %v2039 = vpop.f32.mrb[0].mxu0
        %v2040 = vadd.f32 0.0, %v2039
        %v2041 = vpop.f32.mrb[0].mxu0
        %v2042 = vpop.f32.mrb[0].mxu0
        %v2043 = vadd.f32 0.0, %v2042
        %v2044 = vpop.f32.mrb[0].mxu0
        %2045 = vmatprep.mubr.bf16.mxu0 0
        %2046 = vmatmul.mubr.bf16.gmra.mrb[0].mxu0 %v1509
        %v2047 = vpop.f32.mrb[0].mxu0
        %v2048 = vadd.f32 0.0, %v2047
        %v2049 = vpop.f32.mrb[0].mxu0
        %v2050 = vpop.f32.mrb[0].mxu0
        %v2051 = vadd.f32 0.0, %v2050
        %v2052 = vpop.f32.mrb[0].mxu0
        %2053 = vmatprep.mubr.bf16.mxu0 0
        %2054 = vmatmul.mubr.bf16.gmra.mrb[0].mxu0 %v1510
        %v2055 = vpop.f32.mrb[0].mxu0
        %v2056 = vadd.f32 0.0, %v2055
        %v2057 = vpop.f32.mrb[0].mxu0
        %v2058 = vpop.f32.mrb[0].mxu0
        %v2059 = vadd.f32 0.0, %v2058
        %v2060 = vpop.f32.mrb[0].mxu0
        %2061 = vmatprep.mubr.bf16.mxu0 0
        %2062 = vmatmul.mubr.bf16.gmra.mrb[0].mxu0 %v1511
        %v2063 = vpop.f32.mrb[0].mxu0
        %v2064 = vadd.f32 0.0, %v2063
        %v2065 = vpop.f32.mrb[0].mxu0
        %v2066 = vpop.f32.mrb[0].mxu0
        %v2067 = vadd.f32 0.0, %v2066
        %v2068 = vpop.f32.mrb[0].mxu0
        %2069 = vmatprep.mubr.bf16.mxu0 0
        %2070 = vmatmul.mubr.bf16.gmra.mrb[0].mxu0 %v1512
        %v2071 = vpop.f32.mrb[0].mxu0
        %v2072 = vadd.f32 0.0, %v2071
        %v2073 = vpop.f32.mrb[0].mxu0
        %v2074 = vpop.f32.mrb[0].mxu0
        %v2075 = vadd.f32 0.0, %v2074
        %v2076 = vpop.f32.mrb[0].mxu0
        %2077 = vmatprep.mubr.bf16.mxu0 0
        %2078 = vmatmul.mubr.bf16.gmra.mrb[0].mxu0 %v1513
        %v2079 = vpop.f32.mrb[0].mxu0
        %v2080 = vadd.f32 0.0, %v2079
        %v2081 = vpop.f32.mrb[0].mxu0
        %v2082 = vpop.f32.mrb[0].mxu0
        %v2083 = vadd.f32 0.0, %v2082
        %v2084 = vpop.f32.mrb[0].mxu0
        %2085 = vmatprep.mubr.bf16.mxu0 0
        %2086 = vmatmul.mubr.bf16.gmra.mrb[0].mxu0 %v1514
        %v2087 = vpop.f32.mrb[0].mxu0
        %v2088 = vadd.f32 0.0, %v2087
        %v2089 = vpop.f32.mrb[0].mxu0
        %v2090 = vpop.f32.mrb[0].mxu0
        %v2091 = vadd.f32 0.0, %v2090
        %v2092 = vpop.f32.mrb[0].mxu0
        %2093 = vdwg.mxu0
        %v2094 = vpack.c.bf16 %v2035, %v2032
        %v2095 = vpack.c.bf16 %v2043, %v2040
        %v2096 = vpack.c.bf16 %v2051, %v2048
        %v2097 = vpack.c.bf16 %v2059, %v2056
        %v2098 = vpack.c.bf16 %v2067, %v2064
        %v2099 = vpack.c.bf16 %v2075, %v2072
        %v2100 = vpack.c.bf16 %v2083, %v2080
        %v2101 = vpack.c.bf16 %v2091, %v2088
        %2102 = vmatprep.subr.bf16.mxu0 0
        %2103 = vmatpush1.bf16.msra.mxu0 %v1736
        %2104 = vmatprep.subr.bf16.mxu0 0
        %2105 = vmatpush1.bf16.msra.mxu0 %v1737
        %2106 = vmatprep.subr.bf16.mxu0 0
        %2107 = vmatpush1.bf16.msra.mxu0 %v1738
        %2108 = vmatprep.subr.bf16.mxu0 0
        %2109 = vmatpush1.bf16.msra.mxu0 %v1739
        %2110 = vmatprep.subr.bf16.mxu0 0
        %2111 = vmatpush1.bf16.msra.mxu0 %v1740
        %2112 = vmatprep.subr.bf16.mxu0 0
        %2113 = vmatpush1.bf16.msra.mxu0 %v1741
        %2114 = vmatprep.subr.bf16.mxu0 0
        %2115 = vmatpush1.bf16.msra.mxu0 %v1742
        %2116 = vmatprep.subr.bf16.mxu0 0
        %2117 = vmatpush1.bf16.msra.mxu0 %v1743
        %2118 = vmatprep.subr.bf16.mxu0 0
        %2119 = vmatpush1.bf16.msra.mxu0 0
        %2120 = vmatprep.subr.bf16.mxu0 0
        %2121 = vmatpush1.bf16.msra.mxu0 0
        %2122 = vmatprep.subr.bf16.mxu0 0
        %2123 = vmatpush1.bf16.msra.mxu0 0
        %2124 = vmatprep.subr.bf16.mxu0 0
        %2125 = vmatpush1.bf16.msra.mxu0 0
        %2126 = vmatprep.subr.bf16.mxu0 0
        %2127 = vmatpush1.bf16.msra.mxu0 0
        %2128 = vmatprep.subr.bf16.mxu0 0
        %2129 = vmatpush1.bf16.msra.mxu0 0
        %2130 = vmatprep.subr.bf16.mxu0 0
        %2131 = vmatpush1.bf16.msra.mxu0 0
        %2132 = vmatprep.subr.bf16.mxu0 0
        %2133 = vmatpush1.bf16.msra.mxu0 0
        %2134 = vmatprep.mubr.bf16.mxu0 0
        %2135 = vmatmul.mubr.bf16.gmra.mrb[0].mxu0 %v2094
        %v2136 = vpop.f32.mrb[0].mxu0
        %v2137 = vadd.f32 0.0, %v2136
        %v2138 = vpop.f32.mrb[0].mxu0
        %v2139 = vpop.f32.mrb[0].mxu0
        %v2140 = vadd.f32 0.0, %v2139
        %v2141 = vpop.f32.mrb[0].mxu0
        %2142 = vmatprep.mubr.bf16.mxu0 0
        %2143 = vmatmul.mubr.bf16.gmra.mrb[0].mxu0 %v2095
        %v2144 = vpop.f32.mrb[0].mxu0
        %v2145 = vadd.f32 0.0, %v2144
        %v2146 = vpop.f32.mrb[0].mxu0
        %v2147 = vpop.f32.mrb[0].mxu0
        %v2148 = vadd.f32 0.0, %v2147
        %v2149 = vpop.f32.mrb[0].mxu0
        %2150 = vmatprep.mubr.bf16.mxu0 0
        %2151 = vmatmul.mubr.bf16.gmra.mrb[0].mxu0 %v2096
        %v2152 = vpop.f32.mrb[0].mxu0
        %v2153 = vadd.f32 0.0, %v2152
        %v2154 = vpop.f32.mrb[0].mxu0
        %v2155 = vpop.f32.mrb[0].mxu0
        %v2156 = vadd.f32 0.0, %v2155
        %v2157 = vpop.f32.mrb[0].mxu0
        %2158 = vmatprep.mubr.bf16.mxu0 0
        %2159 = vmatmul.mubr.bf16.gmra.mrb[0].mxu0 %v2097
        %v2160 = vpop.f32.mrb[0].mxu0
        %v2161 = vadd.f32 0.0, %v2160
        %v2162 = vpop.f32.mrb[0].mxu0
        %v2163 = vpop.f32.mrb[0].mxu0
        %v2164 = vadd.f32 0.0, %v2163
        %v2165 = vpop.f32.mrb[0].mxu0
        %2166 = vmatprep.mubr.bf16.mxu0 0
        %2167 = vmatmul.mubr.bf16.gmra.mrb[0].mxu0 %v2098
        %v2168 = vpop.f32.mrb[0].mxu0
        %v2169 = vadd.f32 0.0, %v2168
        %v2170 = vpop.f32.mrb[0].mxu0
        %v2171 = vpop.f32.mrb[0].mxu0
        %v2172 = vadd.f32 0.0, %v2171
        %v2173 = vpop.f32.mrb[0].mxu0
        %2174 = vmatprep.mubr.bf16.mxu0 0
        %2175 = vmatmul.mubr.bf16.gmra.mrb[0].mxu0 %v2099
        %v2176 = vpop.f32.mrb[0].mxu0
        %v2177 = vadd.f32 0.0, %v2176
        %v2178 = vpop.f32.mrb[0].mxu0
        %v2179 = vpop.f32.mrb[0].mxu0
        %v2180 = vadd.f32 0.0, %v2179
        %v2181 = vpop.f32.mrb[0].mxu0
        %2182 = vmatprep.mubr.bf16.mxu0 0
        %2183 = vmatmul.mubr.bf16.gmra.mrb[0].mxu0 %v2100
        %v2184 = vpop.f32.mrb[0].mxu0
        %v2185 = vadd.f32 0.0, %v2184
        %v2186 = vpop.f32.mrb[0].mxu0
        %v2187 = vpop.f32.mrb[0].mxu0
        %v2188 = vadd.f32 0.0, %v2187
        %v2189 = vpop.f32.mrb[0].mxu0
        %2190 = vmatprep.mubr.bf16.mxu0 0
        %2191 = vmatmul.mubr.bf16.gmra.mrb[0].mxu0 %v2101
        %v2192 = vpop.f32.mrb[0].mxu0
        %v2193 = vadd.f32 0.0, %v2192
        %v2194 = vpop.f32.mrb[0].mxu0
        %v2195 = vpop.f32.mrb[0].mxu0
        %v2196 = vadd.f32 0.0, %v2195
        %v2197 = vpop.f32.mrb[0].mxu0
        %2198 = vdwg.mxu0
        %v2199 = vpack.c.bf16 %v2140, %v2137
        %v2200 = vpack.c.bf16 %v2148, %v2145
        %v2201 = vpack.c.bf16 %v2156, %v2153
        %v2202 = vpack.c.bf16 %v2164, %v2161
        %v2203 = vpack.c.bf16 %v2172, %v2169
        %v2204 = vpack.c.bf16 %v2180, %v2177
        %v2205 = vpack.c.bf16 %v2188, %v2185
        %v2206 = vpack.c.bf16 %v2196, %v2193
        %v2215 = vunpack.c.l.b16 %v2199
        %v2216 = vunpack.c.h.b16 %v2199
        %v2217 = vunpack.c.l.b16 %v2200
        %v2218 = vunpack.c.h.b16 %v2200
        %v2219 = vunpack.c.l.b16 %v2201
        %v2220 = vunpack.c.h.b16 %v2201
        %v2221 = vunpack.c.l.b16 %v2202
        %v2222 = vunpack.c.h.b16 %v2202
        %v2223 = vunpack.c.l.b16 %v2203
        %v2224 = vunpack.c.h.b16 %v2203
        %v2225 = vunpack.c.l.b16 %v2204
        %v2226 = vunpack.c.h.b16 %v2204
        %v2227 = vunpack.c.l.b16 %v2205
        %v2228 = vunpack.c.h.b16 %v2205
        %v2229 = vunpack.c.l.b16 %v2206
        %v2230 = vunpack.c.h.b16 %v2206
        %v2231 = vpack.c.b16 %v2215, %v2215
        %v2232 = vpack.c.b16 %v2216, %v2216
        %v2233 = vpack.c.b16 %v2217, %v2217
        %v2234 = vpack.c.b16 %v2218, %v2218
        %v2235 = vpack.c.b16 %v2219, %v2219
        %v2236 = vpack.c.b16 %v2220, %v2220
        %v2237 = vpack.c.b16 %v2221, %v2221
        %v2238 = vpack.c.b16 %v2222, %v2222
        %v2239 = vpack.c.b16 %v2223, %v2223
        %v2240 = vpack.c.b16 %v2224, %v2224
        %v2241 = vpack.c.b16 %v2225, %v2225
        %v2242 = vpack.c.b16 %v2226, %v2226
        %v2243 = vpack.c.b16 %v2227, %v2227
        %v2244 = vpack.c.b16 %v2228, %v2228
        %v2245 = vpack.c.b16 %v2229, %v2229
        %v2246 = vpack.c.b16 %v2230, %v2230
        %s2263 = scalar_lea.vmem %s554, 64 [#allocation13]
        %2264 = vst [vmem:[%s2263] sm:$0xf] %v2231
        %2265 = vst [vmem:[%s2263 + $0x4] sm:$0xf] %v2232
        %2266 = vst [vmem:[%s2263 + $0x8] sm:$0xf] %v2233
        %2267 = vst [vmem:[%s2263 + $0xc] sm:$0xf] %v2234
        %2268 = vst [vmem:[%s2263 + $0x10] sm:$0xf] %v2235
        %2269 = vst [vmem:[%s2263 + $0x14] sm:$0xf] %v2236
        %2270 = vst [vmem:[%s2263 + $0x18] sm:$0xf] %v2237
        %2271 = vst [vmem:[%s2263 + $0x1c] sm:$0xf] %v2238
        %2272 = vst [vmem:[%s2263 + $0x20] sm:$0xf] %v2239
        %2273 = vst [vmem:[%s2263 + $0x24] sm:$0xf] %v2240
        %2274 = vst [vmem:[%s2263 + $0x28] sm:$0xf] %v2241
        %2275 = vst [vmem:[%s2263 + $0x2c] sm:$0xf] %v2242
        %2276 = vst [vmem:[%s2263 + $0x30] sm:$0xf] %v2243
        %2277 = vst [vmem:[%s2263 + $0x34] sm:$0xf] %v2244
        %2278 = vst [vmem:[%s2263 + $0x38] sm:$0xf] %v2245
        %2279 = vst [vmem:[%s2263 + $0x3c] sm:$0xf] %v2246
        %s2280 = sadd.s32 %s1531, 2
        %s2281 = smul.u32 %s2280, 16
        %s2282 = smul.addr %s2281, 4
        %s2283 = scalar_lea.vmem %s9, %s2282
        %v2284 = vld [vmem:[%s2283] sm:$0xf]
        %v2285 = vld [vmem:[%s2283 + $0x4] sm:$0xf]
        %v2286 = vld [vmem:[%s2283 + $0x8] sm:$0xf]
        %v2287 = vld [vmem:[%s2283 + $0xc] sm:$0xf]
        %v2288 = vld [vmem:[%s2283 + $0x10] sm:$0xf]
        %v2289 = vld [vmem:[%s2283 + $0x14] sm:$0xf]
        %v2290 = vld [vmem:[%s2283 + $0x18] sm:$0xf]
        %v2291 = vld [vmem:[%s2283 + $0x1c] sm:$0xf]
        %v2292 = vld [vmem:[%s2283 + $0x20] sm:$0xf]
        %v2293 = vld [vmem:[%s2283 + $0x24] sm:$0xf]
        %v2294 = vld [vmem:[%s2283 + $0x28] sm:$0xf]
        %v2295 = vld [vmem:[%s2283 + $0x2c] sm:$0xf]
        %v2296 = vld [vmem:[%s2283 + $0x30] sm:$0xf]
        %v2297 = vld [vmem:[%s2283 + $0x34] sm:$0xf]
        %v2298 = vld [vmem:[%s2283 + $0x38] sm:$0xf]
        %v2299 = vld [vmem:[%s2283 + $0x3c] sm:$0xf]
        %v2316 = vunpack.c.l.b16 %v2284
        %v2317 = vunpack.c.l.b16 %v2285
        %v2318 = vunpack.c.l.b16 %v2286
        %v2319 = vunpack.c.l.b16 %v2287
        %v2320 = vunpack.c.l.b16 %v2288
        %v2321 = vunpack.c.l.b16 %v2289
        %v2322 = vunpack.c.l.b16 %v2290
        %v2323 = vunpack.c.l.b16 %v2291
        %v2324 = vunpack.c.l.b16 %v2292
        %v2325 = vunpack.c.l.b16 %v2293
        %v2326 = vunpack.c.l.b16 %v2294
        %v2327 = vunpack.c.l.b16 %v2295
        %v2328 = vunpack.c.l.b16 %v2296
        %v2329 = vunpack.c.l.b16 %v2297
        %v2330 = vunpack.c.l.b16 %v2298
        %v2331 = vunpack.c.l.b16 %v2299
        %v2332 = vpack.c.b16 %v2317, %v2316
        %v2333 = vpack.c.b16 %v2319, %v2318
        %v2334 = vpack.c.b16 %v2321, %v2320
        %v2335 = vpack.c.b16 %v2323, %v2322
        %v2336 = vpack.c.b16 %v2325, %v2324
        %v2337 = vpack.c.b16 %v2327, %v2326
        %v2338 = vpack.c.b16 %v2329, %v2328
        %v2339 = vpack.c.b16 %v2331, %v2330
        %2348 = vmatprep.subr.bf16.mxu0 0
        %2349 = vmatpush1.bf16.msra.mxu0 %v2332
        %2350 = vmatprep.subr.bf16.mxu0 0
        %2351 = vmatpush1.bf16.msra.mxu0 %v2333
        %2352 = vmatprep.subr.bf16.mxu0 0
        %2353 = vmatpush1.bf16.msra.mxu0 %v2334
        %2354 = vmatprep.subr.bf16.mxu0 0
        %2355 = vmatpush1.bf16.msra.mxu0 %v2335
        %2356 = vmatprep.subr.bf16.mxu0 0
        %2357 = vmatpush1.bf16.msra.mxu0 %v2336
        %2358 = vmatprep.subr.bf16.mxu0 0
        %2359 = vmatpush1.bf16.msra.mxu0 %v2337
        %2360 = vmatprep.subr.bf16.mxu0 0
        %2361 = vmatpush1.bf16.msra.mxu0 %v2338
        %2362 = vmatprep.subr.bf16.mxu0 0
        %2363 = vmatpush1.bf16.msra.mxu0 %v2339
        %2364 = vmatprep.subr.bf16.mxu0 0
        %2365 = vmatpush1.bf16.msra.mxu0 0
        %2366 = vmatprep.subr.bf16.mxu0 0
        %2367 = vmatpush1.bf16.msra.mxu0 0
        %2368 = vmatprep.subr.bf16.mxu0 0
        %2369 = vmatpush1.bf16.msra.mxu0 0
        %2370 = vmatprep.subr.bf16.mxu0 0
        %2371 = vmatpush1.bf16.msra.mxu0 0
        %2372 = vmatprep.subr.bf16.mxu0 0
        %2373 = vmatpush1.bf16.msra.mxu0 0
        %2374 = vmatprep.subr.bf16.mxu0 0
        %2375 = vmatpush1.bf16.msra.mxu0 0
        %2376 = vmatprep.subr.bf16.mxu0 0
        %2377 = vmatpush1.bf16.msra.mxu0 0
        %2378 = vmatprep.subr.bf16.mxu0 0
        %2379 = vmatpush1.bf16.msra.mxu0 0
        %2380 = vmatprep.mubr.bf16.mxu0 0
        %2381 = vmatmul.mubr.bf16.gmra.mrb[0].mxu0 %v1507
        %v2382 = vpop.f32.mrb[0].mxu0
        %v2383 = vadd.f32 0.0, %v2382
        %v2384 = vpop.f32.mrb[0].mxu0
        %v2385 = vpop.f32.mrb[0].mxu0
        %v2386 = vadd.f32 0.0, %v2385
        %v2387 = vpop.f32.mrb[0].mxu0
        %2388 = vmatprep.mubr.bf16.mxu0 0
        %2389 = vmatmul.mubr.bf16.gmra.mrb[0].mxu0 %v1508
        %v2390 = vpop.f32.mrb[0].mxu0
        %v2391 = vadd.f32 0.0, %v2390
        %v2392 = vpop.f32.mrb[0].mxu0
        %v2393 = vpop.f32.mrb[0].mxu0
        %v2394 = vadd.f32 0.0, %v2393
        %v2395 = vpop.f32.mrb[0].mxu0
        %2396 = vmatprep.mubr.bf16.mxu0 0
        %2397 = vmatmul.mubr.bf16.gmra.mrb[0].mxu0 %v1509
        %v2398 = vpop.f32.mrb[0].mxu0
        %v2399 = vadd.f32 0.0, %v2398
        %v2400 = vpop.f32.mrb[0].mxu0
        %v2401 = vpop.f32.mrb[0].mxu0
        %v2402 = vadd.f32 0.0, %v2401
        %v2403 = vpop.f32.mrb[0].mxu0
        %2404 = vmatprep.mubr.bf16.mxu0 0
        %2405 = vmatmul.mubr.bf16.gmra.mrb[0].mxu0 %v1510
        %v2406 = vpop.f32.mrb[0].mxu0
        %v2407 = vadd.f32 0.0, %v2406
        %v2408 = vpop.f32.mrb[0].mxu0
        %v2409 = vpop.f32.mrb[0].mxu0
        %v2410 = vadd.f32 0.0, %v2409
        %v2411 = vpop.f32.mrb[0].mxu0
        %2412 = vmatprep.mubr.bf16.mxu0 0
        %2413 = vmatmul.mubr.bf16.gmra.mrb[0].mxu0 %v1511
        %v2414 = vpop.f32.mrb[0].mxu0
        %v2415 = vadd.f32 0.0, %v2414
        %v2416 = vpop.f32.mrb[0].mxu0
        %v2417 = vpop.f32.mrb[0].mxu0
        %v2418 = vadd.f32 0.0, %v2417
        %v2419 = vpop.f32.mrb[0].mxu0
        %2420 = vmatprep.mubr.bf16.mxu0 0
        %2421 = vmatmul.mubr.bf16.gmra.mrb[0].mxu0 %v1512
        %v2422 = vpop.f32.mrb[0].mxu0
        %v2423 = vadd.f32 0.0, %v2422
        %v2424 = vpop.f32.mrb[0].mxu0
        %v2425 = vpop.f32.mrb[0].mxu0
        %v2426 = vadd.f32 0.0, %v2425
        %v2427 = vpop.f32.mrb[0].mxu0
        %2428 = vmatprep.mubr.bf16.mxu0 0
        %2429 = vmatmul.mubr.bf16.gmra.mrb[0].mxu0 %v1513
        %v2430 = vpop.f32.mrb[0].mxu0
        %v2431 = vadd.f32 0.0, %v2430
        %v2432 = vpop.f32.mrb[0].mxu0
        %v2433 = vpop.f32.mrb[0].mxu0
        %v2434 = vadd.f32 0.0, %v2433
        %v2435 = vpop.f32.mrb[0].mxu0
        %2436 = vmatprep.mubr.bf16.mxu0 0
        %2437 = vmatmul.mubr.bf16.gmra.mrb[0].mxu0 %v1514
        %v2438 = vpop.f32.mrb[0].mxu0
        %v2439 = vadd.f32 0.0, %v2438
        %v2440 = vpop.f32.mrb[0].mxu0
        %v2441 = vpop.f32.mrb[0].mxu0
        %v2442 = vadd.f32 0.0, %v2441
        %v2443 = vpop.f32.mrb[0].mxu0
        %2444 = vdwg.mxu0
        %v2445 = vpack.c.bf16 %v2386, %v2383
        %v2446 = vpack.c.bf16 %v2394, %v2391
        %v2447 = vpack.c.bf16 %v2402, %v2399
        %v2448 = vpack.c.bf16 %v2410, %v2407
        %v2449 = vpack.c.bf16 %v2418, %v2415
        %v2450 = vpack.c.bf16 %v2426, %v2423
        %v2451 = vpack.c.bf16 %v2434, %v2431
        %v2452 = vpack.c.bf16 %v2442, %v2439
        %2453 = vmatprep.subr.bf16.mxu0 0
        %2454 = vmatpush1.bf16.msra.mxu0 %v1736
        %2455 = vmatprep.subr.bf16.mxu0 0
        %2456 = vmatpush1.bf16.msra.mxu0 %v1737
        %2457 = vmatprep.subr.bf16.mxu0 0
        %2458 = vmatpush1.bf16.msra.mxu0 %v1738
        %2459 = vmatprep.subr.bf16.mxu0 0
        %2460 = vmatpush1.bf16.msra.mxu0 %v1739
        %2461 = vmatprep.subr.bf16.mxu0 0
        %2462 = vmatpush1.bf16.msra.mxu0 %v1740
        %2463 = vmatprep.subr.bf16.mxu0 0
        %2464 = vmatpush1.bf16.msra.mxu0 %v1741
        %2465 = vmatprep.subr.bf16.mxu0 0
        %2466 = vmatpush1.bf16.msra.mxu0 %v1742
        %2467 = vmatprep.subr.bf16.mxu0 0
        %2468 = vmatpush1.bf16.msra.mxu0 %v1743
        %2469 = vmatprep.subr.bf16.mxu0 0
        %2470 = vmatpush1.bf16.msra.mxu0 0
        %2471 = vmatprep.subr.bf16.mxu0 0
        %2472 = vmatpush1.bf16.msra.mxu0 0
        %2473 = vmatprep.subr.bf16.mxu0 0
        %2474 = vmatpush1.bf16.msra.mxu0 0
        %2475 = vmatprep.subr.bf16.mxu0 0
        %2476 = vmatpush1.bf16.msra.mxu0 0
        %2477 = vmatprep.subr.bf16.mxu0 0
        %2478 = vmatpush1.bf16.msra.mxu0 0
        %2479 = vmatprep.subr.bf16.mxu0 0
        %2480 = vmatpush1.bf16.msra.mxu0 0
        %2481 = vmatprep.subr.bf16.mxu0 0
        %2482 = vmatpush1.bf16.msra.mxu0 0
        %2483 = vmatprep.subr.bf16.mxu0 0
        %2484 = vmatpush1.bf16.msra.mxu0 0
        %2485 = vmatprep.mubr.bf16.mxu0 0
        %2486 = vmatmul.mubr.bf16.gmra.mrb[0].mxu0 %v2445
        %v2487 = vpop.f32.mrb[0].mxu0
        %v2488 = vadd.f32 0.0, %v2487
        %v2489 = vpop.f32.mrb[0].mxu0
        %v2490 = vpop.f32.mrb[0].mxu0
        %v2491 = vadd.f32 0.0, %v2490
        %v2492 = vpop.f32.mrb[0].mxu0
        %2493 = vmatprep.mubr.bf16.mxu0 0
        %2494 = vmatmul.mubr.bf16.gmra.mrb[0].mxu0 %v2446
        %v2495 = vpop.f32.mrb[0].mxu0
        %v2496 = vadd.f32 0.0, %v2495
        %v2497 = vpop.f32.mrb[0].mxu0
        %v2498 = vpop.f32.mrb[0].mxu0
        %v2499 = vadd.f32 0.0, %v2498
        %v2500 = vpop.f32.mrb[0].mxu0
        %2501 = vmatprep.mubr.bf16.mxu0 0
        %2502 = vmatmul.mubr.bf16.gmra.mrb[0].mxu0 %v2447
        %v2503 = vpop.f32.mrb[0].mxu0
        %v2504 = vadd.f32 0.0, %v2503
        %v2505 = vpop.f32.mrb[0].mxu0
        %v2506 = vpop.f32.mrb[0].mxu0
        %v2507 = vadd.f32 0.0, %v2506
        %v2508 = vpop.f32.mrb[0].mxu0
        %2509 = vmatprep.mubr.bf16.mxu0 0
        %2510 = vmatmul.mubr.bf16.gmra.mrb[0].mxu0 %v2448
        %v2511 = vpop.f32.mrb[0].mxu0
        %v2512 = vadd.f32 0.0, %v2511
        %v2513 = vpop.f32.mrb[0].mxu0
        %v2514 = vpop.f32.mrb[0].mxu0
        %v2515 = vadd.f32 0.0, %v2514
        %v2516 = vpop.f32.mrb[0].mxu0
        %2517 = vmatprep.mubr.bf16.mxu0 0
        %2518 = vmatmul.mubr.bf16.gmra.mrb[0].mxu0 %v2449
        %v2519 = vpop.f32.mrb[0].mxu0
        %v2520 = vadd.f32 0.0, %v2519
        %v2521 = vpop.f32.mrb[0].mxu0
        %v2522 = vpop.f32.mrb[0].mxu0
        %v2523 = vadd.f32 0.0, %v2522
        %v2524 = vpop.f32.mrb[0].mxu0
        %2525 = vmatprep.mubr.bf16.mxu0 0
        %2526 = vmatmul.mubr.bf16.gmra.mrb[0].mxu0 %v2450
        %v2527 = vpop.f32.mrb[0].mxu0
        %v2528 = vadd.f32 0.0, %v2527
        %v2529 = vpop.f32.mrb[0].mxu0
        %v2530 = vpop.f32.mrb[0].mxu0
        %v2531 = vadd.f32 0.0, %v2530
        %v2532 = vpop.f32.mrb[0].mxu0
        %2533 = vmatprep.mubr.bf16.mxu0 0
        %2534 = vmatmul.mubr.bf16.gmra.mrb[0].mxu0 %v2451
        %v2535 = vpop.f32.mrb[0].mxu0
        %v2536 = vadd.f32 0.0, %v2535
        %v2537 = vpop.f32.mrb[0].mxu0
        %v2538 = vpop.f32.mrb[0].mxu0
        %v2539 = vadd.f32 0.0, %v2538
        %v2540 = vpop.f32.mrb[0].mxu0
        %2541 = vmatprep.mubr.bf16.mxu0 0
        %2542 = vmatmul.mubr.bf16.gmra.mrb[0].mxu0 %v2452
        %v2543 = vpop.f32.mrb[0].mxu0
        %v2544 = vadd.f32 0.0, %v2543
        %v2545 = vpop.f32.mrb[0].mxu0
        %v2546 = vpop.f32.mrb[0].mxu0
        %v2547 = vadd.f32 0.0, %v2546
        %v2548 = vpop.f32.mrb[0].mxu0
        %2549 = vdwg.mxu0
        %v2550 = vpack.c.bf16 %v2491, %v2488
        %v2551 = vpack.c.bf16 %v2499, %v2496
        %v2552 = vpack.c.bf16 %v2507, %v2504
        %v2553 = vpack.c.bf16 %v2515, %v2512
        %v2554 = vpack.c.bf16 %v2523, %v2520
        %v2555 = vpack.c.bf16 %v2531, %v2528
        %v2556 = vpack.c.bf16 %v2539, %v2536
        %v2557 = vpack.c.bf16 %v2547, %v2544
        %v2566 = vunpack.c.l.b16 %v2550
        %v2567 = vunpack.c.h.b16 %v2550
        %v2568 = vunpack.c.l.b16 %v2551
        %v2569 = vunpack.c.h.b16 %v2551
        %v2570 = vunpack.c.l.b16 %v2552
        %v2571 = vunpack.c.h.b16 %v2552
        %v2572 = vunpack.c.l.b16 %v2553
        %v2573 = vunpack.c.h.b16 %v2553
        %v2574 = vunpack.c.l.b16 %v2554
        %v2575 = vunpack.c.h.b16 %v2554
        %v2576 = vunpack.c.l.b16 %v2555
        %v2577 = vunpack.c.h.b16 %v2555
        %v2578 = vunpack.c.l.b16 %v2556
        %v2579 = vunpack.c.h.b16 %v2556
        %v2580 = vunpack.c.l.b16 %v2557
        %v2581 = vunpack.c.h.b16 %v2557
        %v2582 = vpack.c.b16 %v2566, %v2566
        %v2583 = vpack.c.b16 %v2567, %v2567
        %v2584 = vpack.c.b16 %v2568, %v2568
        %v2585 = vpack.c.b16 %v2569, %v2569
        %v2586 = vpack.c.b16 %v2570, %v2570
        %v2587 = vpack.c.b16 %v2571, %v2571
        %v2588 = vpack.c.b16 %v2572, %v2572
        %v2589 = vpack.c.b16 %v2573, %v2573
        %v2590 = vpack.c.b16 %v2574, %v2574
        %v2591 = vpack.c.b16 %v2575, %v2575
        %v2592 = vpack.c.b16 %v2576, %v2576
        %v2593 = vpack.c.b16 %v2577, %v2577
        %v2594 = vpack.c.b16 %v2578, %v2578
        %v2595 = vpack.c.b16 %v2579, %v2579
        %v2596 = vpack.c.b16 %v2580, %v2580
        %v2597 = vpack.c.b16 %v2581, %v2581
        %s2614 = scalar_lea.vmem %s554, 128 [#allocation13]
        %2615 = vst [vmem:[%s2614] sm:$0xf] %v2582
        %2616 = vst [vmem:[%s2614 + $0x4] sm:$0xf] %v2583
        %2617 = vst [vmem:[%s2614 + $0x8] sm:$0xf] %v2584
        %2618 = vst [vmem:[%s2614 + $0xc] sm:$0xf] %v2585
        %2619 = vst [vmem:[%s2614 + $0x10] sm:$0xf] %v2586
        %2620 = vst [vmem:[%s2614 + $0x14] sm:$0xf] %v2587
        %2621 = vst [vmem:[%s2614 + $0x18] sm:$0xf] %v2588
        %2622 = vst [vmem:[%s2614 + $0x1c] sm:$0xf] %v2589
        %2623 = vst [vmem:[%s2614 + $0x20] sm:$0xf] %v2590
        %2624 = vst [vmem:[%s2614 + $0x24] sm:$0xf] %v2591
        %2625 = vst [vmem:[%s2614 + $0x28] sm:$0xf] %v2592
        %2626 = vst [vmem:[%s2614 + $0x2c] sm:$0xf] %v2593
        %2627 = vst [vmem:[%s2614 + $0x30] sm:$0xf] %v2594
        %2628 = vst [vmem:[%s2614 + $0x34] sm:$0xf] %v2595
        %2629 = vst [vmem:[%s2614 + $0x38] sm:$0xf] %v2596
        %2630 = vst [vmem:[%s2614 + $0x3c] sm:$0xf] %v2597
        %s2631 = sadd.s32 %s1531, 3
        %s2632 = smul.u32 %s2631, 16
        %s2633 = smul.addr %s2632, 4
        %s2634 = scalar_lea.vmem %s9, %s2633
        %v2635 = vld [vmem:[%s2634] sm:$0xf]
        %v2636 = vld [vmem:[%s2634 + $0x4] sm:$0xf]
        %v2637 = vld [vmem:[%s2634 + $0x8] sm:$0xf]
        %v2638 = vld [vmem:[%s2634 + $0xc] sm:$0xf]
        %v2639 = vld [vmem:[%s2634 + $0x10] sm:$0xf]
        %v2640 = vld [vmem:[%s2634 + $0x14] sm:$0xf]
        %v2641 = vld [vmem:[%s2634 + $0x18] sm:$0xf]
        %v2642 = vld [vmem:[%s2634 + $0x1c] sm:$0xf]
        %v2643 = vld [vmem:[%s2634 + $0x20] sm:$0xf]
        %v2644 = vld [vmem:[%s2634 + $0x24] sm:$0xf]
        %v2645 = vld [vmem:[%s2634 + $0x28] sm:$0xf]
        %v2646 = vld [vmem:[%s2634 + $0x2c] sm:$0xf]
        %v2647 = vld [vmem:[%s2634 + $0x30] sm:$0xf]
        %v2648 = vld [vmem:[%s2634 + $0x34] sm:$0xf]
        %v2649 = vld [vmem:[%s2634 + $0x38] sm:$0xf]
        %v2650 = vld [vmem:[%s2634 + $0x3c] sm:$0xf]
        %v2667 = vunpack.c.l.b16 %v2635
        %v2668 = vunpack.c.l.b16 %v2636
        %v2669 = vunpack.c.l.b16 %v2637
        %v2670 = vunpack.c.l.b16 %v2638
        %v2671 = vunpack.c.l.b16 %v2639
        %v2672 = vunpack.c.l.b16 %v2640
        %v2673 = vunpack.c.l.b16 %v2641
        %v2674 = vunpack.c.l.b16 %v2642
        %v2675 = vunpack.c.l.b16 %v2643
        %v2676 = vunpack.c.l.b16 %v2644
        %v2677 = vunpack.c.l.b16 %v2645
        %v2678 = vunpack.c.l.b16 %v2646
        %v2679 = vunpack.c.l.b16 %v2647
        %v2680 = vunpack.c.l.b16 %v2648
        %v2681 = vunpack.c.l.b16 %v2649
        %v2682 = vunpack.c.l.b16 %v2650
        %v2683 = vpack.c.b16 %v2668, %v2667
        %v2684 = vpack.c.b16 %v2670, %v2669
        %v2685 = vpack.c.b16 %v2672, %v2671
        %v2686 = vpack.c.b16 %v2674, %v2673
        %v2687 = vpack.c.b16 %v2676, %v2675
        %v2688 = vpack.c.b16 %v2678, %v2677
        %v2689 = vpack.c.b16 %v2680, %v2679
        %v2690 = vpack.c.b16 %v2682, %v2681
        %2699 = vmatprep.subr.bf16.mxu0 0
        %2700 = vmatpush1.bf16.msra.mxu0 %v2683
        %2701 = vmatprep.subr.bf16.mxu0 0
        %2702 = vmatpush1.bf16.msra.mxu0 %v2684
        %2703 = vmatprep.subr.bf16.mxu0 0
        %2704 = vmatpush1.bf16.msra.mxu0 %v2685
        %2705 = vmatprep.subr.bf16.mxu0 0
        %2706 = vmatpush1.bf16.msra.mxu0 %v2686
        %2707 = vmatprep.subr.bf16.mxu0 0
        %2708 = vmatpush1.bf16.msra.mxu0 %v2687
        %2709 = vmatprep.subr.bf16.mxu0 0
        %2710 = vmatpush1.bf16.msra.mxu0 %v2688
        %2711 = vmatprep.subr.bf16.mxu0 0
        %2712 = vmatpush1.bf16.msra.mxu0 %v2689
        %2713 = vmatprep.subr.bf16.mxu0 0
        %2714 = vmatpush1.bf16.msra.mxu0 %v2690
        %2715 = vmatprep.subr.bf16.mxu0 0
        %2716 = vmatpush1.bf16.msra.mxu0 0
        %2717 = vmatprep.subr.bf16.mxu0 0
        %2718 = vmatpush1.bf16.msra.mxu0 0
        %2719 = vmatprep.subr.bf16.mxu0 0
        %2720 = vmatpush1.bf16.msra.mxu0 0
        %2721 = vmatprep.subr.bf16.mxu0 0
        %2722 = vmatpush1.bf16.msra.mxu0 0
        %2723 = vmatprep.subr.bf16.mxu0 0
        %2724 = vmatpush1.bf16.msra.mxu0 0
        %2725 = vmatprep.subr.bf16.mxu0 0
        %2726 = vmatpush1.bf16.msra.mxu0 0
        %2727 = vmatprep.subr.bf16.mxu0 0
        %2728 = vmatpush1.bf16.msra.mxu0 0
        %2729 = vmatprep.subr.bf16.mxu0 0
        %2730 = vmatpush1.bf16.msra.mxu0 0
        %2731 = vmatprep.mubr.bf16.mxu0 0
        %2732 = vmatmul.mubr.bf16.gmra.mrb[0].mxu0 %v1507
        %v2733 = vpop.f32.mrb[0].mxu0
        %v2734 = vadd.f32 0.0, %v2733
        %v2735 = vpop.f32.mrb[0].mxu0
        %v2736 = vpop.f32.mrb[0].mxu0
        %v2737 = vadd.f32 0.0, %v2736
        %v2738 = vpop.f32.mrb[0].mxu0
        %2739 = vmatprep.mubr.bf16.mxu0 0
        %2740 = vmatmul.mubr.bf16.gmra.mrb[0].mxu0 %v1508
        %v2741 = vpop.f32.mrb[0].mxu0
        %v2742 = vadd.f32 0.0, %v2741
        %v2743 = vpop.f32.mrb[0].mxu0
        %v2744 = vpop.f32.mrb[0].mxu0
        %v2745 = vadd.f32 0.0, %v2744
        %v2746 = vpop.f32.mrb[0].mxu0
        %2747 = vmatprep.mubr.bf16.mxu0 0
        %2748 = vmatmul.mubr.bf16.gmra.mrb[0].mxu0 %v1509
        %v2749 = vpop.f32.mrb[0].mxu0
        %v2750 = vadd.f32 0.0, %v2749
        %v2751 = vpop.f32.mrb[0].mxu0
        %v2752 = vpop.f32.mrb[0].mxu0
        %v2753 = vadd.f32 0.0, %v2752
        %v2754 = vpop.f32.mrb[0].mxu0
        %2755 = vmatprep.mubr.bf16.mxu0 0
        %2756 = vmatmul.mubr.bf16.gmra.mrb[0].mxu0 %v1510
        %v2757 = vpop.f32.mrb[0].mxu0
        %v2758 = vadd.f32 0.0, %v2757
        %v2759 = vpop.f32.mrb[0].mxu0
        %v2760 = vpop.f32.mrb[0].mxu0
        %v2761 = vadd.f32 0.0, %v2760
        %v2762 = vpop.f32.mrb[0].mxu0
        %2763 = vmatprep.mubr.bf16.mxu0 0
        %2764 = vmatmul.mubr.bf16.gmra.mrb[0].mxu0 %v1511
        %v2765 = vpop.f32.mrb[0].mxu0
        %v2766 = vadd.f32 0.0, %v2765
        %v2767 = vpop.f32.mrb[0].mxu0
        %v2768 = vpop.f32.mrb[0].mxu0
        %v2769 = vadd.f32 0.0, %v2768
        %v2770 = vpop.f32.mrb[0].mxu0
        %2771 = vmatprep.mubr.bf16.mxu0 0
        %2772 = vmatmul.mubr.bf16.gmra.mrb[0].mxu0 %v1512
        %v2773 = vpop.f32.mrb[0].mxu0
        %v2774 = vadd.f32 0.0, %v2773
        %v2775 = vpop.f32.mrb[0].mxu0
        %v2776 = vpop.f32.mrb[0].mxu0
        %v2777 = vadd.f32 0.0, %v2776
        %v2778 = vpop.f32.mrb[0].mxu0
        %2779 = vmatprep.mubr.bf16.mxu0 0
        %2780 = vmatmul.mubr.bf16.gmra.mrb[0].mxu0 %v1513
        %v2781 = vpop.f32.mrb[0].mxu0
        %v2782 = vadd.f32 0.0, %v2781
        %v2783 = vpop.f32.mrb[0].mxu0
        %v2784 = vpop.f32.mrb[0].mxu0
        %v2785 = vadd.f32 0.0, %v2784
        %v2786 = vpop.f32.mrb[0].mxu0
        %2787 = vmatprep.mubr.bf16.mxu0 0
        %2788 = vmatmul.mubr.bf16.gmra.mrb[0].mxu0 %v1514
        %v2789 = vpop.f32.mrb[0].mxu0
        %v2790 = vadd.f32 0.0, %v2789
        %v2791 = vpop.f32.mrb[0].mxu0
        %v2792 = vpop.f32.mrb[0].mxu0
        %v2793 = vadd.f32 0.0, %v2792
        %v2794 = vpop.f32.mrb[0].mxu0
        %2795 = vdwg.mxu0
        %v2796 = vpack.c.bf16 %v2737, %v2734
        %v2797 = vpack.c.bf16 %v2745, %v2742
        %v2798 = vpack.c.bf16 %v2753, %v2750
        %v2799 = vpack.c.bf16 %v2761, %v2758
        %v2800 = vpack.c.bf16 %v2769, %v2766
        %v2801 = vpack.c.bf16 %v2777, %v2774
        %v2802 = vpack.c.bf16 %v2785, %v2782
        %v2803 = vpack.c.bf16 %v2793, %v2790
        %2804 = vmatprep.subr.bf16.mxu0 0
        %2805 = vmatpush1.bf16.msra.mxu0 %v1736
        %2806 = vmatprep.subr.bf16.mxu0 0
        %2807 = vmatpush1.bf16.msra.mxu0 %v1737
        %2808 = vmatprep.subr.bf16.mxu0 0
        %2809 = vmatpush1.bf16.msra.mxu0 %v1738
        %2810 = vmatprep.subr.bf16.mxu0 0
        %2811 = vmatpush1.bf16.msra.mxu0 %v1739
        %2812 = vmatprep.subr.bf16.mxu0 0
        %2813 = vmatpush1.bf16.msra.mxu0 %v1740
        %2814 = vmatprep.subr.bf16.mxu0 0
        %2815 = vmatpush1.bf16.msra.mxu0 %v1741
        %2816 = vmatprep.subr.bf16.mxu0 0
        %2817 = vmatpush1.bf16.msra.mxu0 %v1742
        %2818 = vmatprep.subr.bf16.mxu0 0
        %2819 = vmatpush1.bf16.msra.mxu0 %v1743
        %2820 = vmatprep.subr.bf16.mxu0 0
        %2821 = vmatpush1.bf16.msra.mxu0 0
        %2822 = vmatprep.subr.bf16.mxu0 0
        %2823 = vmatpush1.bf16.msra.mxu0 0
        %2824 = vmatprep.subr.bf16.mxu0 0
        %2825 = vmatpush1.bf16.msra.mxu0 0
        %2826 = vmatprep.subr.bf16.mxu0 0
        %2827 = vmatpush1.bf16.msra.mxu0 0
        %2828 = vmatprep.subr.bf16.mxu0 0
        %2829 = vmatpush1.bf16.msra.mxu0 0
        %2830 = vmatprep.subr.bf16.mxu0 0
        %2831 = vmatpush1.bf16.msra.mxu0 0
        %2832 = vmatprep.subr.bf16.mxu0 0
        %2833 = vmatpush1.bf16.msra.mxu0 0
        %2834 = vmatprep.subr.bf16.mxu0 0
        %2835 = vmatpush1.bf16.msra.mxu0 0
        %2836 = vmatprep.mubr.bf16.mxu0 0
        %2837 = vmatmul.mubr.bf16.gmra.mrb[0].mxu0 %v2796
        %v2838 = vpop.f32.mrb[0].mxu0
        %v2839 = vadd.f32 0.0, %v2838
        %v2840 = vpop.f32.mrb[0].mxu0
        %v2841 = vpop.f32.mrb[0].mxu0
        %v2842 = vadd.f32 0.0, %v2841
        %v2843 = vpop.f32.mrb[0].mxu0
        %2844 = vmatprep.mubr.bf16.mxu0 0
        %2845 = vmatmul.mubr.bf16.gmra.mrb[0].mxu0 %v2797
        %v2846 = vpop.f32.mrb[0].mxu0
        %v2847 = vadd.f32 0.0, %v2846
        %v2848 = vpop.f32.mrb[0].mxu0
        %v2849 = vpop.f32.mrb[0].mxu0
        %v2850 = vadd.f32 0.0, %v2849
        %v2851 = vpop.f32.mrb[0].mxu0
        %2852 = vmatprep.mubr.bf16.mxu0 0
        %2853 = vmatmul.mubr.bf16.gmra.mrb[0].mxu0 %v2798
        %v2854 = vpop.f32.mrb[0].mxu0
        %v2855 = vadd.f32 0.0, %v2854
        %v2856 = vpop.f32.mrb[0].mxu0
        %v2857 = vpop.f32.mrb[0].mxu0
        %v2858 = vadd.f32 0.0, %v2857
        %v2859 = vpop.f32.mrb[0].mxu0
        %2860 = vmatprep.mubr.bf16.mxu0 0
        %2861 = vmatmul.mubr.bf16.gmra.mrb[0].mxu0 %v2799
        %v2862 = vpop.f32.mrb[0].mxu0
        %v2863 = vadd.f32 0.0, %v2862
        %v2864 = vpop.f32.mrb[0].mxu0
        %v2865 = vpop.f32.mrb[0].mxu0
        %v2866 = vadd.f32 0.0, %v2865
        %v2867 = vpop.f32.mrb[0].mxu0
        %2868 = vmatprep.mubr.bf16.mxu0 0
        %2869 = vmatmul.mubr.bf16.gmra.mrb[0].mxu0 %v2800
        %v2870 = vpop.f32.mrb[0].mxu0
        %v2871 = vadd.f32 0.0, %v2870
        %v2872 = vpop.f32.mrb[0].mxu0
        %v2873 = vpop.f32.mrb[0].mxu0
        %v2874 = vadd.f32 0.0, %v2873
        %v2875 = vpop.f32.mrb[0].mxu0
        %2876 = vmatprep.mubr.bf16.mxu0 0
        %2877 = vmatmul.mubr.bf16.gmra.mrb[0].mxu0 %v2801
        %v2878 = vpop.f32.mrb[0].mxu0
        %v2879 = vadd.f32 0.0, %v2878
        %v2880 = vpop.f32.mrb[0].mxu0
        %v2881 = vpop.f32.mrb[0].mxu0
        %v2882 = vadd.f32 0.0, %v2881
        %v2883 = vpop.f32.mrb[0].mxu0
        %2884 = vmatprep.mubr.bf16.mxu0 0
        %2885 = vmatmul.mubr.bf16.gmra.mrb[0].mxu0 %v2802
        %v2886 = vpop.f32.mrb[0].mxu0
        %v2887 = vadd.f32 0.0, %v2886
        %v2888 = vpop.f32.mrb[0].mxu0
        %v2889 = vpop.f32.mrb[0].mxu0
        %v2890 = vadd.f32 0.0, %v2889
        %v2891 = vpop.f32.mrb[0].mxu0
        %2892 = vmatprep.mubr.bf16.mxu0 0
        %2893 = vmatmul.mubr.bf16.gmra.mrb[0].mxu0 %v2803
        %v2894 = vpop.f32.mrb[0].mxu0
        %v2895 = vadd.f32 0.0, %v2894
        %v2896 = vpop.f32.mrb[0].mxu0
        %v2897 = vpop.f32.mrb[0].mxu0
        %v2898 = vadd.f32 0.0, %v2897
        %v2899 = vpop.f32.mrb[0].mxu0
        %2900 = vdwg.mxu0
        %v2901 = vpack.c.bf16 %v2842, %v2839
        %v2902 = vpack.c.bf16 %v2850, %v2847
        %v2903 = vpack.c.bf16 %v2858, %v2855
        %v2904 = vpack.c.bf16 %v2866, %v2863
        %v2905 = vpack.c.bf16 %v2874, %v2871
        %v2906 = vpack.c.bf16 %v2882, %v2879
        %v2907 = vpack.c.bf16 %v2890, %v2887
        %v2908 = vpack.c.bf16 %v2898, %v2895
        %v2917 = vunpack.c.l.b16 %v2901
        %v2918 = vunpack.c.h.b16 %v2901
        %v2919 = vunpack.c.l.b16 %v2902
        %v2920 = vunpack.c.h.b16 %v2902
        %v2921 = vunpack.c.l.b16 %v2903
        %v2922 = vunpack.c.h.b16 %v2903
        %v2923 = vunpack.c.l.b16 %v2904
        %v2924 = vunpack.c.h.b16 %v2904
        %v2925 = vunpack.c.l.b16 %v2905
        %v2926 = vunpack.c.h.b16 %v2905
        %v2927 = vunpack.c.l.b16 %v2906
        %v2928 = vunpack.c.h.b16 %v2906
        %v2929 = vunpack.c.l.b16 %v2907
        %v2930 = vunpack.c.h.b16 %v2907
        %v2931 = vunpack.c.l.b16 %v2908
        %v2932 = vunpack.c.h.b16 %v2908
        %v2933 = vpack.c.b16 %v2917, %v2917
        %v2934 = vpack.c.b16 %v2918, %v2918
        %v2935 = vpack.c.b16 %v2919, %v2919
        %v2936 = vpack.c.b16 %v2920, %v2920
        %v2937 = vpack.c.b16 %v2921, %v2921
        %v2938 = vpack.c.b16 %v2922, %v2922
        %v2939 = vpack.c.b16 %v2923, %v2923
        %v2940 = vpack.c.b16 %v2924, %v2924
        %v2941 = vpack.c.b16 %v2925, %v2925
        %v2942 = vpack.c.b16 %v2926, %v2926
        %v2943 = vpack.c.b16 %v2927, %v2927
        %v2944 = vpack.c.b16 %v2928, %v2928
        %v2945 = vpack.c.b16 %v2929, %v2929
        %v2946 = vpack.c.b16 %v2930, %v2930
        %v2947 = vpack.c.b16 %v2931, %v2931
        %v2948 = vpack.c.b16 %v2932, %v2932
        %s2965 = scalar_lea.vmem %s554, 192 [#allocation13]
        %2966 = vst [vmem:[%s2965] sm:$0xf] %v2933
        %2967 = vst [vmem:[%s2965 + $0x4] sm:$0xf] %v2934
        %2968 = vst [vmem:[%s2965 + $0x8] sm:$0xf] %v2935
        %2969 = vst [vmem:[%s2965 + $0xc] sm:$0xf] %v2936
        %2970 = vst [vmem:[%s2965 + $0x10] sm:$0xf] %v2937
        %2971 = vst [vmem:[%s2965 + $0x14] sm:$0xf] %v2938
        %2972 = vst [vmem:[%s2965 + $0x18] sm:$0xf] %v2939
        %2973 = vst [vmem:[%s2965 + $0x1c] sm:$0xf] %v2940
        %2974 = vst [vmem:[%s2965 + $0x20] sm:$0xf] %v2941
        %2975 = vst [vmem:[%s2965 + $0x24] sm:$0xf] %v2942
        %2976 = vst [vmem:[%s2965 + $0x28] sm:$0xf] %v2943
        %2977 = vst [vmem:[%s2965 + $0x2c] sm:$0xf] %v2944
        %2978 = vst [vmem:[%s2965 + $0x30] sm:$0xf] %v2945
        %2979 = vst [vmem:[%s2965 + $0x34] sm:$0xf] %v2946
        %2980 = vst [vmem:[%s2965 + $0x38] sm:$0xf] %v2947
        %2981 = vst [vmem:[%s2965 + $0x3c] sm:$0xf] %v2948
        %s2982 = sand.u32 %s295, 1
        %s2983 = scalar_lea.sflag [#allocation5], %s2982
        %s2984 = sand.u32 %s295, 1
        %s2985 = smul.addr %s2984, 64
        %s2986 = scalar_lea.vmem [#allocation12], %s2985
        %s2987 = sand.u32 %s325, 1
        %s2988 = scalar_lea.sflag [#allocation14], %s2987
        %s2989 = sand.u32 %s325, 1
        %s2990 = smul.addr %s2989, 256
        %s2991 = scalar_lea.vmem [#allocation13], %s2990
        // Predicated region
        $region85: #{tpu_custom_call.1} parent=59 // pred_check
          %p2992 = pneg %p305
        $region86: #{tpu_custom_call.1} parent=59 // pred_check_branch
          %2994 = sbr.rel (%p2992) target = $region88
        $region87: #{tpu_custom_call.1} parent=59 // pred_region
          %s2995 = smul.u32 16, %s40
          %s2997 = ssub.s32 1024, 1024
          %2998 = vsyncadd %s2983, %s2997
          %s2999 = smul.addr %s39, 16
          %s3000 = sadd.s32 %s2995, %s2999
          %s3001 = smul.addr %s3000, 64
          %s3002 = scalar_lea.hbm %s10, %s3001
          %s3003 = sshll.u32 %s2986, 4
          %s3004 = int_to_ptr.vmem [resolvable:$true] %s3003
          %3009 = dma.vmem_to_hbm [thread:$0]  %s3004, 1024, %s3002, %s2983, 64, 64, 4
        $region88: #{tpu_custom_call.1} parent=59 // pred_fallthru
          _
        // Predicated region
        $region89: #{tpu_custom_call.1} parent=59 // pred_check
          %p3010 = pneg %p335
        $region90: #{tpu_custom_call.1} parent=59 // pred_check_branch
          %3012 = sbr.rel (%p3010) target = $region92
        $region91: #{tpu_custom_call.1} parent=59 // pred_region
          %s3013 = smul.u32 4, %s41
          %s3014 = smul.u32 16, %s40
          %s3016 = ssub.s32 4096, 4096
          %3017 = vsyncadd %s2988, %s3016
          %s3018 = smul.addr %s3013, 16
          %s3019 = sadd.s32 %s3014, %s3018
          %s3020 = smul.addr %s39, 64
          %s3021 = sadd.s32 %s3019, %s3020
          %s3022 = smul.addr %s3021, 64
          %s3023 = scalar_lea.hbm %s11, %s3022
          %s3024 = sshll.u32 %s2991, 4
          %s3025 = int_to_ptr.vmem [resolvable:$true] %s3024
          %3030 = dma.vmem_to_hbm [thread:$0]  %s3025, 4096, %s3023, %s2988, 64, 64, 4
        $region92: #{tpu_custom_call.1} parent=59 // pred_fallthru
          _
      $region60: #{tpu_custom_call.1} parent=5 // pred_fallthru
        _
      %p3031 = scmp.le.s32.totalorder 2, %s29
      // Predicated region
      $region93: #{tpu_custom_call.1} parent=5 // pred_check
        %p3032 = pneg %p3031
      $region94: #{tpu_custom_call.1} parent=5 // pred_check_branch
        %3034 = sbr.rel (%p3032) target = $region96
      $region95: #{tpu_custom_call.1} parent=5 // pred_region
        %s3035 = ssub.s32 %s29, 2
        // Predicated region
        $region97: #{tpu_custom_call.1} parent=95 // pred_check
          %p3036 = pneg %p311
        $region98: #{tpu_custom_call.1} parent=95 // pred_check_branch
          %3038 = sbr.rel (%p3036) target = $region100
        $region99: #{tpu_custom_call.1} parent=95 // pred_region
          %s3039 = sand.u32 %s296, 1
          %s3040 = scalar_lea.sflag [#allocation5], %s3039
          %s3041 = sand.u32 %s296, 1
          %s3042 = smul.addr %s3041, 64
          %s3043 = scalar_lea.vmem [#allocation12], %s3042
          %3044 = dma.done %s3040, 1024
        $region100: #{tpu_custom_call.1} parent=95 // pred_fallthru
          _
        // Predicated region
        $region101: #{tpu_custom_call.1} parent=95 // pred_check
          %p3045 = pneg %p341
        $region102: #{tpu_custom_call.1} parent=95 // pred_check_branch
          %3047 = sbr.rel (%p3045) target = $region104
        $region103: #{tpu_custom_call.1} parent=95 // pred_region
          %s3048 = sand.u32 %s326, 1
          %s3049 = scalar_lea.sflag [#allocation14], %s3048
          %s3050 = sand.u32 %s326, 1
          %s3051 = smul.addr %s3050, 256
          %s3052 = scalar_lea.vmem [#allocation13], %s3051
          %3053 = dma.done %s3049, 4096
        $region104: #{tpu_custom_call.1} parent=95 // pred_fallthru
          _
      $region96: #{tpu_custom_call.1} parent=5 // pred_fallthru
        _
    $region6: #{tpu_custom_call.1} parent=1 // loop_footer
      %s33 = sadd.s32 1, %s29
    $region7: #{tpu_custom_call.1} parent=1 // loop_footer_branch
      %28 = sbr.rel target = $region3
    $region8: #{tpu_custom_call.1} parent=1 // loop_exit
      _
    %3054 = vsyncpa [#allocation4], 1
    %s3055 = scalar_lea.sflag [#allocation4], 1
    %3056 = vsyncpa %s3055, 1
    %3057 = vsyncpa [#allocation7], 1
    %3058 = vsyncpa [#allocation10], 1
    %s3059 = scalar_lea.sflag [#allocation10], 1
    %3060 = vsyncpa %s3059, 1
    %3061 = vsyncpa [#allocation5], 1
    %s3062 = scalar_lea.sflag [#allocation5], 1
    %3063 = vsyncpa %s3062, 1
    %3064 = vsyncpa [#allocation14], 1
    %s3065 = scalar_lea.sflag [#allocation14], 1
    %3066 = vsyncpa %s3065, 1

</llo_original>
